<compile_context>
chip_gen: v6e
topology: v6e:2x2x1
jax: 0.10.0
libtpu: 0.0.40
codegen_flags: <defaults>
</compile_context>

<pallas_src>
import numpy as np
import jax
import jax.numpy as jnp
from jax.experimental import pallas as pl
from jax.experimental.pallas import tpu as pltpu

EPS = 1e-5
LANE = 128


def _round_up(x, m):
    return ((int(x) + m - 1) // m) * m


# ---------------------------------------------------------------------------
# Layer descriptors (stand-ins for parse_model_from_cfg results)
# ---------------------------------------------------------------------------
class ConvBNAct:
    def __init__(self, params, stride, act=True):
        self.params = params
        self.stride = stride
        self.act = act


class UpsampleLayer:
    def __init__(self, target_layer, scale=2):
        self.target_layer = target_layer
        self.scale = scale


class ConcatLayer:
    def __init__(self, target_layers):
        self.target_layers = target_layers


class GetLayer:
    def __init__(self, target_layer):
        self.target_layer = target_layer


# TODO(synk): LSDropBlock (epoch-gated DropBlock regularizer) is identity at
# inference and has no clean Pallas equivalent; it is omitted from this config.


def make_conv_params(key, cin, cout, k):
    kw, kg, kb, km, kv = jax.random.split(key, 5)
    return dict(
        w=jax.random.normal(kw, (cout, cin, k, k), jnp.float32) * 0.1,   # OIHW
        gamma=1.0 + 0.1 * jax.random.normal(kg, (cout,), jnp.float32),
        beta=0.05 * jax.random.normal(kb, (cout,), jnp.float32),
        mean=0.1 * jax.random.normal(km, (cout,), jnp.float32),
        var=0.5 + jax.random.uniform(kv, (cout,), jnp.float32),
    )


def build_backbone_layers(key):
    """Mirrors what parse_model_from_cfg would build from the YAML dict."""
    keys = jax.random.split(key, 4)
    layers = [
        ConvBNAct(make_conv_params(keys[0], 4, 8, 3), stride=2),    # 0: 16x16 -> 8x8
        ConvBNAct(make_conv_params(keys[1], 8, 16, 3), stride=2),   # 1: 8x8  -> 4x4
        ConvBNAct(make_conv_params(keys[2], 16, 16, 3), stride=1),  # 2: 4x4  -> 4x4
        UpsampleLayer(target_layer=2, scale=2),                     # 3: -> 8x8 x16
        ConcatLayer(target_layers=[3, 0]),                          # 4: -> 8x8 x24
        ConvBNAct(make_conv_params(keys[3], 24, 8, 1), stride=1),   # 5: -> 8x8 x8
        GetLayer(target_layer=2),                                   # 6: passthrough of 2
    ]
    # yaml['output_layers'] = [3, 6]  (1-indexed) -> [2, 5]
    output_layers = [2, 5]
    return layers, output_layers


# ---------------------------------------------------------------------------
# Build-time constants (gather matrices, folded weights)
# ---------------------------------------------------------------------------
def _conv_gather_taps(hin, win, k, stride, pad):
    """Per-tap 0/1 selection matrices G[t] of shape (Hin*Win, Hout*Wout)."""
    hout = (hin + 2 * pad - k) // stride + 1
    wout = (win + 2 * pad - k) // stride + 1
    g = np.zeros((k * k, hin * win, hout * wout), np.float32)
    for kh in range(k):
        for kw in range(k):
            t = kh * k + kw
            for ho in range(hout):
                hi = ho * stride + kh - pad
                if hi < 0 or hi >= hin:
                    continue
                for wo in range(wout):
                    wi = wo * stride + kw - pad
                    if wi < 0 or wi >= win:
                        continue
                    g[t, hi * win + wi, ho * wout + wo] = 1.0
    return g, hout, wout


def _upsample_gather(h, w, scale):
    """0/1 matrix U of shape (h*w, (h*scale)*(w*scale)) for nearest upsampling."""
    ho, wo = h * scale, w * scale
    u = np.zeros((h * w, ho * wo), np.float32)
    for i in range(ho):
        for j in range(wo):
            u[(i // scale) * w + (j // scale), i * wo + j] = 1.0
    return u, ho, wo


def _batch_blockdiag(g, n):
    """kron(I_n, g) over the trailing two axes (per-tap if g is 3-D)."""
    eye = np.eye(n, dtype=np.float32)
    if g.ndim == 2:
        return np.kron(eye, g)
    return np.stack([np.kron(eye, g[t]) for t in range(g.shape[0])])


def _fold_bn(p):
    """Fold eval-mode BatchNorm into the conv weight + one per-channel bias."""
    scale = p["gamma"] / jnp.sqrt(p["var"] + EPS)
    bias = p["beta"] - p["mean"] * scale
    w = p["w"] * scale[:, None, None, None]
    return w, bias


def _full_spec(arr):
    zeros = (0,) * arr.ndim          # same (full-extent) block every grid step
    return pl.BlockSpec(arr.shape, lambda i: zeros)


# ---------------------------------------------------------------------------
# Fused kernel
# ---------------------------------------------------------------------------
def _make_fused_kernel(plan, n_consts, out_infos, slab_w, w_rows):
    """Kernel body: the whole backbone (all batch elements folded into lanes)."""

    def kernel(*refs):
        x_ref = refs[0]
        cref = refs[1:1 + n_consts]
        w_ref = refs[1 + n_consts]          # packed bf16 weight blob
        b_ref = refs[2 + n_consts]          # packed f32 folded-BN bias blob
        o_ref = refs[3 + n_consts]          # single lane-dense output slab

        def conv_epilogue(acc_full, cout, b_off, act):
            acc = acc_full[0:cout, :] if cout < w_rows else acc_full
            y = acc + b_ref[b_off:b_off + cout, :]
            return y * jax.nn.sigmoid(y) if act else y   # fused SiLU, f32

        x = x_ref[...]                      # (Cin, N*H*W) bf16
        feats = []
        for op in plan:
            kind = op["kind"]
            if kind == "conv":
                xb = x.astype(jnp.bfloat16)
                if op["g"] is None:                       # 1x1 stride-1: patches == x
                    patches = xb
                else:
                    g_ref = cref[op["g"]]                 # (taps, N*Min, N*Mout) bf16
                    # In-kernel im2col: per-tap exact 0/1-selection matmuls,
                    # concatenated once, feeding ONE wide weight matmul below.
                    patches = jnp.concatenate(
                        [jnp.dot(xb, g_ref[t], preferred_element_type=jnp.float32)
                         for t in range(op["taps"])],
                        axis=0).astype(jnp.bfloat16)
                wseg = w_ref[:, op["w_off"]:op["w_off"] + op["w_len"]]
                acc = jnp.dot(wseg, patches, preferred_element_type=jnp.float32)
                x = conv_epilogue(acc, op["cout"], op["b_off"], op["act"])
            elif kind == "tail":             # fused Upsample -> Concat -> 1x1 Conv
                acc = None
                for br in op["branches"]:
                    fb = feats[br["src"]].astype(jnp.bfloat16)
                    wseg = w_ref[:, br["w_off"]:br["w_off"] + br["w_len"]]
                    part = jnp.dot(wseg, fb, preferred_element_type=jnp.float32)
                    if br["u"] is not None:  # nearest-upsample = exact 0/1 selection
                        part = jnp.dot(part.astype(jnp.bfloat16), cref[br["u"]][...],
                                       preferred_element_type=jnp.float32)
                    acc = part if acc is None else acc + part
                x = conv_epilogue(acc, op["cout"], op["b_off"], op["act"])
            elif kind == "upsample":                      # generic fallback
                x = jnp.dot(feats[op["src"]].astype(jnp.bfloat16), cref[op["u"]][...],
                            preferred_element_type=jnp.float32)
            elif kind == "concat":                        # generic fallback
                x = jnp.concatenate([feats[t] for t in op["srcs"]], axis=0)
            elif kind == "get":
                x = feats[op["src"]]
            else:                                         # "skip": folded into a later op
                x = None
            feats.append(x)

        # Pack all requested outputs into one lane-dense slab -> single dense store.
        rows = []
        for info in out_infos:
            f = feats[info["layer"]].astype(jnp.float32)
            if info["m"] < slab_w:
                f = jnp.concatenate(
                    [f, jnp.zeros((info["c"], slab_w - info["m"]), jnp.float32)],
                    axis=1)
            rows.append(f)
        o_ref[...] = jnp.concatenate(rows, axis=0)

    return kernel


class FusedBackbone:
    """BuildBackbone.forward (eval mode) as one fused Pallas TPU kernel."""

    def __init__(self, layers, output_layers, in_shape):
        self.in_shape = tuple(int(d) for d in in_shape)   # (N, C, H, W)
        N, cin0, h0, w0 = self.in_shape
        self.output_layers = sorted(output_layers)

        # ---- per-layer output shapes (C, H, W) --------------------------------
        shapes = []
        c, h, w = cin0, h0, w0
        for layer in layers:
            if isinstance(layer, ConvBNAct):
                cout, cin, k, _ = layer.params["w"].shape
                assert cin == c, (cin, c)
                pad, s = k // 2, layer.stride
                c, h, w = cout, (h + 2 * pad - k) // s + 1, (w + 2 * pad - k) // s + 1
            elif isinstance(layer, UpsampleLayer):
                sc, sh, sw = shapes[layer.target_layer]
                c, h, w = sc, sh * layer.scale, sw * layer.scale
            elif isinstance(layer, ConcatLayer):
                c = sum(shapes[t][0] for t in layer.target_layers)
                h, w = shapes[layer.target_layers[0]][1:]
            elif isinstance(layer, GetLayer):
                c, h, w = shapes[layer.target_layer]
            else:
                raise TypeError(f"unsupported layer {type(layer)}")
            shapes.append((c, h, w))
        self.shapes = shapes

        # ---- which layers are read back by index (for the tail-fusion pass) ----
        refs = [[] for _ in layers]
        for i, layer in enumerate(layers):
            if isinstance(layer, ConcatLayer):
                for t in layer.target_layers:
                    refs[t].append(i)
            elif isinstance(layer, (UpsampleLayer, GetLayer)):
                refs[layer.target_layer].append(i)

        tail_of, skipped = {}, set()
        for i in range(len(layers)):
            r = self._fusable_tail(layers, i, refs, self.output_layers)
            if r is not None:
                branches, fused = r
                tail_of[i] = branches
                skipped.update(fused)

        # ---- constants + per-layer plan -----------------------------------------
        consts = []
        w_parts, w_cursor = [], [0]
        b_parts, b_cursor = [], [0]

        def add_const(a):
            consts.append(a)
            return len(consts) - 1

        def add_weight(wmat):                         # (cout, kdim)
            wmat = np.asarray(wmat, np.float32)
            off = w_cursor[0]
            w_parts.append((off, wmat))
            w_cursor[0] = off + _round_up(wmat.shape[1], LANE)   # 128-lane aligned starts
            return off, int(wmat.shape[1])

        def add_bias(bvec):
            bvec = np.asarray(bvec, np.float32)
            off = b_cursor[0]
            b_parts.append((off, bvec))
            b_cursor[0] = off + _round_up(bvec.shape[0], 8)      # sublane aligned starts
            return off

        plan = []
        c, h, w = cin0, h0, w0                        # running input shape of layer i
        for i, layer in enumerate(layers):
            if i in skipped:
                plan.append(dict(kind="skip"))
            elif i in tail_of:                        # fused Upsample+Concat+1x1 Conv
                wld, bias = _fold_bn(layer.params)
                cout, cin_t = int(wld.shape[0]), int(wld.shape[1])
                w2d = np.asarray(wld.reshape(cout, cin_t))
                branches, coff = [], 0
                for br in tail_of[i]:
                    src = br["src"]
                    assert src not in skipped
                    sc_, sh, sw = shapes[src]
                    w_off, w_len = add_weight(w2d[:, coff:coff + sc_])
                    u_idx = None
                    if br["scale"] != 1:
                        u, _, _ = _upsample_gather(sh, sw, br["scale"])
                        u_idx = add_const(
                            jnp.asarray(_batch_blockdiag(u, N), jnp.bfloat16))
                    branches.append(dict(src=src, w_off=w_off, w_len=w_len, u=u_idx))
                    coff += sc_
                assert coff == cin_t, (coff, cin_t)
                plan.append(dict(kind="tail", branches=branches, cout=cout,
                                 b_off=add_bias(bias), act=layer.act))
            elif isinstance(layer, ConvBNAct):
                wld, bias = _fold_bn(layer.params)
                cout, cin_c, k, _ = wld.shape
                s, pad = layer.stride, k // 2
                # W_flat[o, t*Cin + ci] == W_folded[o, ci, kh, kw],  t = kh*k + kw
                wflat = np.asarray(jnp.transpose(wld, (0, 2, 3, 1))
                                   ).reshape(cout, k * k * cin_c)
                w_off, w_len = add_weight(wflat)
                if k == 1 and s == 1:
                    g_idx, taps = None, 1
                else:
                    g, _, _ = _conv_gather_taps(h, w, k, s, pad)
                    g_idx = add_const(
                        jnp.asarray(_batch_blockdiag(g, N), jnp.bfloat16))
                    taps = k * k
                plan.append(dict(kind="conv", g=g_idx, taps=taps, cout=int(cout),
                                 w_off=w_off, w_len=w_len,
                                 b_off=add_bias(bias), act=layer.act))
            elif isinstance(layer, UpsampleLayer):
                src = layer.target_layer
                assert src not in skipped
                sc_, sh, sw = shapes[src]
                u, _, _ = _upsample_gather(sh, sw, layer.scale)
                plan.append(dict(kind="upsample", src=src,
                                 u=add_const(jnp.asarray(_batch_blockdiag(u, N),
                                                         jnp.bfloat16))))
            elif isinstance(layer, ConcatLayer):
                assert all(t not in skipped for t in layer.target_layers)
                plan.append(dict(kind="concat", srcs=tuple(layer.target_layers)))
            else:                                     # GetLayer
                assert layer.target_layer not in skipped
                plan.append(dict(kind="get", src=layer.target_layer))
            c, h, w = shapes[i]

        # ---- packed constant blobs ----------------------------------------------
        w_rows = _round_up(max(wm.shape[0] for _, wm in w_parts), 8)
        wblob = np.zeros((w_rows, w_cursor[0]), np.float32)
        for off, wm in w_parts:
            wblob[:wm.shape[0], off:off + wm.shape[1]] = wm
        bblob = np.zeros((_round_up(b_cursor[0], 8), 1), np.float32)
        for off, bv in b_parts:
            bblob[off:off + bv.shape[0], 0] = bv
        self.w_blob = jnp.asarray(wblob, jnp.bfloat16)
        self.b_blob = jnp.asarray(bblob, jnp.float32)
        self.consts = consts
        self.plan = plan

        # ---- lane-dense output slab geometry --------------------------------------
        max_m = max(N * shapes[t][1] * shapes[t][2] for t in self.output_layers)
        self.slab_w = _round_up(max(max_m, LANE), LANE)
        self.out_infos, row = [], 0
        for t in self.output_layers:
            ct, ht, wt = shapes[t]
            self.out_infos.append(dict(layer=t, row=row, c=ct, h=ht, w=wt,
                                       m=N * ht * wt))
            row += ct
        self.slab_rows = row

        self._kernel = _make_fused_kernel(plan, len(consts), self.out_infos,
                                          self.slab_w, w_rows)

    @staticmethod
    def _fusable_tail(layers, i, refs, output_layers):
        """If layer i is a 1x1/stride-1 conv fed by a ConcatLayer that nothing else
        reads, return (branches, fused_layer_indices); else None."""
        lyr = layers[i]
        if not (isinstance(lyr, ConvBNAct) and lyr.stride == 1
                and lyr.params["w"].shape[2] == 1 and lyr.params["w"].shape[3] == 1
                and i >= 1 and isinstance(layers[i - 1], ConcatLayer)):
            return None
        cat_idx = i - 1
        if refs[cat_idx] or cat_idx in output_layers:
            return None
        branches, fused = [], [cat_idx]
        for t in layers[cat_idx].target_layers:
            lt = layers[t]
            if (isinstance(lt, UpsampleLayer) and refs[t] == [cat_idx]
                    and t not in output_layers and t + 1 == cat_idx):
                branches.append(dict(src=lt.target_layer, scale=lt.scale))
                fused.append(t)
            else:
                branches.append(dict(src=t, scale=1))
        return branches, fused

    def __call__(self, x_nchw):
        N, C, H, W = x_nchw.shape
        assert (N, C, H, W) == self.in_shape, (x_nchw.shape, self.in_shape)
        # Channels on sublanes, batch folded into the flattened-spatial lanes.
        # Boundary transpose/reshape + bf16 cast are cheap host-side XLA ops.
        x2d = jnp.transpose(x_nchw, (1, 0, 2, 3)).reshape(C, N * H * W)
        x2d = x2d.astype(jnp.bfloat16)

        inputs = [x2d] + list(self.consts) + [self.w_blob, self.b_blob]
        slab = pl.pallas_call(
            self._kernel,
            out_shape=jax.ShapeDtypeStruct((self.slab_rows, self.slab_w), jnp.float32),
            grid=(1,),                                   # whole batch in one program
            in_specs=[_full_spec(a) for a in inputs],
            out_specs=pl.BlockSpec((self.slab_rows, self.slab_w), lambda i: (0, 0)),
            compiler_params=pltpu.CompilerParams(
                dimension_semantics=("arbitrary",)),
        )(*inputs)

        outs = []
        for info in self.out_infos:
            f = slab[info["row"]:info["row"] + info["c"], :info["m"]]
            outs.append(f.reshape(info["c"], N, info["h"], info["w"])
                         .transpose(1, 0, 2, 3))
        return outs


# ---------------------------------------------------------------------------
# Pure-JAX reference (f32) for the correctness check
# ---------------------------------------------------------------------------
def _ref_conv(x_nhwc, p, stride, act=True, eps=EPS):
    w = jnp.transpose(p["w"], (2, 3, 1, 0))  # OIHW -> HWIO
    k = w.shape[0]
    pad = k // 2
    y = jax.lax.conv_general_dilated(
        x_nhwc, w, (stride, stride), [(pad, pad), (pad, pad)],
        dimension_numbers=("NHWC", "HWIO", "NHWC"))
    scale = p["gamma"] / jnp.sqrt(p["var"] + eps)
    y = y * scale + (p["beta"] - p["mean"] * scale)
    return y * jax.nn.sigmoid(y) if act else y


def backbone_forward_ref(x_nchw, layers, output_layers):
    x = jnp.transpose(x_nchw, (0, 2, 3, 1))
    output = []
    for layer in layers:
        if isinstance(layer, ConcatLayer):
            x = jnp.concatenate([output[t] for t in layer.target_layers], axis=-1)
        elif isinstance(layer, UpsampleLayer):
            tmp = output[layer.target_layer]
            x = jnp.repeat(jnp.repeat(tmp, layer.scale, axis=1), layer.scale, axis=2)
        elif isinstance(layer, GetLayer):
            x = output[layer.target_layer]
        else:
            x = _ref_conv(x, layer.params, layer.stride, layer.act)
        output.append(x)
    return [jnp.transpose(output[t], (0, 3, 1, 2)) for t in sorted(output_layers)]


if __name__ == "__main__":
    key = jax.random.PRNGKey(0)
    kx, kp = jax.random.split(key)

    # expected_input_shape from the synthetic "yaml": (N=2, C=4, H=16, W=16), NCHW.
    x = jax.random.normal(kx, (2, 4, 16, 16), jnp.float32)
    layers, output_layers = build_backbone_layers(kp)

    model = FusedBackbone(layers, output_layers, in_shape=(2, 4, 16, 16))
    outs = model(x)
    outs = [jax.block_until_ready(o) for o in outs]

    refs = backbone_forward_ref(x, layers, output_layers)
    for o, r in zip(outs, refs):
        assert o.shape == r.shape, (o.shape, r.shape)
        # Tolerance sized for bf16 MXU operands with f32 accumulation vs f32 ref.
        np.testing.assert_allclose(np.asarray(o), np.asarray(r),
                                   rtol=3e-2, atol=3e-2)

    print("KERNEL_OK")
</pallas_src>

<mosaic_0001>
module attributes {stable_mosaic.version = 11 : i64} {
  func.func @kernel(%arg0: i32, %arg1: memref<4x512xbf16, #tpu.memory_space<vmem>>, %arg2: memref<9x512x128xbf16, #tpu.memory_space<vmem>>, %arg3: memref<9x128x32xbf16, #tpu.memory_space<vmem>>, %arg4: memref<9x32x32xbf16, #tpu.memory_space<vmem>>, %arg5: memref<32x128xbf16, #tpu.memory_space<vmem>>, %arg6: memref<16x768xbf16, #tpu.memory_space<vmem>>, %arg7: memref<48x1xf32, #tpu.memory_space<vmem>>, %arg8: memref<24x128xf32, #tpu.memory_space<vmem>>) attributes {dimension_semantics = [#tpu.dimension_semantics<arbitrary>], iteration_bounds = array<i64: 1>, scalar_prefetch = 0 : i64, scratch_operands = 0 : i64, tpu.core_type = #tpu.core_type<tc>, window_params = [{pipeline_mode = #tpu.pipeline_mode<synchronous>, transform_indices = @transform_0, window_bounds = array<i64: 4, 512>}, {pipeline_mode = #tpu.pipeline_mode<synchronous>, transform_indices = @transform_1, window_bounds = array<i64: 9, 512, 128>}, {pipeline_mode = #tpu.pipeline_mode<synchronous>, transform_indices = @transform_2, window_bounds = array<i64: 9, 128, 32>}, {pipeline_mode = #tpu.pipeline_mode<synchronous>, transform_indices = @transform_3, window_bounds = array<i64: 9, 32, 32>}, {pipeline_mode = #tpu.pipeline_mode<synchronous>, transform_indices = @transform_4, window_bounds = array<i64: 32, 128>}, {pipeline_mode = #tpu.pipeline_mode<synchronous>, transform_indices = @transform_5, window_bounds = array<i64: 16, 768>}, {pipeline_mode = #tpu.pipeline_mode<synchronous>, transform_indices = @transform_6, window_bounds = array<i64: 48, 1>}, {pipeline_mode = #tpu.pipeline_mode<synchronous>, transform_indices = @transform_7, window_bounds = array<i64: 24, 128>}]} {
    %c0 = arith.constant 0 : index
    %c0_0 = arith.constant 0 : index
    %0 = vector.load %arg1[%c0, %c0_0] : memref<4x512xbf16, #tpu.memory_space<vmem>>, vector<4x512xbf16>
    %c0_1 = arith.constant 0 : index
    %c0_2 = arith.constant 0 : index
    %c0_3 = arith.constant 0 : index
    %1 = vector.load %arg2[%c0_1, %c0_2, %c0_3] : memref<9x512x128xbf16, #tpu.memory_space<vmem>>, vector<1x512x128xbf16>
    %2 = vector.shape_cast %1 : vector<1x512x128xbf16> to vector<512x128xbf16>
    %cst = arith.constant dense<0.000000e+00> : vector<4x128xf32>
    %3 = tpu.matmul %0, %2, %cst {dimension_numbers = #tpu.dot_dimension_numbers<[1], [0], [0], [1], [0, 0, 1, 1], [], []>} : vector<4x512xbf16>, vector<512x128xbf16>, vector<4x128xf32> -> vector<4x128xf32>
    %c1 = arith.constant 1 : index
    %c0_4 = arith.constant 0 : index
    %c0_5 = arith.constant 0 : index
    %4 = vector.load %arg2[%c1, %c0_4, %c0_5] : memref<9x512x128xbf16, #tpu.memory_space<vmem>>, vector<1x512x128xbf16>
    %5 = vector.shape_cast %4 : vector<1x512x128xbf16> to vector<512x128xbf16>
    %cst_6 = arith.constant dense<0.000000e+00> : vector<4x128xf32>
    %6 = tpu.matmul %0, %5, %cst_6 {dimension_numbers = #tpu.dot_dimension_numbers<[1], [0], [0], [1], [0, 0, 1, 1], [], []>} : vector<4x512xbf16>, vector<512x128xbf16>, vector<4x128xf32> -> vector<4x128xf32>
    %c2 = arith.constant 2 : index
    %c0_7 = arith.constant 0 : index
    %c0_8 = arith.constant 0 : index
    %7 = vector.load %arg2[%c2, %c0_7, %c0_8] : memref<9x512x128xbf16, #tpu.memory_space<vmem>>, vector<1x512x128xbf16>
    %8 = vector.shape_cast %7 : vector<1x512x128xbf16> to vector<512x128xbf16>
    %cst_9 = arith.constant dense<0.000000e+00> : vector<4x128xf32>
    %9 = tpu.matmul %0, %8, %cst_9 {dimension_numbers = #tpu.dot_dimension_numbers<[1], [0], [0], [1], [0, 0, 1, 1], [], []>} : vector<4x512xbf16>, vector<512x128xbf16>, vector<4x128xf32> -> vector<4x128xf32>
    %c3 = arith.constant 3 : index
    %c0_10 = arith.constant 0 : index
    %c0_11 = arith.constant 0 : index
    %10 = vector.load %arg2[%c3, %c0_10, %c0_11] : memref<9x512x128xbf16, #tpu.memory_space<vmem>>, vector<1x512x128xbf16>
    %11 = vector.shape_cast %10 : vector<1x512x128xbf16> to vector<512x128xbf16>
    %cst_12 = arith.constant dense<0.000000e+00> : vector<4x128xf32>
    %12 = tpu.matmul %0, %11, %cst_12 {dimension_numbers = #tpu.dot_dimension_numbers<[1], [0], [0], [1], [0, 0, 1, 1], [], []>} : vector<4x512xbf16>, vector<512x128xbf16>, vector<4x128xf32> -> vector<4x128xf32>
    %c4 = arith.constant 4 : index
    %c0_13 = arith.constant 0 : index
    %c0_14 = arith.constant 0 : index
    %13 = vector.load %arg2[%c4, %c0_13, %c0_14] : memref<9x512x128xbf16, #tpu.memory_space<vmem>>, vector<1x512x128xbf16>
    %14 = vector.shape_cast %13 : vector<1x512x128xbf16> to vector<512x128xbf16>
    %cst_15 = arith.constant dense<0.000000e+00> : vector<4x128xf32>
    %15 = tpu.matmul %0, %14, %cst_15 {dimension_numbers = #tpu.dot_dimension_numbers<[1], [0], [0], [1], [0, 0, 1, 1], [], []>} : vector<4x512xbf16>, vector<512x128xbf16>, vector<4x128xf32> -> vector<4x128xf32>
    %c5 = arith.constant 5 : index
    %c0_16 = arith.constant 0 : index
    %c0_17 = arith.constant 0 : index
    %16 = vector.load %arg2[%c5, %c0_16, %c0_17] : memref<9x512x128xbf16, #tpu.memory_space<vmem>>, vector<1x512x128xbf16>
    %17 = vector.shape_cast %16 : vector<1x512x128xbf16> to vector<512x128xbf16>
    %cst_18 = arith.constant dense<0.000000e+00> : vector<4x128xf32>
    %18 = tpu.matmul %0, %17, %cst_18 {dimension_numbers = #tpu.dot_dimension_numbers<[1], [0], [0], [1], [0, 0, 1, 1], [], []>} : vector<4x512xbf16>, vector<512x128xbf16>, vector<4x128xf32> -> vector<4x128xf32>
    %c6 = arith.constant 6 : index
    %c0_19 = arith.constant 0 : index
    %c0_20 = arith.constant 0 : index
    %19 = vector.load %arg2[%c6, %c0_19, %c0_20] : memref<9x512x128xbf16, #tpu.memory_space<vmem>>, vector<1x512x128xbf16>
    %20 = vector.shape_cast %19 : vector<1x512x128xbf16> to vector<512x128xbf16>
    %cst_21 = arith.constant dense<0.000000e+00> : vector<4x128xf32>
    %21 = tpu.matmul %0, %20, %cst_21 {dimension_numbers = #tpu.dot_dimension_numbers<[1], [0], [0], [1], [0, 0, 1, 1], [], []>} : vector<4x512xbf16>, vector<512x128xbf16>, vector<4x128xf32> -> vector<4x128xf32>
    %c7 = arith.constant 7 : index
    %c0_22 = arith.constant 0 : index
    %c0_23 = arith.constant 0 : index
    %22 = vector.load %arg2[%c7, %c0_22, %c0_23] : memref<9x512x128xbf16, #tpu.memory_space<vmem>>, vector<1x512x128xbf16>
    %23 = vector.shape_cast %22 : vector<1x512x128xbf16> to vector<512x128xbf16>
    %cst_24 = arith.constant dense<0.000000e+00> : vector<4x128xf32>
    %24 = tpu.matmul %0, %23, %cst_24 {dimension_numbers = #tpu.dot_dimension_numbers<[1], [0], [0], [1], [0, 0, 1, 1], [], []>} : vector<4x512xbf16>, vector<512x128xbf16>, vector<4x128xf32> -> vector<4x128xf32>
    %c8 = arith.constant 8 : index
    %c0_25 = arith.constant 0 : index
    %c0_26 = arith.constant 0 : index
    %25 = vector.load %arg2[%c8, %c0_25, %c0_26] : memref<9x512x128xbf16, #tpu.memory_space<vmem>>, vector<1x512x128xbf16>
    %26 = vector.shape_cast %25 : vector<1x512x128xbf16> to vector<512x128xbf16>
    %cst_27 = arith.constant dense<0.000000e+00> : vector<4x128xf32>
    %27 = tpu.matmul %0, %26, %cst_27 {dimension_numbers = #tpu.dot_dimension_numbers<[1], [0], [0], [1], [0, 0, 1, 1], [], []>} : vector<4x512xbf16>, vector<512x128xbf16>, vector<4x128xf32> -> vector<4x128xf32>
    %28 = tpu.concatenate %3, %6, %9, %12, %15, %18, %21, %24, %27 in 0 : vector<4x128xf32>, vector<4x128xf32>, vector<4x128xf32>, vector<4x128xf32>, vector<4x128xf32>, vector<4x128xf32>, vector<4x128xf32>, vector<4x128xf32>, vector<4x128xf32> -> vector<36x128xf32>
    %29 = arith.truncf %28 : vector<36x128xf32> to vector<36x128xbf16>
    %c0_28 = arith.constant 0 : index
    %c0_29 = arith.constant 0 : index
    %30 = vector.load %arg6[%c0_28, %c0_29] : memref<16x768xbf16, #tpu.memory_space<vmem>>, vector<16x36xbf16>
    %cst_30 = arith.constant dense<0.000000e+00> : vector<16x128xf32>
    %31 = tpu.matmul %30, %29, %cst_30 {dimension_numbers = #tpu.dot_dimension_numbers<[1], [0], [0], [1], [0, 0, 1, 1], [], []>} : vector<16x36xbf16>, vector<36x128xbf16>, vector<16x128xf32> -> vector<16x128xf32>
    %32 = vector.extract_strided_slice %31 {offsets = [0, 0], sizes = [8, 128], strides = [1, 1]} : vector<16x128xf32> to vector<8x128xf32>
    %c0_31 = arith.constant 0 : index
    %c0_32 = arith.constant 0 : index
    %33 = vector.load %arg7[%c0_31, %c0_32] : memref<48x1xf32, #tpu.memory_space<vmem>>, vector<8x1xf32>
    %34 = vector.broadcast %33 : vector<8x1xf32> to vector<8x128xf32>
    %35 = arith.addf %32, %34 : vector<8x128xf32>
    %36 = arith.negf %35 : vector<8x128xf32>
    %37 = math.exp %36 : vector<8x128xf32>
    %cst_33 = arith.constant 1.000000e+00 : f32
    %38 = vector.broadcast %cst_33 : f32 to vector<8x128xf32>
    %39 = arith.addf %38, %37 : vector<8x128xf32>
    %40 = arith.divf %38, %39 : vector<8x128xf32>
    %41 = arith.mulf %35, %40 : vector<8x128xf32>
    %42 = arith.truncf %41 : vector<8x128xf32> to vector<8x128xbf16>
    %c0_34 = arith.constant 0 : index
    %c0_35 = arith.constant 0 : index
    %c0_36 = arith.constant 0 : index
    %43 = vector.load %arg3[%c0_34, %c0_35, %c0_36] : memref<9x128x32xbf16, #tpu.memory_space<vmem>>, vector<1x128x32xbf16>
    %44 = vector.shape_cast %43 : vector<1x128x32xbf16> to vector<128x32xbf16>
    %cst_37 = arith.constant dense<0.000000e+00> : vector<8x32xf32>
    %45 = tpu.matmul %42, %44, %cst_37 {dimension_numbers = #tpu.dot_dimension_numbers<[1], [0], [0], [1], [0, 0, 1, 1], [], []>} : vector<8x128xbf16>, vector<128x32xbf16>, vector<8x32xf32> -> vector<8x32xf32>
    %c1_38 = arith.constant 1 : index
    %c0_39 = arith.constant 0 : index
    %c0_40 = arith.constant 0 : index
    %46 = vector.load %arg3[%c1_38, %c0_39, %c0_40] : memref<9x128x32xbf16, #tpu.memory_space<vmem>>, vector<1x128x32xbf16>
    %47 = vector.shape_cast %46 : vector<1x128x32xbf16> to vector<128x32xbf16>
    %cst_41 = arith.constant dense<0.000000e+00> : vector<8x32xf32>
    %48 = tpu.matmul %42, %47, %cst_41 {dimension_numbers = #tpu.dot_dimension_numbers<[1], [0], [0], [1], [0, 0, 1, 1], [], []>} : vector<8x128xbf16>, vector<128x32xbf16>, vector<8x32xf32> -> vector<8x32xf32>
    %c2_42 = arith.constant 2 : index
    %c0_43 = arith.constant 0 : index
    %c0_44 = arith.constant 0 : index
    %49 = vector.load %arg3[%c2_42, %c0_43, %c0_44] : memref<9x128x32xbf16, #tpu.memory_space<vmem>>, vector<1x128x32xbf16>
    %50 = vector.shape_cast %49 : vector<1x128x32xbf16> to vector<128x32xbf16>
    %cst_45 = arith.constant dense<0.000000e+00> : vector<8x32xf32>
    %51 = tpu.matmul %42, %50, %cst_45 {dimension_numbers = #tpu.dot_dimension_numbers<[1], [0], [0], [1], [0, 0, 1, 1], [], []>} : vector<8x128xbf16>, vector<128x32xbf16>, vector<8x32xf32> -> vector<8x32xf32>
    %c3_46 = arith.constant 3 : index
    %c0_47 = arith.constant 0 : index
    %c0_48 = arith.constant 0 : index
    %52 = vector.load %arg3[%c3_46, %c0_47, %c0_48] : memref<9x128x32xbf16, #tpu.memory_space<vmem>>, vector<1x128x32xbf16>
    %53 = vector.shape_cast %52 : vector<1x128x32xbf16> to vector<128x32xbf16>
    %cst_49 = arith.constant dense<0.000000e+00> : vector<8x32xf32>
    %54 = tpu.matmul %42, %53, %cst_49 {dimension_numbers = #tpu.dot_dimension_numbers<[1], [0], [0], [1], [0, 0, 1, 1], [], []>} : vector<8x128xbf16>, vector<128x32xbf16>, vector<8x32xf32> -> vector<8x32xf32>
    %c4_50 = arith.constant 4 : index
    %c0_51 = arith.constant 0 : index
    %c0_52 = arith.constant 0 : index
    %55 = vector.load %arg3[%c4_50, %c0_51, %c0_52] : memref<9x128x32xbf16, #tpu.memory_space<vmem>>, vector<1x128x32xbf16>
    %56 = vector.shape_cast %55 : vector<1x128x32xbf16> to vector<128x32xbf16>
    %cst_53 = arith.constant dense<0.000000e+00> : vector<8x32xf32>
    %57 = tpu.matmul %42, %56, %cst_53 {dimension_numbers = #tpu.dot_dimension_numbers<[1], [0], [0], [1], [0, 0, 1, 1], [], []>} : vector<8x128xbf16>, vector<128x32xbf16>, vector<8x32xf32> -> vector<8x32xf32>
    %c5_54 = arith.constant 5 : index
    %c0_55 = arith.constant 0 : index
    %c0_56 = arith.constant 0 : index
    %58 = vector.load %arg3[%c5_54, %c0_55, %c0_56] : memref<9x128x32xbf16, #tpu.memory_space<vmem>>, vector<1x128x32xbf16>
    %59 = vector.shape_cast %58 : vector<1x128x32xbf16> to vector<128x32xbf16>
    %cst_57 = arith.constant dense<0.000000e+00> : vector<8x32xf32>
    %60 = tpu.matmul %42, %59, %cst_57 {dimension_numbers = #tpu.dot_dimension_numbers<[1], [0], [0], [1], [0, 0, 1, 1], [], []>} : vector<8x128xbf16>, vector<128x32xbf16>, vector<8x32xf32> -> vector<8x32xf32>
    %c6_58 = arith.constant 6 : index
    %c0_59 = arith.constant 0 : index
    %c0_60 = arith.constant 0 : index
    %61 = vector.load %arg3[%c6_58, %c0_59, %c0_60] : memref<9x128x32xbf16, #tpu.memory_space<vmem>>, vector<1x128x32xbf16>
    %62 = vector.shape_cast %61 : vector<1x128x32xbf16> to vector<128x32xbf16>
    %cst_61 = arith.constant dense<0.000000e+00> : vector<8x32xf32>
    %63 = tpu.matmul %42, %62, %cst_61 {dimension_numbers = #tpu.dot_dimension_numbers<[1], [0], [0], [1], [0, 0, 1, 1], [], []>} : vector<8x128xbf16>, vector<128x32xbf16>, vector<8x32xf32> -> vector<8x32xf32>
    %c7_62 = arith.constant 7 : index
    %c0_63 = arith.constant 0 : index
    %c0_64 = arith.constant 0 : index
    %64 = vector.load %arg3[%c7_62, %c0_63, %c0_64] : memref<9x128x32xbf16, #tpu.memory_space<vmem>>, vector<1x128x32xbf16>
    %65 = vector.shape_cast %64 : vector<1x128x32xbf16> to vector<128x32xbf16>
    %cst_65 = arith.constant dense<0.000000e+00> : vector<8x32xf32>
    %66 = tpu.matmul %42, %65, %cst_65 {dimension_numbers = #tpu.dot_dimension_numbers<[1], [0], [0], [1], [0, 0, 1, 1], [], []>} : vector<8x128xbf16>, vector<128x32xbf16>, vector<8x32xf32> -> vector<8x32xf32>
    %c8_66 = arith.constant 8 : index
    %c0_67 = arith.constant 0 : index
    %c0_68 = arith.constant 0 : index
    %67 = vector.load %arg3[%c8_66, %c0_67, %c0_68] : memref<9x128x32xbf16, #tpu.memory_space<vmem>>, vector<1x128x32xbf16>
    %68 = vector.shape_cast %67 : vector<1x128x32xbf16> to vector<128x32xbf16>
    %cst_69 = arith.constant dense<0.000000e+00> : vector<8x32xf32>
    %69 = tpu.matmul %42, %68, %cst_69 {dimension_numbers = #tpu.dot_dimension_numbers<[1], [0], [0], [1], [0, 0, 1, 1], [], []>} : vector<8x128xbf16>, vector<128x32xbf16>, vector<8x32xf32> -> vector<8x32xf32>
    %70 = tpu.concatenate %45, %48, %51, %54, %57, %60, %63, %66, %69 in 0 : vector<8x32xf32>, vector<8x32xf32>, vector<8x32xf32>, vector<8x32xf32>, vector<8x32xf32>, vector<8x32xf32>, vector<8x32xf32>, vector<8x32xf32>, vector<8x32xf32> -> vector<72x32xf32>
    %71 = arith.truncf %70 : vector<72x32xf32> to vector<72x32xbf16>
    %c0_70 = arith.constant 0 : index
    %c128 = arith.constant 128 : index
    %72 = vector.load %arg6[%c0_70, %c128] : memref<16x768xbf16, #tpu.memory_space<vmem>>, vector<16x72xbf16>
    %cst_71 = arith.constant dense<0.000000e+00> : vector<16x32xf32>
    %73 = tpu.matmul %72, %71, %cst_71 {dimension_numbers = #tpu.dot_dimension_numbers<[1], [0], [0], [1], [0, 0, 1, 1], [], []>} : vector<16x72xbf16>, vector<72x32xbf16>, vector<16x32xf32> -> vector<16x32xf32>
    %c8_72 = arith.constant 8 : index
    %c0_73 = arith.constant 0 : index
    %74 = vector.load %arg7[%c8_72, %c0_73] : memref<48x1xf32, #tpu.memory_space<vmem>>, vector<16x1xf32>
    %75 = vector.broadcast %74 : vector<16x1xf32> to vector<16x32xf32>
    %76 = arith.addf %73, %75 : vector<16x32xf32>
    %77 = arith.negf %76 : vector<16x32xf32>
    %78 = math.exp %77 : vector<16x32xf32>
    %cst_74 = arith.constant 1.000000e+00 : f32
    %79 = vector.broadcast %cst_74 : f32 to vector<16x32xf32>
    %80 = arith.addf %79, %78 : vector<16x32xf32>
    %81 = arith.divf %79, %80 : vector<16x32xf32>
    %82 = arith.mulf %76, %81 : vector<16x32xf32>
    %83 = arith.truncf %82 : vector<16x32xf32> to vector<16x32xbf16>
    %c0_75 = arith.constant 0 : index
    %c0_76 = arith.constant 0 : index
    %c0_77 = arith.constant 0 : index
    %84 = vector.load %arg4[%c0_75, %c0_76, %c0_77] : memref<9x32x32xbf16, #tpu.memory_space<vmem>>, vector<1x32x32xbf16>
    %85 = vector.shape_cast %84 : vector<1x32x32xbf16> to vector<32x32xbf16>
    %cst_78 = arith.constant dense<0.000000e+00> : vector<16x32xf32>
    %86 = tpu.matmul %83, %85, %cst_78 {dimension_numbers = #tpu.dot_dimension_numbers<[1], [0], [0], [1], [0, 0, 1, 1], [], []>} : vector<16x32xbf16>, vector<32x32xbf16>, vector<16x32xf32> -> vector<16x32xf32>
    %c1_79 = arith.constant 1 : index
    %c0_80 = arith.constant 0 : index
    %c0_81 = arith.constant 0 : index
    %87 = vector.load %arg4[%c1_79, %c0_80, %c0_81] : memref<9x32x32xbf16, #tpu.memory_space<vmem>>, vector<1x32x32xbf16>
    %88 = vector.shape_cast %87 : vector<1x32x32xbf16> to vector<32x32xbf16>
    %cst_82 = arith.constant dense<0.000000e+00> : vector<16x32xf32>
    %89 = tpu.matmul %83, %88, %cst_82 {dimension_numbers = #tpu.dot_dimension_numbers<[1], [0], [0], [1], [0, 0, 1, 1], [], []>} : vector<16x32xbf16>, vector<32x32xbf16>, vector<16x32xf32> -> vector<16x32xf32>
    %c2_83 = arith.constant 2 : index
    %c0_84 = arith.constant 0 : index
    %c0_85 = arith.constant 0 : index
    %90 = vector.load %arg4[%c2_83, %c0_84, %c0_85] : memref<9x32x32xbf16, #tpu.memory_space<vmem>>, vector<1x32x32xbf16>
    %91 = vector.shape_cast %90 : vector<1x32x32xbf16> to vector<32x32xbf16>
    %cst_86 = arith.constant dense<0.000000e+00> : vector<16x32xf32>
    %92 = tpu.matmul %83, %91, %cst_86 {dimension_numbers = #tpu.dot_dimension_numbers<[1], [0], [0], [1], [0, 0, 1, 1], [], []>} : vector<16x32xbf16>, vector<32x32xbf16>, vector<16x32xf32> -> vector<16x32xf32>
    %c3_87 = arith.constant 3 : index
    %c0_88 = arith.constant 0 : index
    %c0_89 = arith.constant 0 : index
    %93 = vector.load %arg4[%c3_87, %c0_88, %c0_89] : memref<9x32x32xbf16, #tpu.memory_space<vmem>>, vector<1x32x32xbf16>
    %94 = vector.shape_cast %93 : vector<1x32x32xbf16> to vector<32x32xbf16>
    %cst_90 = arith.constant dense<0.000000e+00> : vector<16x32xf32>
    %95 = tpu.matmul %83, %94, %cst_90 {dimension_numbers = #tpu.dot_dimension_numbers<[1], [0], [0], [1], [0, 0, 1, 1], [], []>} : vector<16x32xbf16>, vector<32x32xbf16>, vector<16x32xf32> -> vector<16x32xf32>
    %c4_91 = arith.constant 4 : index
    %c0_92 = arith.constant 0 : index
    %c0_93 = arith.constant 0 : index
    %96 = vector.load %arg4[%c4_91, %c0_92, %c0_93] : memref<9x32x32xbf16, #tpu.memory_space<vmem>>, vector<1x32x32xbf16>
    %97 = vector.shape_cast %96 : vector<1x32x32xbf16> to vector<32x32xbf16>
    %cst_94 = arith.constant dense<0.000000e+00> : vector<16x32xf32>
    %98 = tpu.matmul %83, %97, %cst_94 {dimension_numbers = #tpu.dot_dimension_numbers<[1], [0], [0], [1], [0, 0, 1, 1], [], []>} : vector<16x32xbf16>, vector<32x32xbf16>, vector<16x32xf32> -> vector<16x32xf32>
    %c5_95 = arith.constant 5 : index
    %c0_96 = arith.constant 0 : index
    %c0_97 = arith.constant 0 : index
    %99 = vector.load %arg4[%c5_95, %c0_96, %c0_97] : memref<9x32x32xbf16, #tpu.memory_space<vmem>>, vector<1x32x32xbf16>
    %100 = vector.shape_cast %99 : vector<1x32x32xbf16> to vector<32x32xbf16>
    %cst_98 = arith.constant dense<0.000000e+00> : vector<16x32xf32>
    %101 = tpu.matmul %83, %100, %cst_98 {dimension_numbers = #tpu.dot_dimension_numbers<[1], [0], [0], [1], [0, 0, 1, 1], [], []>} : vector<16x32xbf16>, vector<32x32xbf16>, vector<16x32xf32> -> vector<16x32xf32>
    %c6_99 = arith.constant 6 : index
    %c0_100 = arith.constant 0 : index
    %c0_101 = arith.constant 0 : index
    %102 = vector.load %arg4[%c6_99, %c0_100, %c0_101] : memref<9x32x32xbf16, #tpu.memory_space<vmem>>, vector<1x32x32xbf16>
    %103 = vector.shape_cast %102 : vector<1x32x32xbf16> to vector<32x32xbf16>
    %cst_102 = arith.constant dense<0.000000e+00> : vector<16x32xf32>
    %104 = tpu.matmul %83, %103, %cst_102 {dimension_numbers = #tpu.dot_dimension_numbers<[1], [0], [0], [1], [0, 0, 1, 1], [], []>} : vector<16x32xbf16>, vector<32x32xbf16>, vector<16x32xf32> -> vector<16x32xf32>
    %c7_103 = arith.constant 7 : index
    %c0_104 = arith.constant 0 : index
    %c0_105 = arith.constant 0 : index
    %105 = vector.load %arg4[%c7_103, %c0_104, %c0_105] : memref<9x32x32xbf16, #tpu.memory_space<vmem>>, vector<1x32x32xbf16>
    %106 = vector.shape_cast %105 : vector<1x32x32xbf16> to vector<32x32xbf16>
    %cst_106 = arith.constant dense<0.000000e+00> : vector<16x32xf32>
    %107 = tpu.matmul %83, %106, %cst_106 {dimension_numbers = #tpu.dot_dimension_numbers<[1], [0], [0], [1], [0, 0, 1, 1], [], []>} : vector<16x32xbf16>, vector<32x32xbf16>, vector<16x32xf32> -> vector<16x32xf32>
    %c8_107 = arith.constant 8 : index
    %c0_108 = arith.constant 0 : index
    %c0_109 = arith.constant 0 : index
    %108 = vector.load %arg4[%c8_107, %c0_108, %c0_109] : memref<9x32x32xbf16, #tpu.memory_space<vmem>>, vector<1x32x32xbf16>
    %109 = vector.shape_cast %108 : vector<1x32x32xbf16> to vector<32x32xbf16>
    %cst_110 = arith.constant dense<0.000000e+00> : vector<16x32xf32>
    %110 = tpu.matmul %83, %109, %cst_110 {dimension_numbers = #tpu.dot_dimension_numbers<[1], [0], [0], [1], [0, 0, 1, 1], [], []>} : vector<16x32xbf16>, vector<32x32xbf16>, vector<16x32xf32> -> vector<16x32xf32>
    %111 = tpu.concatenate %86, %89, %92, %95, %98, %101, %104, %107, %110 in 0 : vector<16x32xf32>, vector<16x32xf32>, vector<16x32xf32>, vector<16x32xf32>, vector<16x32xf32>, vector<16x32xf32>, vector<16x32xf32>, vector<16x32xf32>, vector<16x32xf32> -> vector<144x32xf32>
    %112 = arith.truncf %111 : vector<144x32xf32> to vector<144x32xbf16>
    %c0_111 = arith.constant 0 : index
    %c256 = arith.constant 256 : index
    %113 = vector.load %arg6[%c0_111, %c256] : memref<16x768xbf16, #tpu.memory_space<vmem>>, vector<16x144xbf16>
    %cst_112 = arith.constant dense<0.000000e+00> : vector<16x32xf32>
    %114 = tpu.matmul %113, %112, %cst_112 {dimension_numbers = #tpu.dot_dimension_numbers<[1], [0], [0], [1], [0, 0, 1, 1], [], []>} : vector<16x144xbf16>, vector<144x32xbf16>, vector<16x32xf32> -> vector<16x32xf32>
    %c24 = arith.constant 24 : index
    %c0_113 = arith.constant 0 : index
    %115 = vector.load %arg7[%c24, %c0_113] : memref<48x1xf32, #tpu.memory_space<vmem>>, vector<16x1xf32>
    %116 = vector.broadcast %115 : vector<16x1xf32> to vector<16x32xf32>
    %117 = arith.addf %114, %116 : vector<16x32xf32>
    %118 = arith.negf %117 : vector<16x32xf32>
    %119 = math.exp %118 : vector<16x32xf32>
    %cst_114 = arith.constant 1.000000e+00 : f32
    %120 = vector.broadcast %cst_114 : f32 to vector<16x32xf32>
    %121 = arith.addf %120, %119 : vector<16x32xf32>
    %122 = arith.divf %120, %121 : vector<16x32xf32>
    %123 = arith.mulf %117, %122 : vector<16x32xf32>
    %124 = arith.truncf %123 : vector<16x32xf32> to vector<16x32xbf16>
    %c0_115 = arith.constant 0 : index
    %c512 = arith.constant 512 : index
    %125 = vector.load %arg6[%c0_115, %c512] : memref<16x768xbf16, #tpu.memory_space<vmem>>, vector<16x16xbf16>
    %cst_116 = arith.constant dense<0.000000e+00> : vector<16x32xf32>
    %126 = tpu.matmul %125, %124, %cst_116 {dimension_numbers = #tpu.dot_dimension_numbers<[1], [0], [0], [1], [0, 0, 1, 1], [], []>} : vector<16x16xbf16>, vector<16x32xbf16>, vector<16x32xf32> -> vector<16x32xf32>
    %127 = arith.truncf %126 : vector<16x32xf32> to vector<16x32xbf16>
    %c0_117 = arith.constant 0 : index
    %c0_118 = arith.constant 0 : index
    %128 = vector.load %arg5[%c0_117, %c0_118] : memref<32x128xbf16, #tpu.memory_space<vmem>>, vector<32x128xbf16>
    %cst_119 = arith.constant dense<0.000000e+00> : vector<16x128xf32>
    %129 = tpu.matmul %127, %128, %cst_119 {dimension_numbers = #tpu.dot_dimension_numbers<[1], [0], [0], [1], [0, 0, 1, 1], [], []>} : vector<16x32xbf16>, vector<32x128xbf16>, vector<16x128xf32> -> vector<16x128xf32>
    %130 = arith.truncf %41 : vector<8x128xf32> to vector<8x128xbf16>
    %c0_120 = arith.constant 0 : index
    %c640 = arith.constant 640 : index
    %131 = vector.load %arg6[%c0_120, %c640] : memref<16x768xbf16, #tpu.memory_space<vmem>>, vector<16x8xbf16>
    %cst_121 = arith.constant dense<0.000000e+00> : vector<16x128xf32>
    %132 = tpu.matmul %131, %130, %cst_121 {dimension_numbers = #tpu.dot_dimension_numbers<[1], [0], [0], [1], [0, 0, 1, 1], [], []>} : vector<16x8xbf16>, vector<8x128xbf16>, vector<16x128xf32> -> vector<16x128xf32>
    %133 = arith.addf %129, %132 : vector<16x128xf32>
    %134 = vector.extract_strided_slice %133 {offsets = [0, 0], sizes = [8, 128], strides = [1, 1]} : vector<16x128xf32> to vector<8x128xf32>
    %c40 = arith.constant 40 : index
    %c0_122 = arith.constant 0 : index
    %135 = vector.load %arg7[%c40, %c0_122] : memref<48x1xf32, #tpu.memory_space<vmem>>, vector<8x1xf32>
    %136 = vector.broadcast %135 : vector<8x1xf32> to vector<8x128xf32>
    %137 = arith.addf %134, %136 : vector<8x128xf32>
    %138 = arith.negf %137 : vector<8x128xf32>
    %139 = math.exp %138 : vector<8x128xf32>
    %cst_123 = arith.constant 1.000000e+00 : f32
    %140 = vector.broadcast %cst_123 : f32 to vector<8x128xf32>
    %141 = arith.addf %140, %139 : vector<8x128xf32>
    %142 = arith.divf %140, %141 : vector<8x128xf32>
    %143 = arith.mulf %137, %142 : vector<8x128xf32>
    %cst_124 = arith.constant 0.000000e+00 : f32
    %144 = vector.broadcast %cst_124 : f32 to vector<16x96xf32>
    %145 = tpu.concatenate %123, %144 in 1 : vector<16x32xf32>, vector<16x96xf32> -> vector<16x128xf32>
    %146 = tpu.concatenate %145, %143 in 0 : vector<16x128xf32>, vector<8x128xf32> -> vector<24x128xf32>
    %c0_125 = arith.constant 0 : index
    %c0_126 = arith.constant 0 : index
    %147 = vector.load %arg8[%c0_125, %c0_126] : memref<24x128xf32, #tpu.memory_space<vmem>>, vector<24x128xf32>
    tpu.vector_store %arg8[%c0_125, %c0_126], %146 {strides = array<i32>} : memref<24x128xf32, #tpu.memory_space<vmem>>, vector<24x128xf32>,
    return
  }
  func.func @transform_0(%arg0: i32) -> (i32, i32) {
    %c0_i32 = arith.constant 0 : i32
    %c0_i32_0 = arith.constant 0 : i32
    %c0_i32_1 = arith.constant 0 : i32
    return %c0_i32, %c0_i32_0 : i32, i32
  }
  func.func @transform_1(%arg0: i32) -> (i32, i32, i32) {
    %c0_i32 = arith.constant 0 : i32
    %c0_i32_0 = arith.constant 0 : i32
    %c0_i32_1 = arith.constant 0 : i32
    %c0_i32_2 = arith.constant 0 : i32
    return %c0_i32, %c0_i32_0, %c0_i32_1 : i32, i32, i32
  }
  func.func @transform_2(%arg0: i32) -> (i32, i32, i32) {
    %c0_i32 = arith.constant 0 : i32
    %c0_i32_0 = arith.constant 0 : i32
    %c0_i32_1 = arith.constant 0 : i32
    %c0_i32_2 = arith.constant 0 : i32
    return %c0_i32, %c0_i32_0, %c0_i32_1 : i32, i32, i32
  }
  func.func @transform_3(%arg0: i32) -> (i32, i32, i32) {
    %c0_i32 = arith.constant 0 : i32
    %c0_i32_0 = arith.constant 0 : i32
    %c0_i32_1 = arith.constant 0 : i32
    %c0_i32_2 = arith.constant 0 : i32
    return %c0_i32, %c0_i32_0, %c0_i32_1 : i32, i32, i32
  }
  func.func @transform_4(%arg0: i32) -> (i32, i32) {
    %c0_i32 = arith.constant 0 : i32
    %c0_i32_0 = arith.constant 0 : i32
    %c0_i32_1 = arith.constant 0 : i32
    return %c0_i32, %c0_i32_0 : i32, i32
  }
  func.func @transform_5(%arg0: i32) -> (i32, i32) {
    %c0_i32 = arith.constant 0 : i32
    %c0_i32_0 = arith.constant 0 : i32
    %c0_i32_1 = arith.constant 0 : i32
    return %c0_i32, %c0_i32_0 : i32, i32
  }
  func.func @transform_6(%arg0: i32) -> (i32, i32) {
    %c0_i32 = arith.constant 0 : i32
    %c0_i32_0 = arith.constant 0 : i32
    %c0_i32_1 = arith.constant 0 : i32
    return %c0_i32, %c0_i32_0 : i32, i32
  }
  func.func @transform_7(%arg0: i32) -> (i32, i32) {
    %c0_i32 = arith.constant 0 : i32
    %c0_i32_0 = arith.constant 0 : i32
    %c0_i32_1 = arith.constant 0 : i32
    return %c0_i32, %c0_i32_0 : i32, i32
  }
}

</mosaic_0001>

<llo_original>
// kernel: tpu_custom_call.1
$region0: #{tpu_custom_call.1}
  #allocation0 [shape = 'u32[]', space=smem, size = 0x4, offset = 0x4, fixed_abs, tag = 'smem constant byte address 0x4 - core index']
  #allocation1 [shape = 'u32[144,128]{1,0:T(1,128)}', space=vmem, size = 0x12000, scoped, tag = 'internal scratch']
  %s0 = inlined_call_operand.hbm [shape: bf16[4,512], index: 0, kind: input, shape index: {}]
  %s1 = inlined_call_operand.hbm [shape: bf16[9,512,128], index: 1, kind: input, shape index: {}]
  %s2 = inlined_call_operand.vmem [shape: bf16[9,128,32], index: 2, kind: input, shape index: {}]
  %s3 = inlined_call_operand.hbm [shape: bf16[9,32,32], index: 3, kind: input, shape index: {}]
  %s4 = inlined_call_operand.hbm [shape: bf16[32,128], index: 4, kind: input, shape index: {}]
  %s5 = inlined_call_operand.hbm [shape: bf16[16,768], index: 5, kind: input, shape index: {}]
  %s6 = inlined_call_operand.vmem [shape: f32[48,1], index: 6, kind: input, shape index: {}]
  %s7 = inlined_call_operand.hbm [shape: f32[24,128], index: 7, kind: output, shape index: {}]
  %s8 = sld [smem:[#allocation0]]
  $region58: #{tpu_custom_call.1} parent=0
    _
  %s10 = ssub.s32 1, %s8
  %s11 = scalar_select 0, %s10, %s8
  $region1: #{tpu_custom_call.1} parent=0
    #allocation2 [shape = 'u8[4096]{0}', space=vmem, size = 0x1000, scoped, tag = 'input window, operand 0, single buffered']
    #allocation3 [shape = 's32[1]{0}', space=sflag, size = 0x4, scoped, tag = 'scoped memory for tpu_custom_call.1']
    #allocation4 [shape = 's32[1]{0}', space=sflag, size = 0x4, scoped, tag = 'scoped memory for tpu_custom_call.1']
    #allocation5 [shape = 'u8[1179648]{0}', space=vmem, size = 0x120000, scoped, tag = 'input window, operand 1, single buffered']
    #allocation6 [shape = 's32[1]{0}', space=sflag, size = 0x4, scoped, tag = 'scoped memory for tpu_custom_call.1']
    #allocation7 [shape = 'u8[73728]{0}', space=vmem, size = 0x12000, scoped, tag = 'input window, operand 3, single buffered']
    #allocation8 [shape = 'u8[8192]{0}', space=vmem, size = 0x2000, scoped, tag = 'input window, operand 4, single buffered']
    #allocation9 [shape = 's32[1]{0}', space=sflag, size = 0x4, scoped, tag = 'scoped memory for tpu_custom_call.1']
    #allocation10 [shape = 'u8[24576]{0}', space=vmem, size = 0x6000, scoped, tag = 'input window, operand 5, single buffered']
    #allocation11 [shape = 'u8[12288]{0}', space=vmem, size = 0x3000, scoped, tag = 'output window, operand 0, single buffered']
    %12 = vsyncpa [#allocation3], 0
    %13 = vsyncpa [#allocation6], 0
    %14 = vsyncpa [#allocation9], 0
    %15 = vsyncpa [#allocation4], 0
    // Predicated region
    $region2: #{tpu_custom_call.1} parent=1 // pred_check
      _
    $region3: #{tpu_custom_call.1} parent=1 // pred_check_branch
      %17 = sbr.rel (0) target = $region5
    $region4: #{tpu_custom_call.1} parent=1 // pred_region
      %s19 = ssub.s32 128, 128
      %20 = vsyncadd [#allocation3], %s19
      %s22 = sshll.u32 [#allocation2], 4
      %s23 = int_to_ptr.vmem [resolvable:$true] %s22
      %25 = dma.hbm_to_vmem [thread:$0]  %s0, 128, %s23, [#allocation3]
    $region5: #{tpu_custom_call.1} parent=1 // pred_fallthru
      _
    // Predicated region
    $region6: #{tpu_custom_call.1} parent=1 // pred_check
      _
    $region7: #{tpu_custom_call.1} parent=1 // pred_check_branch
      %27 = sbr.rel (0) target = $region9
    $region8: #{tpu_custom_call.1} parent=1 // pred_region
      %s29 = ssub.s32 36864, 36864
      %30 = vsyncadd [#allocation6], %s29
      %s31 = sshll.u32 [#allocation5], 4
      %s32 = int_to_ptr.vmem [resolvable:$true] %s31
      %37 = dma.hbm_to_vmem [thread:$0]  %s1, 36864, %s32, [#allocation6], 64, 64, 4
    $region9: #{tpu_custom_call.1} parent=1 // pred_fallthru
      _
    // Predicated region
    $region10: #{tpu_custom_call.1} parent=1 // pred_check
      _
    $region11: #{tpu_custom_call.1} parent=1 // pred_check_branch
      %39 = sbr.rel (0) target = $region13
    $region12: #{tpu_custom_call.1} parent=1 // pred_region
      _
    $region13: #{tpu_custom_call.1} parent=1 // pred_fallthru
      _
    // Predicated region
    $region14: #{tpu_custom_call.1} parent=1 // pred_check
      _
    $region15: #{tpu_custom_call.1} parent=1 // pred_check_branch
      %41 = sbr.rel (0) target = $region17
    $region16: #{tpu_custom_call.1} parent=1 // pred_region
      %s43 = ssub.s32 2304, 2304
      %44 = vsyncadd [#allocation6], %s43
      %s45 = sshll.u32 [#allocation7], 4
      %s46 = int_to_ptr.vmem [resolvable:$true] %s45
      %51 = dma.hbm_to_vmem [thread:$0]  %s3, 2304, %s46, [#allocation6], 64, 64, 4
    $region17: #{tpu_custom_call.1} parent=1 // pred_fallthru
      _
    // Predicated region
    $region18: #{tpu_custom_call.1} parent=1 // pred_check
      _
    $region19: #{tpu_custom_call.1} parent=1 // pred_check_branch
      %53 = sbr.rel (0) target = $region21
    $region20: #{tpu_custom_call.1} parent=1 // pred_region
      %s55 = ssub.s32 256, 256
      %56 = vsyncadd [#allocation9], %s55
      %s57 = sshll.u32 [#allocation8], 4
      %s58 = int_to_ptr.vmem [resolvable:$true] %s57
      %63 = dma.hbm_to_vmem [thread:$0]  %s4, 256, %s58, [#allocation9], 64, 64, 4
    $region21: #{tpu_custom_call.1} parent=1 // pred_fallthru
      _
    // Predicated region
    $region22: #{tpu_custom_call.1} parent=1 // pred_check
      _
    $region23: #{tpu_custom_call.1} parent=1 // pred_check_branch
      %65 = sbr.rel (0) target = $region25
    $region24: #{tpu_custom_call.1} parent=1 // pred_region
      %s67 = ssub.s32 768, 768
      %68 = vsyncadd [#allocation9], %s67
      %s69 = sshll.u32 [#allocation10], 4
      %s70 = int_to_ptr.vmem [resolvable:$true] %s69
      %75 = dma.hbm_to_vmem [thread:$0]  %s5, 768, %s70, [#allocation9], 384, 384, 24
    $region25: #{tpu_custom_call.1} parent=1 // pred_fallthru
      _
    // Predicated region
    $region26: #{tpu_custom_call.1} parent=1 // pred_check
      _
    $region27: #{tpu_custom_call.1} parent=1 // pred_check_branch
      %77 = sbr.rel (0) target = $region29
    $region28: #{tpu_custom_call.1} parent=1 // pred_region
      _
    $region29: #{tpu_custom_call.1} parent=1 // pred_fallthru
      _
    // Predicated region
    $region30: #{tpu_custom_call.1} parent=1 // pred_check
      _
    $region31: #{tpu_custom_call.1} parent=1 // pred_check_branch
      %79 = sbr.rel (0) target = $region33
    $region32: #{tpu_custom_call.1} parent=1 // pred_region
      %80 = dma.done [#allocation3], 128
    $region33: #{tpu_custom_call.1} parent=1 // pred_fallthru
      _
    // Predicated region
    $region34: #{tpu_custom_call.1} parent=1 // pred_check
      _
    $region35: #{tpu_custom_call.1} parent=1 // pred_check_branch
      %82 = sbr.rel (0) target = $region37
    $region36: #{tpu_custom_call.1} parent=1 // pred_region
      %83 = dma.done [#allocation6], 36864
    $region37: #{tpu_custom_call.1} parent=1 // pred_fallthru
      _
    // Predicated region
    $region38: #{tpu_custom_call.1} parent=1 // pred_check
      _
    $region39: #{tpu_custom_call.1} parent=1 // pred_check_branch
      %85 = sbr.rel (0) target = $region41
    $region40: #{tpu_custom_call.1} parent=1 // pred_region
      %86 = dma.done [#allocation6], 2304
    $region41: #{tpu_custom_call.1} parent=1 // pred_fallthru
      _
    // Predicated region
    $region42: #{tpu_custom_call.1} parent=1 // pred_check
      _
    $region43: #{tpu_custom_call.1} parent=1 // pred_check_branch
      %88 = sbr.rel (0) target = $region45
    $region44: #{tpu_custom_call.1} parent=1 // pred_region
      %89 = dma.done [#allocation9], 256
    $region45: #{tpu_custom_call.1} parent=1 // pred_fallthru
      _
    // Predicated region
    $region46: #{tpu_custom_call.1} parent=1 // pred_check
      _
    $region47: #{tpu_custom_call.1} parent=1 // pred_check_branch
      %91 = sbr.rel (0) target = $region49
    $region48: #{tpu_custom_call.1} parent=1 // pred_region
      %92 = dma.done [#allocation9], 768
    $region49: #{tpu_custom_call.1} parent=1 // pred_fallthru
      _
    %v94 = vld [vmem:[#allocation2] sm:$0xff]
    %v95 = vld [vmem:[#allocation5] sm:$0xf]
    %v96 = vld [vmem:[#allocation5 + $0x4] sm:$0xf]
    %v97 = vld [vmem:[#allocation5 + $0x8] sm:$0xf]
    %v98 = vld [vmem:[#allocation5 + $0xc] sm:$0xf]
    %v99 = vld [vmem:[#allocation5 + $0x10] sm:$0xf]
    %v100 = vld [vmem:[#allocation5 + $0x14] sm:$0xf]
    %v101 = vld [vmem:[#allocation5 + $0x18] sm:$0xf]
    %v102 = vld [vmem:[#allocation5 + $0x1c] sm:$0xf]
    %v103 = vld [vmem:[#allocation5 + $0x20] sm:$0xf]
    %v104 = vld [vmem:[#allocation5 + $0x24] sm:$0xf]
    %v105 = vld [vmem:[#allocation5 + $0x28] sm:$0xf]
    %v106 = vld [vmem:[#allocation5 + $0x2c] sm:$0xf]
    %v107 = vld [vmem:[#allocation5 + $0x30] sm:$0xf]
    %v108 = vld [vmem:[#allocation5 + $0x34] sm:$0xf]
    %v109 = vld [vmem:[#allocation5 + $0x38] sm:$0xf]
    %v110 = vld [vmem:[#allocation5 + $0x3c] sm:$0xf]
    %v111 = vld [vmem:[#allocation5 + $0x40] sm:$0xf]
    %v112 = vld [vmem:[#allocation5 + $0x44] sm:$0xf]
    %v113 = vld [vmem:[#allocation5 + $0x48] sm:$0xf]
    %v114 = vld [vmem:[#allocation5 + $0x4c] sm:$0xf]
    %v115 = vld [vmem:[#allocation5 + $0x50] sm:$0xf]
    %v116 = vld [vmem:[#allocation5 + $0x54] sm:$0xf]
    %v117 = vld [vmem:[#allocation5 + $0x58] sm:$0xf]
    %v118 = vld [vmem:[#allocation5 + $0x5c] sm:$0xf]
    %v119 = vld [vmem:[#allocation5 + $0x60] sm:$0xf]
    %v120 = vld [vmem:[#allocation5 + $0x64] sm:$0xf]
    %v121 = vld [vmem:[#allocation5 + $0x68] sm:$0xf]
    %v122 = vld [vmem:[#allocation5 + $0x6c] sm:$0xf]
    %v123 = vld [vmem:[#allocation5 + $0x70] sm:$0xf]
    %v124 = vld [vmem:[#allocation5 + $0x74] sm:$0xf]
    %v125 = vld [vmem:[#allocation5 + $0x78] sm:$0xf]
    %v126 = vld [vmem:[#allocation5 + $0x7c] sm:$0xf]
    %v127 = vld [vmem:[#allocation5 + $0x80] sm:$0xf]
    %v128 = vld [vmem:[#allocation5 + $0x84] sm:$0xf]
    %v129 = vld [vmem:[#allocation5 + $0x88] sm:$0xf]
    %v130 = vld [vmem:[#allocation5 + $0x8c] sm:$0xf]
    %v131 = vld [vmem:[#allocation5 + $0x90] sm:$0xf]
    %v132 = vld [vmem:[#allocation5 + $0x94] sm:$0xf]
    %v133 = vld [vmem:[#allocation5 + $0x98] sm:$0xf]
    %v134 = vld [vmem:[#allocation5 + $0x9c] sm:$0xf]
    %v135 = vld [vmem:[#allocation5 + $0xa0] sm:$0xf]
    %v136 = vld [vmem:[#allocation5 + $0xa4] sm:$0xf]
    %v137 = vld [vmem:[#allocation5 + $0xa8] sm:$0xf]
    %v138 = vld [vmem:[#allocation5 + $0xac] sm:$0xf]
    %v139 = vld [vmem:[#allocation5 + $0xb0] sm:$0xf]
    %v140 = vld [vmem:[#allocation5 + $0xb4] sm:$0xf]
    %v141 = vld [vmem:[#allocation5 + $0xb8] sm:$0xf]
    %v142 = vld [vmem:[#allocation5 + $0xbc] sm:$0xf]
    %v143 = vld [vmem:[#allocation5 + $0xc0] sm:$0xf]
    %v144 = vld [vmem:[#allocation5 + $0xc4] sm:$0xf]
    %v145 = vld [vmem:[#allocation5 + $0xc8] sm:$0xf]
    %v146 = vld [vmem:[#allocation5 + $0xcc] sm:$0xf]
    %v147 = vld [vmem:[#allocation5 + $0xd0] sm:$0xf]
    %v148 = vld [vmem:[#allocation5 + $0xd4] sm:$0xf]
    %v149 = vld [vmem:[#allocation5 + $0xd8] sm:$0xf]
    %v150 = vld [vmem:[#allocation5 + $0xdc] sm:$0xf]
    %v151 = vld [vmem:[#allocation5 + $0xe0] sm:$0xf]
    %v152 = vld [vmem:[#allocation5 + $0xe4] sm:$0xf]
    %v153 = vld [vmem:[#allocation5 + $0xe8] sm:$0xf]
    %v154 = vld [vmem:[#allocation5 + $0xec] sm:$0xf]
    %v155 = vld [vmem:[#allocation5 + $0xf0] sm:$0xf]
    %v156 = vld [vmem:[#allocation5 + $0xf4] sm:$0xf]
    %v157 = vld [vmem:[#allocation5 + $0xf8] sm:$0xf]
    %v158 = vld [vmem:[#allocation5 + $0xfc] sm:$0xf]
    %v160 = vcombine.high %v94, %v94
    %v162 = vunpack.c.l.s4 1983009808
    %v163 = vunpack.c.0.s8 %v162
    %v164 = vlaneseq
    %v165 = vshrl.u32 %v164, 7
    %v166 = vsub.s32 %v163, %v165
    %v167 = vrot.slane %v94, %v166
    %v169 = vunpack.c.l.s4 1983009808
    %v170 = vunpack.c.0.s8 %v169
    %v171 = vlaneseq
    %v172 = vshrl.u32 %v171, 7
    %v173 = vsub.s32 %v170, %v172
    %v174 = vrot.slane %v160, %v173
    %v175 = vcombine.high %v167, %v167
    %v176 = vcombine.high %v174, %v174
    %v245 = vunpack.c.l.b16 %v95
    %v246 = vunpack.c.l.b16 %v96
    %v247 = vunpack.c.l.b16 %v97
    %v248 = vunpack.c.l.b16 %v98
    %v249 = vunpack.c.l.b16 %v99
    %v250 = vunpack.c.l.b16 %v100
    %v251 = vunpack.c.l.b16 %v101
    %v252 = vunpack.c.l.b16 %v102
    %v253 = vunpack.c.l.b16 %v103
    %v254 = vunpack.c.l.b16 %v104
    %v255 = vunpack.c.l.b16 %v105
    %v256 = vunpack.c.l.b16 %v106
    %v257 = vunpack.c.l.b16 %v107
    %v258 = vunpack.c.l.b16 %v108
    %v259 = vunpack.c.l.b16 %v109
    %v260 = vunpack.c.l.b16 %v110
    %v261 = vunpack.c.l.b16 %v111
    %v262 = vunpack.c.l.b16 %v112
    %v263 = vunpack.c.l.b16 %v113
    %v264 = vunpack.c.l.b16 %v114
    %v265 = vunpack.c.l.b16 %v115
    %v266 = vunpack.c.l.b16 %v116
    %v267 = vunpack.c.l.b16 %v117
    %v268 = vunpack.c.l.b16 %v118
    %v269 = vunpack.c.l.b16 %v119
    %v270 = vunpack.c.l.b16 %v120
    %v271 = vunpack.c.l.b16 %v121
    %v272 = vunpack.c.l.b16 %v122
    %v273 = vunpack.c.l.b16 %v123
    %v274 = vunpack.c.l.b16 %v124
    %v275 = vunpack.c.l.b16 %v125
    %v276 = vunpack.c.l.b16 %v126
    %v277 = vunpack.c.l.b16 %v127
    %v278 = vunpack.c.l.b16 %v128
    %v279 = vunpack.c.l.b16 %v129
    %v280 = vunpack.c.l.b16 %v130
    %v281 = vunpack.c.l.b16 %v131
    %v282 = vunpack.c.l.b16 %v132
    %v283 = vunpack.c.l.b16 %v133
    %v284 = vunpack.c.l.b16 %v134
    %v285 = vunpack.c.l.b16 %v135
    %v286 = vunpack.c.l.b16 %v136
    %v287 = vunpack.c.l.b16 %v137
    %v288 = vunpack.c.l.b16 %v138
    %v289 = vunpack.c.l.b16 %v139
    %v290 = vunpack.c.l.b16 %v140
    %v291 = vunpack.c.l.b16 %v141
    %v292 = vunpack.c.l.b16 %v142
    %v293 = vunpack.c.l.b16 %v143
    %v294 = vunpack.c.l.b16 %v144
    %v295 = vunpack.c.l.b16 %v145
    %v296 = vunpack.c.l.b16 %v146
    %v297 = vunpack.c.l.b16 %v147
    %v298 = vunpack.c.l.b16 %v148
    %v299 = vunpack.c.l.b16 %v149
    %v300 = vunpack.c.l.b16 %v150
    %v301 = vunpack.c.l.b16 %v151
    %v302 = vunpack.c.l.b16 %v152
    %v303 = vunpack.c.l.b16 %v153
    %v304 = vunpack.c.l.b16 %v154
    %v305 = vunpack.c.l.b16 %v155
    %v306 = vunpack.c.l.b16 %v156
    %v307 = vunpack.c.l.b16 %v157
    %v308 = vunpack.c.l.b16 %v158
    %v309 = vpack.c.b16 %v246, %v245
    %v310 = vpack.c.b16 %v248, %v247
    %v311 = vpack.c.b16 %v250, %v249
    %v312 = vpack.c.b16 %v252, %v251
    %v313 = vpack.c.b16 %v254, %v253
    %v314 = vpack.c.b16 %v256, %v255
    %v315 = vpack.c.b16 %v258, %v257
    %v316 = vpack.c.b16 %v260, %v259
    %v317 = vpack.c.b16 %v262, %v261
    %v318 = vpack.c.b16 %v264, %v263
    %v319 = vpack.c.b16 %v266, %v265
    %v320 = vpack.c.b16 %v268, %v267
    %v321 = vpack.c.b16 %v270, %v269
    %v322 = vpack.c.b16 %v272, %v271
    %v323 = vpack.c.b16 %v274, %v273
    %v324 = vpack.c.b16 %v276, %v275
    %v325 = vpack.c.b16 %v278, %v277
    %v326 = vpack.c.b16 %v280, %v279
    %v327 = vpack.c.b16 %v282, %v281
    %v328 = vpack.c.b16 %v284, %v283
    %v329 = vpack.c.b16 %v286, %v285
    %v330 = vpack.c.b16 %v288, %v287
    %v331 = vpack.c.b16 %v290, %v289
    %v332 = vpack.c.b16 %v292, %v291
    %v333 = vpack.c.b16 %v294, %v293
    %v334 = vpack.c.b16 %v296, %v295
    %v335 = vpack.c.b16 %v298, %v297
    %v336 = vpack.c.b16 %v300, %v299
    %v337 = vpack.c.b16 %v302, %v301
    %v338 = vpack.c.b16 %v304, %v303
    %v339 = vpack.c.b16 %v306, %v305
    %v340 = vpack.c.b16 %v308, %v307
    %373 = vmatprep.subr.bf16.mxu0 0
    %374 = vmatpush1.bf16.msra.mxu0 %v316
    %375 = vmatprep.subr.bf16.mxu0 0
    %376 = vmatpush1.bf16.msra.mxu0 %v315
    %377 = vmatprep.subr.bf16.mxu0 0
    %378 = vmatpush1.bf16.msra.mxu0 %v314
    %379 = vmatprep.subr.bf16.mxu0 0
    %380 = vmatpush1.bf16.msra.mxu0 %v313
    %381 = vmatprep.subr.bf16.mxu0 0
    %382 = vmatpush1.bf16.msra.mxu0 %v312
    %383 = vmatprep.subr.bf16.mxu0 0
    %384 = vmatpush1.bf16.msra.mxu0 %v311
    %385 = vmatprep.subr.bf16.mxu0 0
    %386 = vmatpush1.bf16.msra.mxu0 %v310
    %387 = vmatprep.subr.bf16.mxu0 0
    %388 = vmatpush1.bf16.msra.mxu0 %v309
    %389 = vmatprep.subr.bf16.mxu0 0
    %390 = vmatpush2.bf16.msra.mxu0 %v324
    %391 = vmatprep.subr.bf16.mxu0 0
    %392 = vmatpush2.bf16.msra.mxu0 %v323
    %393 = vmatprep.subr.bf16.mxu0 0
    %394 = vmatpush2.bf16.msra.mxu0 %v322
    %395 = vmatprep.subr.bf16.mxu0 0
    %396 = vmatpush2.bf16.msra.mxu0 %v321
    %397 = vmatprep.subr.bf16.mxu0 0
    %398 = vmatpush2.bf16.msra.mxu0 %v320
    %399 = vmatprep.subr.bf16.mxu0 0
    %400 = vmatpush2.bf16.msra.mxu0 %v319
    %401 = vmatprep.subr.bf16.mxu0 0
    %402 = vmatpush2.bf16.msra.mxu0 %v318
    %403 = vmatprep.subr.bf16.mxu0 0
    %404 = vmatpush2.bf16.msra.mxu0 %v317
    %405 = vmatprep.mubr.bf16.mxu0 %v175
    %406 = vmatmul.mubr.bf16.gmra.mxu0 %v167
    %v407 = vpop.f32.mrf.mxu0
    %v408 = vadd.f32 0.0, %v407
    %v409 = vpop.f32.mrf.mxu0
    %v410 = vpop.f32.mrf.mxu0
    %v411 = vpop.f32.mrf.mxu0
    %412 = vdwg.mxu0
    %413 = vmatprep.subr.bf16.mxu0 0
    %414 = vmatpush1.bf16.msra.mxu0 %v332
    %415 = vmatprep.subr.bf16.mxu0 0
    %416 = vmatpush1.bf16.msra.mxu0 %v331
    %417 = vmatprep.subr.bf16.mxu0 0
    %418 = vmatpush1.bf16.msra.mxu0 %v330
    %419 = vmatprep.subr.bf16.mxu0 0
    %420 = vmatpush1.bf16.msra.mxu0 %v329
    %421 = vmatprep.subr.bf16.mxu0 0
    %422 = vmatpush1.bf16.msra.mxu0 %v328
    %423 = vmatprep.subr.bf16.mxu0 0
    %424 = vmatpush1.bf16.msra.mxu0 %v327
    %425 = vmatprep.subr.bf16.mxu0 0
    %426 = vmatpush1.bf16.msra.mxu0 %v326
    %427 = vmatprep.subr.bf16.mxu0 0
    %428 = vmatpush1.bf16.msra.mxu0 %v325
    %429 = vmatprep.subr.bf16.mxu0 0
    %430 = vmatpush2.bf16.msra.mxu0 %v340
    %431 = vmatprep.subr.bf16.mxu0 0
    %432 = vmatpush2.bf16.msra.mxu0 %v339
    %433 = vmatprep.subr.bf16.mxu0 0
    %434 = vmatpush2.bf16.msra.mxu0 %v338
    %435 = vmatprep.subr.bf16.mxu0 0
    %436 = vmatpush2.bf16.msra.mxu0 %v337
    %437 = vmatprep.subr.bf16.mxu0 0
    %438 = vmatpush2.bf16.msra.mxu0 %v336
    %439 = vmatprep.subr.bf16.mxu0 0
    %440 = vmatpush2.bf16.msra.mxu0 %v335
    %441 = vmatprep.subr.bf16.mxu0 0
    %442 = vmatpush2.bf16.msra.mxu0 %v334
    %443 = vmatprep.subr.bf16.mxu0 0
    %444 = vmatpush2.bf16.msra.mxu0 %v333
    %445 = vmatprep.mubr.bf16.mxu0 %v176
    %446 = vmatmul.mubr.bf16.gmra.mxu0 %v174
    %v447 = vpop.f32.mrf.mxu0
    %v448 = vadd.f32 %v408, %v447
    %v449 = vpop.f32.mrf.mxu0
    %v450 = vpop.f32.mrf.mxu0
    %v451 = vpop.f32.mrf.mxu0
    %452 = vdwg.mxu0
    %s453 = scalar_lea.vmem [#allocation5], 256
    %v454 = vld [vmem:[%s453] sm:$0xf]
    %v455 = vld [vmem:[%s453 + $0x4] sm:$0xf]
    %v456 = vld [vmem:[%s453 + $0x8] sm:$0xf]
    %v457 = vld [vmem:[%s453 + $0xc] sm:$0xf]
    %v458 = vld [vmem:[%s453 + $0x10] sm:$0xf]
    %v459 = vld [vmem:[%s453 + $0x14] sm:$0xf]
    %v460 = vld [vmem:[%s453 + $0x18] sm:$0xf]
    %v461 = vld [vmem:[%s453 + $0x1c] sm:$0xf]
    %v462 = vld [vmem:[%s453 + $0x20] sm:$0xf]
    %v463 = vld [vmem:[%s453 + $0x24] sm:$0xf]
    %v464 = vld [vmem:[%s453 + $0x28] sm:$0xf]
    %v465 = vld [vmem:[%s453 + $0x2c] sm:$0xf]
    %v466 = vld [vmem:[%s453 + $0x30] sm:$0xf]
    %v467 = vld [vmem:[%s453 + $0x34] sm:$0xf]
    %v468 = vld [vmem:[%s453 + $0x38] sm:$0xf]
    %v469 = vld [vmem:[%s453 + $0x3c] sm:$0xf]
    %v470 = vld [vmem:[%s453 + $0x40] sm:$0xf]
    %v471 = vld [vmem:[%s453 + $0x44] sm:$0xf]
    %v472 = vld [vmem:[%s453 + $0x48] sm:$0xf]
    %v473 = vld [vmem:[%s453 + $0x4c] sm:$0xf]
    %v474 = vld [vmem:[%s453 + $0x50] sm:$0xf]
    %v475 = vld [vmem:[%s453 + $0x54] sm:$0xf]
    %v476 = vld [vmem:[%s453 + $0x58] sm:$0xf]
    %v477 = vld [vmem:[%s453 + $0x5c] sm:$0xf]
    %v478 = vld [vmem:[%s453 + $0x60] sm:$0xf]
    %v479 = vld [vmem:[%s453 + $0x64] sm:$0xf]
    %v480 = vld [vmem:[%s453 + $0x68] sm:$0xf]
    %v481 = vld [vmem:[%s453 + $0x6c] sm:$0xf]
    %v482 = vld [vmem:[%s453 + $0x70] sm:$0xf]
    %v483 = vld [vmem:[%s453 + $0x74] sm:$0xf]
    %v484 = vld [vmem:[%s453 + $0x78] sm:$0xf]
    %v485 = vld [vmem:[%s453 + $0x7c] sm:$0xf]
    %v486 = vld [vmem:[%s453 + $0x80] sm:$0xf]
    %v487 = vld [vmem:[%s453 + $0x84] sm:$0xf]
    %v488 = vld [vmem:[%s453 + $0x88] sm:$0xf]
    %v489 = vld [vmem:[%s453 + $0x8c] sm:$0xf]
    %v490 = vld [vmem:[%s453 + $0x90] sm:$0xf]
    %v491 = vld [vmem:[%s453 + $0x94] sm:$0xf]
    %v492 = vld [vmem:[%s453 + $0x98] sm:$0xf]
    %v493 = vld [vmem:[%s453 + $0x9c] sm:$0xf]
    %v494 = vld [vmem:[%s453 + $0xa0] sm:$0xf]
    %v495 = vld [vmem:[%s453 + $0xa4] sm:$0xf]
    %v496 = vld [vmem:[%s453 + $0xa8] sm:$0xf]
    %v497 = vld [vmem:[%s453 + $0xac] sm:$0xf]
    %v498 = vld [vmem:[%s453 + $0xb0] sm:$0xf]
    %v499 = vld [vmem:[%s453 + $0xb4] sm:$0xf]
    %v500 = vld [vmem:[%s453 + $0xb8] sm:$0xf]
    %v501 = vld [vmem:[%s453 + $0xbc] sm:$0xf]
    %v502 = vld [vmem:[%s453 + $0xc0] sm:$0xf]
    %v503 = vld [vmem:[%s453 + $0xc4] sm:$0xf]
    %v504 = vld [vmem:[%s453 + $0xc8] sm:$0xf]
    %v505 = vld [vmem:[%s453 + $0xcc] sm:$0xf]
    %v506 = vld [vmem:[%s453 + $0xd0] sm:$0xf]
    %v507 = vld [vmem:[%s453 + $0xd4] sm:$0xf]
    %v508 = vld [vmem:[%s453 + $0xd8] sm:$0xf]
    %v509 = vld [vmem:[%s453 + $0xdc] sm:$0xf]
    %v510 = vld [vmem:[%s453 + $0xe0] sm:$0xf]
    %v511 = vld [vmem:[%s453 + $0xe4] sm:$0xf]
    %v512 = vld [vmem:[%s453 + $0xe8] sm:$0xf]
    %v513 = vld [vmem:[%s453 + $0xec] sm:$0xf]
    %v514 = vld [vmem:[%s453 + $0xf0] sm:$0xf]
    %v515 = vld [vmem:[%s453 + $0xf4] sm:$0xf]
    %v516 = vld [vmem:[%s453 + $0xf8] sm:$0xf]
    %v517 = vld [vmem:[%s453 + $0xfc] sm:$0xf]
    %v582 = vunpack.c.l.b16 %v454
    %v583 = vunpack.c.l.b16 %v455
    %v584 = vunpack.c.l.b16 %v456
    %v585 = vunpack.c.l.b16 %v457
    %v586 = vunpack.c.l.b16 %v458
    %v587 = vunpack.c.l.b16 %v459
    %v588 = vunpack.c.l.b16 %v460
    %v589 = vunpack.c.l.b16 %v461
    %v590 = vunpack.c.l.b16 %v462
    %v591 = vunpack.c.l.b16 %v463
    %v592 = vunpack.c.l.b16 %v464
    %v593 = vunpack.c.l.b16 %v465
    %v594 = vunpack.c.l.b16 %v466
    %v595 = vunpack.c.l.b16 %v467
    %v596 = vunpack.c.l.b16 %v468
    %v597 = vunpack.c.l.b16 %v469
    %v598 = vunpack.c.l.b16 %v470
    %v599 = vunpack.c.l.b16 %v471
    %v600 = vunpack.c.l.b16 %v472
    %v601 = vunpack.c.l.b16 %v473
    %v602 = vunpack.c.l.b16 %v474
    %v603 = vunpack.c.l.b16 %v475
    %v604 = vunpack.c.l.b16 %v476
    %v605 = vunpack.c.l.b16 %v477
    %v606 = vunpack.c.l.b16 %v478
    %v607 = vunpack.c.l.b16 %v479
    %v608 = vunpack.c.l.b16 %v480
    %v609 = vunpack.c.l.b16 %v481
    %v610 = vunpack.c.l.b16 %v482
    %v611 = vunpack.c.l.b16 %v483
    %v612 = vunpack.c.l.b16 %v484
    %v613 = vunpack.c.l.b16 %v485
    %v614 = vunpack.c.l.b16 %v486
    %v615 = vunpack.c.l.b16 %v487
    %v616 = vunpack.c.l.b16 %v488
    %v617 = vunpack.c.l.b16 %v489
    %v618 = vunpack.c.l.b16 %v490
    %v619 = vunpack.c.l.b16 %v491
    %v620 = vunpack.c.l.b16 %v492
    %v621 = vunpack.c.l.b16 %v493
    %v622 = vunpack.c.l.b16 %v494
    %v623 = vunpack.c.l.b16 %v495
    %v624 = vunpack.c.l.b16 %v496
    %v625 = vunpack.c.l.b16 %v497
    %v626 = vunpack.c.l.b16 %v498
    %v627 = vunpack.c.l.b16 %v499
    %v628 = vunpack.c.l.b16 %v500
    %v629 = vunpack.c.l.b16 %v501
    %v630 = vunpack.c.l.b16 %v502
    %v631 = vunpack.c.l.b16 %v503
    %v632 = vunpack.c.l.b16 %v504
    %v633 = vunpack.c.l.b16 %v505
    %v634 = vunpack.c.l.b16 %v506
    %v635 = vunpack.c.l.b16 %v507
    %v636 = vunpack.c.l.b16 %v508
    %v637 = vunpack.c.l.b16 %v509
    %v638 = vunpack.c.l.b16 %v510
    %v639 = vunpack.c.l.b16 %v511
    %v640 = vunpack.c.l.b16 %v512
    %v641 = vunpack.c.l.b16 %v513
    %v642 = vunpack.c.l.b16 %v514
    %v643 = vunpack.c.l.b16 %v515
    %v644 = vunpack.c.l.b16 %v516
    %v645 = vunpack.c.l.b16 %v517
    %v646 = vpack.c.b16 %v583, %v582
    %v647 = vpack.c.b16 %v585, %v584
    %v648 = vpack.c.b16 %v587, %v586
    %v649 = vpack.c.b16 %v589, %v588
    %v650 = vpack.c.b16 %v591, %v590
    %v651 = vpack.c.b16 %v593, %v592
    %v652 = vpack.c.b16 %v595, %v594
    %v653 = vpack.c.b16 %v597, %v596
    %v654 = vpack.c.b16 %v599, %v598
    %v655 = vpack.c.b16 %v601, %v600
    %v656 = vpack.c.b16 %v603, %v602
    %v657 = vpack.c.b16 %v605, %v604
    %v658 = vpack.c.b16 %v607, %v606
    %v659 = vpack.c.b16 %v609, %v608
    %v660 = vpack.c.b16 %v611, %v610
    %v661 = vpack.c.b16 %v613, %v612
    %v662 = vpack.c.b16 %v615, %v614
    %v663 = vpack.c.b16 %v617, %v616
    %v664 = vpack.c.b16 %v619, %v618
    %v665 = vpack.c.b16 %v621, %v620
    %v666 = vpack.c.b16 %v623, %v622
    %v667 = vpack.c.b16 %v625, %v624
    %v668 = vpack.c.b16 %v627, %v626
    %v669 = vpack.c.b16 %v629, %v628
    %v670 = vpack.c.b16 %v631, %v630
    %v671 = vpack.c.b16 %v633, %v632
    %v672 = vpack.c.b16 %v635, %v634
    %v673 = vpack.c.b16 %v637, %v636
    %v674 = vpack.c.b16 %v639, %v638
    %v675 = vpack.c.b16 %v641, %v640
    %v676 = vpack.c.b16 %v643, %v642
    %v677 = vpack.c.b16 %v645, %v644
    %710 = vmatprep.subr.bf16.mxu0 0
    %711 = vmatpush1.bf16.msra.mxu0 %v653
    %712 = vmatprep.subr.bf16.mxu0 0
    %713 = vmatpush1.bf16.msra.mxu0 %v652
    %714 = vmatprep.subr.bf16.mxu0 0
    %715 = vmatpush1.bf16.msra.mxu0 %v651
    %716 = vmatprep.subr.bf16.mxu0 0
    %717 = vmatpush1.bf16.msra.mxu0 %v650
    %718 = vmatprep.subr.bf16.mxu0 0
    %719 = vmatpush1.bf16.msra.mxu0 %v649
    %720 = vmatprep.subr.bf16.mxu0 0
    %721 = vmatpush1.bf16.msra.mxu0 %v648
    %722 = vmatprep.subr.bf16.mxu0 0
    %723 = vmatpush1.bf16.msra.mxu0 %v647
    %724 = vmatprep.subr.bf16.mxu0 0
    %725 = vmatpush1.bf16.msra.mxu0 %v646
    %726 = vmatprep.subr.bf16.mxu0 0
    %727 = vmatpush2.bf16.msra.mxu0 %v661
    %728 = vmatprep.subr.bf16.mxu0 0
    %729 = vmatpush2.bf16.msra.mxu0 %v660
    %730 = vmatprep.subr.bf16.mxu0 0
    %731 = vmatpush2.bf16.msra.mxu0 %v659
    %732 = vmatprep.subr.bf16.mxu0 0
    %733 = vmatpush2.bf16.msra.mxu0 %v658
    %734 = vmatprep.subr.bf16.mxu0 0
    %735 = vmatpush2.bf16.msra.mxu0 %v657
    %736 = vmatprep.subr.bf16.mxu0 0
    %737 = vmatpush2.bf16.msra.mxu0 %v656
    %738 = vmatprep.subr.bf16.mxu0 0
    %739 = vmatpush2.bf16.msra.mxu0 %v655
    %740 = vmatprep.subr.bf16.mxu0 0
    %741 = vmatpush2.bf16.msra.mxu0 %v654
    %742 = vmatprep.mubr.bf16.mxu0 %v175
    %743 = vmatmul.mubr.bf16.gmra.mxu0 %v167
    %v744 = vpop.f32.mrf.mxu0
    %v745 = vadd.f32 0.0, %v744
    %v746 = vpop.f32.mrf.mxu0
    %v747 = vpop.f32.mrf.mxu0
    %v748 = vpop.f32.mrf.mxu0
    %749 = vdwg.mxu0
    %750 = vmatprep.subr.bf16.mxu0 0
    %751 = vmatpush1.bf16.msra.mxu0 %v669
    %752 = vmatprep.subr.bf16.mxu0 0
    %753 = vmatpush1.bf16.msra.mxu0 %v668
    %754 = vmatprep.subr.bf16.mxu0 0
    %755 = vmatpush1.bf16.msra.mxu0 %v667
    %756 = vmatprep.subr.bf16.mxu0 0
    %757 = vmatpush1.bf16.msra.mxu0 %v666
    %758 = vmatprep.subr.bf16.mxu0 0
    %759 = vmatpush1.bf16.msra.mxu0 %v665
    %760 = vmatprep.subr.bf16.mxu0 0
    %761 = vmatpush1.bf16.msra.mxu0 %v664
    %762 = vmatprep.subr.bf16.mxu0 0
    %763 = vmatpush1.bf16.msra.mxu0 %v663
    %764 = vmatprep.subr.bf16.mxu0 0
    %765 = vmatpush1.bf16.msra.mxu0 %v662
    %766 = vmatprep.subr.bf16.mxu0 0
    %767 = vmatpush2.bf16.msra.mxu0 %v677
    %768 = vmatprep.subr.bf16.mxu0 0
    %769 = vmatpush2.bf16.msra.mxu0 %v676
    %770 = vmatprep.subr.bf16.mxu0 0
    %771 = vmatpush2.bf16.msra.mxu0 %v675
    %772 = vmatprep.subr.bf16.mxu0 0
    %773 = vmatpush2.bf16.msra.mxu0 %v674
    %774 = vmatprep.subr.bf16.mxu0 0
    %775 = vmatpush2.bf16.msra.mxu0 %v673
    %776 = vmatprep.subr.bf16.mxu0 0
    %777 = vmatpush2.bf16.msra.mxu0 %v672
    %778 = vmatprep.subr.bf16.mxu0 0
    %779 = vmatpush2.bf16.msra.mxu0 %v671
    %780 = vmatprep.subr.bf16.mxu0 0
    %781 = vmatpush2.bf16.msra.mxu0 %v670
    %782 = vmatprep.mubr.bf16.mxu0 %v176
    %783 = vmatmul.mubr.bf16.gmra.mxu0 %v174
    %v784 = vpop.f32.mrf.mxu0
    %v785 = vadd.f32 %v745, %v784
    %v786 = vpop.f32.mrf.mxu0
    %v787 = vpop.f32.mrf.mxu0
    %v788 = vpop.f32.mrf.mxu0
    %789 = vdwg.mxu0
    %s790 = scalar_lea.vmem [#allocation5], 512
    %v791 = vld [vmem:[%s790] sm:$0xf]
    %v792 = vld [vmem:[%s790 + $0x4] sm:$0xf]
    %v793 = vld [vmem:[%s790 + $0x8] sm:$0xf]
    %v794 = vld [vmem:[%s790 + $0xc] sm:$0xf]
    %v795 = vld [vmem:[%s790 + $0x10] sm:$0xf]
    %v796 = vld [vmem:[%s790 + $0x14] sm:$0xf]
    %v797 = vld [vmem:[%s790 + $0x18] sm:$0xf]
    %v798 = vld [vmem:[%s790 + $0x1c] sm:$0xf]
    %v799 = vld [vmem:[%s790 + $0x20] sm:$0xf]
    %v800 = vld [vmem:[%s790 + $0x24] sm:$0xf]
    %v801 = vld [vmem:[%s790 + $0x28] sm:$0xf]
    %v802 = vld [vmem:[%s790 + $0x2c] sm:$0xf]
    %v803 = vld [vmem:[%s790 + $0x30] sm:$0xf]
    %v804 = vld [vmem:[%s790 + $0x34] sm:$0xf]
    %v805 = vld [vmem:[%s790 + $0x38] sm:$0xf]
    %v806 = vld [vmem:[%s790 + $0x3c] sm:$0xf]
    %v807 = vld [vmem:[%s790 + $0x40] sm:$0xf]
    %v808 = vld [vmem:[%s790 + $0x44] sm:$0xf]
    %v809 = vld [vmem:[%s790 + $0x48] sm:$0xf]
    %v810 = vld [vmem:[%s790 + $0x4c] sm:$0xf]
    %v811 = vld [vmem:[%s790 + $0x50] sm:$0xf]
    %v812 = vld [vmem:[%s790 + $0x54] sm:$0xf]
    %v813 = vld [vmem:[%s790 + $0x58] sm:$0xf]
    %v814 = vld [vmem:[%s790 + $0x5c] sm:$0xf]
    %v815 = vld [vmem:[%s790 + $0x60] sm:$0xf]
    %v816 = vld [vmem:[%s790 + $0x64] sm:$0xf]
    %v817 = vld [vmem:[%s790 + $0x68] sm:$0xf]
    %v818 = vld [vmem:[%s790 + $0x6c] sm:$0xf]
    %v819 = vld [vmem:[%s790 + $0x70] sm:$0xf]
    %v820 = vld [vmem:[%s790 + $0x74] sm:$0xf]
    %v821 = vld [vmem:[%s790 + $0x78] sm:$0xf]
    %v822 = vld [vmem:[%s790 + $0x7c] sm:$0xf]
    %v823 = vld [vmem:[%s790 + $0x80] sm:$0xf]
    %v824 = vld [vmem:[%s790 + $0x84] sm:$0xf]
    %v825 = vld [vmem:[%s790 + $0x88] sm:$0xf]
    %v826 = vld [vmem:[%s790 + $0x8c] sm:$0xf]
    %v827 = vld [vmem:[%s790 + $0x90] sm:$0xf]
    %v828 = vld [vmem:[%s790 + $0x94] sm:$0xf]
    %v829 = vld [vmem:[%s790 + $0x98] sm:$0xf]
    %v830 = vld [vmem:[%s790 + $0x9c] sm:$0xf]
    %v831 = vld [vmem:[%s790 + $0xa0] sm:$0xf]
    %v832 = vld [vmem:[%s790 + $0xa4] sm:$0xf]
    %v833 = vld [vmem:[%s790 + $0xa8] sm:$0xf]
    %v834 = vld [vmem:[%s790 + $0xac] sm:$0xf]
    %v835 = vld [vmem:[%s790 + $0xb0] sm:$0xf]
    %v836 = vld [vmem:[%s790 + $0xb4] sm:$0xf]
    %v837 = vld [vmem:[%s790 + $0xb8] sm:$0xf]
    %v838 = vld [vmem:[%s790 + $0xbc] sm:$0xf]
    %v839 = vld [vmem:[%s790 + $0xc0] sm:$0xf]
    %v840 = vld [vmem:[%s790 + $0xc4] sm:$0xf]
    %v841 = vld [vmem:[%s790 + $0xc8] sm:$0xf]
    %v842 = vld [vmem:[%s790 + $0xcc] sm:$0xf]
    %v843 = vld [vmem:[%s790 + $0xd0] sm:$0xf]
    %v844 = vld [vmem:[%s790 + $0xd4] sm:$0xf]
    %v845 = vld [vmem:[%s790 + $0xd8] sm:$0xf]
    %v846 = vld [vmem:[%s790 + $0xdc] sm:$0xf]
    %v847 = vld [vmem:[%s790 + $0xe0] sm:$0xf]
    %v848 = vld [vmem:[%s790 + $0xe4] sm:$0xf]
    %v849 = vld [vmem:[%s790 + $0xe8] sm:$0xf]
    %v850 = vld [vmem:[%s790 + $0xec] sm:$0xf]
    %v851 = vld [vmem:[%s790 + $0xf0] sm:$0xf]
    %v852 = vld [vmem:[%s790 + $0xf4] sm:$0xf]
    %v853 = vld [vmem:[%s790 + $0xf8] sm:$0xf]
    %v854 = vld [vmem:[%s790 + $0xfc] sm:$0xf]
    %v919 = vunpack.c.l.b16 %v791
    %v920 = vunpack.c.l.b16 %v792
    %v921 = vunpack.c.l.b16 %v793
    %v922 = vunpack.c.l.b16 %v794
    %v923 = vunpack.c.l.b16 %v795
    %v924 = vunpack.c.l.b16 %v796
    %v925 = vunpack.c.l.b16 %v797
    %v926 = vunpack.c.l.b16 %v798
    %v927 = vunpack.c.l.b16 %v799
    %v928 = vunpack.c.l.b16 %v800
    %v929 = vunpack.c.l.b16 %v801
    %v930 = vunpack.c.l.b16 %v802
    %v931 = vunpack.c.l.b16 %v803
    %v932 = vunpack.c.l.b16 %v804
    %v933 = vunpack.c.l.b16 %v805
    %v934 = vunpack.c.l.b16 %v806
    %v935 = vunpack.c.l.b16 %v807
    %v936 = vunpack.c.l.b16 %v808
    %v937 = vunpack.c.l.b16 %v809
    %v938 = vunpack.c.l.b16 %v810
    %v939 = vunpack.c.l.b16 %v811
    %v940 = vunpack.c.l.b16 %v812
    %v941 = vunpack.c.l.b16 %v813
    %v942 = vunpack.c.l.b16 %v814
    %v943 = vunpack.c.l.b16 %v815
    %v944 = vunpack.c.l.b16 %v816
    %v945 = vunpack.c.l.b16 %v817
    %v946 = vunpack.c.l.b16 %v818
    %v947 = vunpack.c.l.b16 %v819
    %v948 = vunpack.c.l.b16 %v820
    %v949 = vunpack.c.l.b16 %v821
    %v950 = vunpack.c.l.b16 %v822
    %v951 = vunpack.c.l.b16 %v823
    %v952 = vunpack.c.l.b16 %v824
    %v953 = vunpack.c.l.b16 %v825
    %v954 = vunpack.c.l.b16 %v826
    %v955 = vunpack.c.l.b16 %v827
    %v956 = vunpack.c.l.b16 %v828
    %v957 = vunpack.c.l.b16 %v829
    %v958 = vunpack.c.l.b16 %v830
    %v959 = vunpack.c.l.b16 %v831
    %v960 = vunpack.c.l.b16 %v832
    %v961 = vunpack.c.l.b16 %v833
    %v962 = vunpack.c.l.b16 %v834
    %v963 = vunpack.c.l.b16 %v835
    %v964 = vunpack.c.l.b16 %v836
    %v965 = vunpack.c.l.b16 %v837
    %v966 = vunpack.c.l.b16 %v838
    %v967 = vunpack.c.l.b16 %v839
    %v968 = vunpack.c.l.b16 %v840
    %v969 = vunpack.c.l.b16 %v841
    %v970 = vunpack.c.l.b16 %v842
    %v971 = vunpack.c.l.b16 %v843
    %v972 = vunpack.c.l.b16 %v844
    %v973 = vunpack.c.l.b16 %v845
    %v974 = vunpack.c.l.b16 %v846
    %v975 = vunpack.c.l.b16 %v847
    %v976 = vunpack.c.l.b16 %v848
    %v977 = vunpack.c.l.b16 %v849
    %v978 = vunpack.c.l.b16 %v850
    %v979 = vunpack.c.l.b16 %v851
    %v980 = vunpack.c.l.b16 %v852
    %v981 = vunpack.c.l.b16 %v853
    %v982 = vunpack.c.l.b16 %v854
    %v983 = vpack.c.b16 %v920, %v919
    %v984 = vpack.c.b16 %v922, %v921
    %v985 = vpack.c.b16 %v924, %v923
    %v986 = vpack.c.b16 %v926, %v925
    %v987 = vpack.c.b16 %v928, %v927
    %v988 = vpack.c.b16 %v930, %v929
    %v989 = vpack.c.b16 %v932, %v931
    %v990 = vpack.c.b16 %v934, %v933
    %v991 = vpack.c.b16 %v936, %v935
    %v992 = vpack.c.b16 %v938, %v937
    %v993 = vpack.c.b16 %v940, %v939
    %v994 = vpack.c.b16 %v942, %v941
    %v995 = vpack.c.b16 %v944, %v943
    %v996 = vpack.c.b16 %v946, %v945
    %v997 = vpack.c.b16 %v948, %v947
    %v998 = vpack.c.b16 %v950, %v949
    %v999 = vpack.c.b16 %v952, %v951
    %v1000 = vpack.c.b16 %v954, %v953
    %v1001 = vpack.c.b16 %v956, %v955
    %v1002 = vpack.c.b16 %v958, %v957
    %v1003 = vpack.c.b16 %v960, %v959
    %v1004 = vpack.c.b16 %v962, %v961
    %v1005 = vpack.c.b16 %v964, %v963
    %v1006 = vpack.c.b16 %v966, %v965
    %v1007 = vpack.c.b16 %v968, %v967
    %v1008 = vpack.c.b16 %v970, %v969
    %v1009 = vpack.c.b16 %v972, %v971
    %v1010 = vpack.c.b16 %v974, %v973
    %v1011 = vpack.c.b16 %v976, %v975
    %v1012 = vpack.c.b16 %v978, %v977
    %v1013 = vpack.c.b16 %v980, %v979
    %v1014 = vpack.c.b16 %v982, %v981
    %1047 = vmatprep.subr.bf16.mxu0 0
    %1048 = vmatpush1.bf16.msra.mxu0 %v990
    %1049 = vmatprep.subr.bf16.mxu0 0
    %1050 = vmatpush1.bf16.msra.mxu0 %v989
    %1051 = vmatprep.subr.bf16.mxu0 0
    %1052 = vmatpush1.bf16.msra.mxu0 %v988
    %1053 = vmatprep.subr.bf16.mxu0 0
    %1054 = vmatpush1.bf16.msra.mxu0 %v987
    %1055 = vmatprep.subr.bf16.mxu0 0
    %1056 = vmatpush1.bf16.msra.mxu0 %v986
    %1057 = vmatprep.subr.bf16.mxu0 0
    %1058 = vmatpush1.bf16.msra.mxu0 %v985
    %1059 = vmatprep.subr.bf16.mxu0 0
    %1060 = vmatpush1.bf16.msra.mxu0 %v984
    %1061 = vmatprep.subr.bf16.mxu0 0
    %1062 = vmatpush1.bf16.msra.mxu0 %v983
    %1063 = vmatprep.subr.bf16.mxu0 0
    %1064 = vmatpush2.bf16.msra.mxu0 %v998
    %1065 = vmatprep.subr.bf16.mxu0 0
    %1066 = vmatpush2.bf16.msra.mxu0 %v997
    %1067 = vmatprep.subr.bf16.mxu0 0
    %1068 = vmatpush2.bf16.msra.mxu0 %v996
    %1069 = vmatprep.subr.bf16.mxu0 0
    %1070 = vmatpush2.bf16.msra.mxu0 %v995
    %1071 = vmatprep.subr.bf16.mxu0 0
    %1072 = vmatpush2.bf16.msra.mxu0 %v994
    %1073 = vmatprep.subr.bf16.mxu0 0
    %1074 = vmatpush2.bf16.msra.mxu0 %v993
    %1075 = vmatprep.subr.bf16.mxu0 0
    %1076 = vmatpush2.bf16.msra.mxu0 %v992
    %1077 = vmatprep.subr.bf16.mxu0 0
    %1078 = vmatpush2.bf16.msra.mxu0 %v991
    %1079 = vmatprep.mubr.bf16.mxu0 %v175
    %1080 = vmatmul.mubr.bf16.gmra.mxu0 %v167
    %v1081 = vpop.f32.mrf.mxu0
    %v1082 = vadd.f32 0.0, %v1081
    %v1083 = vpop.f32.mrf.mxu0
    %v1084 = vpop.f32.mrf.mxu0
    %v1085 = vpop.f32.mrf.mxu0
    %1086 = vdwg.mxu0
    %1087 = vmatprep.subr.bf16.mxu0 0
    %1088 = vmatpush1.bf16.msra.mxu0 %v1006
    %1089 = vmatprep.subr.bf16.mxu0 0
    %1090 = vmatpush1.bf16.msra.mxu0 %v1005
    %1091 = vmatprep.subr.bf16.mxu0 0
    %1092 = vmatpush1.bf16.msra.mxu0 %v1004
    %1093 = vmatprep.subr.bf16.mxu0 0
    %1094 = vmatpush1.bf16.msra.mxu0 %v1003
    %1095 = vmatprep.subr.bf16.mxu0 0
    %1096 = vmatpush1.bf16.msra.mxu0 %v1002
    %1097 = vmatprep.subr.bf16.mxu0 0
    %1098 = vmatpush1.bf16.msra.mxu0 %v1001
    %1099 = vmatprep.subr.bf16.mxu0 0
    %1100 = vmatpush1.bf16.msra.mxu0 %v1000
    %1101 = vmatprep.subr.bf16.mxu0 0
    %1102 = vmatpush1.bf16.msra.mxu0 %v999
    %1103 = vmatprep.subr.bf16.mxu0 0
    %1104 = vmatpush2.bf16.msra.mxu0 %v1014
    %1105 = vmatprep.subr.bf16.mxu0 0
    %1106 = vmatpush2.bf16.msra.mxu0 %v1013
    %1107 = vmatprep.subr.bf16.mxu0 0
    %1108 = vmatpush2.bf16.msra.mxu0 %v1012
    %1109 = vmatprep.subr.bf16.mxu0 0
    %1110 = vmatpush2.bf16.msra.mxu0 %v1011
    %1111 = vmatprep.subr.bf16.mxu0 0
    %1112 = vmatpush2.bf16.msra.mxu0 %v1010
    %1113 = vmatprep.subr.bf16.mxu0 0
    %1114 = vmatpush2.bf16.msra.mxu0 %v1009
    %1115 = vmatprep.subr.bf16.mxu0 0
    %1116 = vmatpush2.bf16.msra.mxu0 %v1008
    %1117 = vmatprep.subr.bf16.mxu0 0
    %1118 = vmatpush2.bf16.msra.mxu0 %v1007
    %1119 = vmatprep.mubr.bf16.mxu0 %v176
    %1120 = vmatmul.mubr.bf16.gmra.mxu0 %v174
    %v1121 = vpop.f32.mrf.mxu0
    %v1122 = vadd.f32 %v1082, %v1121
    %v1123 = vpop.f32.mrf.mxu0
    %v1124 = vpop.f32.mrf.mxu0
    %v1125 = vpop.f32.mrf.mxu0
    %1126 = vdwg.mxu0
    %s1127 = scalar_lea.vmem [#allocation5], 768
    %v1128 = vld [vmem:[%s1127] sm:$0xf]
    %v1129 = vld [vmem:[%s1127 + $0x4] sm:$0xf]
    %v1130 = vld [vmem:[%s1127 + $0x8] sm:$0xf]
    %v1131 = vld [vmem:[%s1127 + $0xc] sm:$0xf]
    %v1132 = vld [vmem:[%s1127 + $0x10] sm:$0xf]
    %v1133 = vld [vmem:[%s1127 + $0x14] sm:$0xf]
    %v1134 = vld [vmem:[%s1127 + $0x18] sm:$0xf]
    %v1135 = vld [vmem:[%s1127 + $0x1c] sm:$0xf]
    %v1136 = vld [vmem:[%s1127 + $0x20] sm:$0xf]
    %v1137 = vld [vmem:[%s1127 + $0x24] sm:$0xf]
    %v1138 = vld [vmem:[%s1127 + $0x28] sm:$0xf]
    %v1139 = vld [vmem:[%s1127 + $0x2c] sm:$0xf]
    %v1140 = vld [vmem:[%s1127 + $0x30] sm:$0xf]
    %v1141 = vld [vmem:[%s1127 + $0x34] sm:$0xf]
    %v1142 = vld [vmem:[%s1127 + $0x38] sm:$0xf]
    %v1143 = vld [vmem:[%s1127 + $0x3c] sm:$0xf]
    %v1144 = vld [vmem:[%s1127 + $0x40] sm:$0xf]
    %v1145 = vld [vmem:[%s1127 + $0x44] sm:$0xf]
    %v1146 = vld [vmem:[%s1127 + $0x48] sm:$0xf]
    %v1147 = vld [vmem:[%s1127 + $0x4c] sm:$0xf]
    %v1148 = vld [vmem:[%s1127 + $0x50] sm:$0xf]
    %v1149 = vld [vmem:[%s1127 + $0x54] sm:$0xf]
    %v1150 = vld [vmem:[%s1127 + $0x58] sm:$0xf]
    %v1151 = vld [vmem:[%s1127 + $0x5c] sm:$0xf]
    %v1152 = vld [vmem:[%s1127 + $0x60] sm:$0xf]
    %v1153 = vld [vmem:[%s1127 + $0x64] sm:$0xf]
    %v1154 = vld [vmem:[%s1127 + $0x68] sm:$0xf]
    %v1155 = vld [vmem:[%s1127 + $0x6c] sm:$0xf]
    %v1156 = vld [vmem:[%s1127 + $0x70] sm:$0xf]
    %v1157 = vld [vmem:[%s1127 + $0x74] sm:$0xf]
    %v1158 = vld [vmem:[%s1127 + $0x78] sm:$0xf]
    %v1159 = vld [vmem:[%s1127 + $0x7c] sm:$0xf]
    %v1160 = vld [vmem:[%s1127 + $0x80] sm:$0xf]
    %v1161 = vld [vmem:[%s1127 + $0x84] sm:$0xf]
    %v1162 = vld [vmem:[%s1127 + $0x88] sm:$0xf]
    %v1163 = vld [vmem:[%s1127 + $0x8c] sm:$0xf]
    %v1164 = vld [vmem:[%s1127 + $0x90] sm:$0xf]
    %v1165 = vld [vmem:[%s1127 + $0x94] sm:$0xf]
    %v1166 = vld [vmem:[%s1127 + $0x98] sm:$0xf]
    %v1167 = vld [vmem:[%s1127 + $0x9c] sm:$0xf]
    %v1168 = vld [vmem:[%s1127 + $0xa0] sm:$0xf]
    %v1169 = vld [vmem:[%s1127 + $0xa4] sm:$0xf]
    %v1170 = vld [vmem:[%s1127 + $0xa8] sm:$0xf]
    %v1171 = vld [vmem:[%s1127 + $0xac] sm:$0xf]
    %v1172 = vld [vmem:[%s1127 + $0xb0] sm:$0xf]
    %v1173 = vld [vmem:[%s1127 + $0xb4] sm:$0xf]
    %v1174 = vld [vmem:[%s1127 + $0xb8] sm:$0xf]
    %v1175 = vld [vmem:[%s1127 + $0xbc] sm:$0xf]
    %v1176 = vld [vmem:[%s1127 + $0xc0] sm:$0xf]
    %v1177 = vld [vmem:[%s1127 + $0xc4] sm:$0xf]
    %v1178 = vld [vmem:[%s1127 + $0xc8] sm:$0xf]
    %v1179 = vld [vmem:[%s1127 + $0xcc] sm:$0xf]
    %v1180 = vld [vmem:[%s1127 + $0xd0] sm:$0xf]
    %v1181 = vld [vmem:[%s1127 + $0xd4] sm:$0xf]
    %v1182 = vld [vmem:[%s1127 + $0xd8] sm:$0xf]
    %v1183 = vld [vmem:[%s1127 + $0xdc] sm:$0xf]
    %v1184 = vld [vmem:[%s1127 + $0xe0] sm:$0xf]
    %v1185 = vld [vmem:[%s1127 + $0xe4] sm:$0xf]
    %v1186 = vld [vmem:[%s1127 + $0xe8] sm:$0xf]
    %v1187 = vld [vmem:[%s1127 + $0xec] sm:$0xf]
    %v1188 = vld [vmem:[%s1127 + $0xf0] sm:$0xf]
    %v1189 = vld [vmem:[%s1127 + $0xf4] sm:$0xf]
    %v1190 = vld [vmem:[%s1127 + $0xf8] sm:$0xf]
    %v1191 = vld [vmem:[%s1127 + $0xfc] sm:$0xf]
    %v1256 = vunpack.c.l.b16 %v1128
    %v1257 = vunpack.c.l.b16 %v1129
    %v1258 = vunpack.c.l.b16 %v1130
    %v1259 = vunpack.c.l.b16 %v1131
    %v1260 = vunpack.c.l.b16 %v1132
    %v1261 = vunpack.c.l.b16 %v1133
    %v1262 = vunpack.c.l.b16 %v1134
    %v1263 = vunpack.c.l.b16 %v1135
    %v1264 = vunpack.c.l.b16 %v1136
    %v1265 = vunpack.c.l.b16 %v1137
    %v1266 = vunpack.c.l.b16 %v1138
    %v1267 = vunpack.c.l.b16 %v1139
    %v1268 = vunpack.c.l.b16 %v1140
    %v1269 = vunpack.c.l.b16 %v1141
    %v1270 = vunpack.c.l.b16 %v1142
    %v1271 = vunpack.c.l.b16 %v1143
    %v1272 = vunpack.c.l.b16 %v1144
    %v1273 = vunpack.c.l.b16 %v1145
    %v1274 = vunpack.c.l.b16 %v1146
    %v1275 = vunpack.c.l.b16 %v1147
    %v1276 = vunpack.c.l.b16 %v1148
    %v1277 = vunpack.c.l.b16 %v1149
    %v1278 = vunpack.c.l.b16 %v1150
    %v1279 = vunpack.c.l.b16 %v1151
    %v1280 = vunpack.c.l.b16 %v1152
    %v1281 = vunpack.c.l.b16 %v1153
    %v1282 = vunpack.c.l.b16 %v1154
    %v1283 = vunpack.c.l.b16 %v1155
    %v1284 = vunpack.c.l.b16 %v1156
    %v1285 = vunpack.c.l.b16 %v1157
    %v1286 = vunpack.c.l.b16 %v1158
    %v1287 = vunpack.c.l.b16 %v1159
    %v1288 = vunpack.c.l.b16 %v1160
    %v1289 = vunpack.c.l.b16 %v1161
    %v1290 = vunpack.c.l.b16 %v1162
    %v1291 = vunpack.c.l.b16 %v1163
    %v1292 = vunpack.c.l.b16 %v1164
    %v1293 = vunpack.c.l.b16 %v1165
    %v1294 = vunpack.c.l.b16 %v1166
    %v1295 = vunpack.c.l.b16 %v1167
    %v1296 = vunpack.c.l.b16 %v1168
    %v1297 = vunpack.c.l.b16 %v1169
    %v1298 = vunpack.c.l.b16 %v1170
    %v1299 = vunpack.c.l.b16 %v1171
    %v1300 = vunpack.c.l.b16 %v1172
    %v1301 = vunpack.c.l.b16 %v1173
    %v1302 = vunpack.c.l.b16 %v1174
    %v1303 = vunpack.c.l.b16 %v1175
    %v1304 = vunpack.c.l.b16 %v1176
    %v1305 = vunpack.c.l.b16 %v1177
    %v1306 = vunpack.c.l.b16 %v1178
    %v1307 = vunpack.c.l.b16 %v1179
    %v1308 = vunpack.c.l.b16 %v1180
    %v1309 = vunpack.c.l.b16 %v1181
    %v1310 = vunpack.c.l.b16 %v1182
    %v1311 = vunpack.c.l.b16 %v1183
    %v1312 = vunpack.c.l.b16 %v1184
    %v1313 = vunpack.c.l.b16 %v1185
    %v1314 = vunpack.c.l.b16 %v1186
    %v1315 = vunpack.c.l.b16 %v1187
    %v1316 = vunpack.c.l.b16 %v1188
    %v1317 = vunpack.c.l.b16 %v1189
    %v1318 = vunpack.c.l.b16 %v1190
    %v1319 = vunpack.c.l.b16 %v1191
    %v1320 = vpack.c.b16 %v1257, %v1256
    %v1321 = vpack.c.b16 %v1259, %v1258
    %v1322 = vpack.c.b16 %v1261, %v1260
    %v1323 = vpack.c.b16 %v1263, %v1262
    %v1324 = vpack.c.b16 %v1265, %v1264
    %v1325 = vpack.c.b16 %v1267, %v1266
    %v1326 = vpack.c.b16 %v1269, %v1268
    %v1327 = vpack.c.b16 %v1271, %v1270
    %v1328 = vpack.c.b16 %v1273, %v1272
    %v1329 = vpack.c.b16 %v1275, %v1274
    %v1330 = vpack.c.b16 %v1277, %v1276
    %v1331 = vpack.c.b16 %v1279, %v1278
    %v1332 = vpack.c.b16 %v1281, %v1280
    %v1333 = vpack.c.b16 %v1283, %v1282
    %v1334 = vpack.c.b16 %v1285, %v1284
    %v1335 = vpack.c.b16 %v1287, %v1286
    %v1336 = vpack.c.b16 %v1289, %v1288
    %v1337 = vpack.c.b16 %v1291, %v1290
    %v1338 = vpack.c.b16 %v1293, %v1292
    %v1339 = vpack.c.b16 %v1295, %v1294
    %v1340 = vpack.c.b16 %v1297, %v1296
    %v1341 = vpack.c.b16 %v1299, %v1298
    %v1342 = vpack.c.b16 %v1301, %v1300
    %v1343 = vpack.c.b16 %v1303, %v1302
    %v1344 = vpack.c.b16 %v1305, %v1304
    %v1345 = vpack.c.b16 %v1307, %v1306
    %v1346 = vpack.c.b16 %v1309, %v1308
    %v1347 = vpack.c.b16 %v1311, %v1310
    %v1348 = vpack.c.b16 %v1313, %v1312
    %v1349 = vpack.c.b16 %v1315, %v1314
    %v1350 = vpack.c.b16 %v1317, %v1316
    %v1351 = vpack.c.b16 %v1319, %v1318
    %1384 = vmatprep.subr.bf16.mxu0 0
    %1385 = vmatpush1.bf16.msra.mxu0 %v1327
    %1386 = vmatprep.subr.bf16.mxu0 0
    %1387 = vmatpush1.bf16.msra.mxu0 %v1326
    %1388 = vmatprep.subr.bf16.mxu0 0
    %1389 = vmatpush1.bf16.msra.mxu0 %v1325
    %1390 = vmatprep.subr.bf16.mxu0 0
    %1391 = vmatpush1.bf16.msra.mxu0 %v1324
    %1392 = vmatprep.subr.bf16.mxu0 0
    %1393 = vmatpush1.bf16.msra.mxu0 %v1323
    %1394 = vmatprep.subr.bf16.mxu0 0
    %1395 = vmatpush1.bf16.msra.mxu0 %v1322
    %1396 = vmatprep.subr.bf16.mxu0 0
    %1397 = vmatpush1.bf16.msra.mxu0 %v1321
    %1398 = vmatprep.subr.bf16.mxu0 0
    %1399 = vmatpush1.bf16.msra.mxu0 %v1320
    %1400 = vmatprep.subr.bf16.mxu0 0
    %1401 = vmatpush2.bf16.msra.mxu0 %v1335
    %1402 = vmatprep.subr.bf16.mxu0 0
    %1403 = vmatpush2.bf16.msra.mxu0 %v1334
    %1404 = vmatprep.subr.bf16.mxu0 0
    %1405 = vmatpush2.bf16.msra.mxu0 %v1333
    %1406 = vmatprep.subr.bf16.mxu0 0
    %1407 = vmatpush2.bf16.msra.mxu0 %v1332
    %1408 = vmatprep.subr.bf16.mxu0 0
    %1409 = vmatpush2.bf16.msra.mxu0 %v1331
    %1410 = vmatprep.subr.bf16.mxu0 0
    %1411 = vmatpush2.bf16.msra.mxu0 %v1330
    %1412 = vmatprep.subr.bf16.mxu0 0
    %1413 = vmatpush2.bf16.msra.mxu0 %v1329
    %1414 = vmatprep.subr.bf16.mxu0 0
    %1415 = vmatpush2.bf16.msra.mxu0 %v1328
    %1416 = vmatprep.mubr.bf16.mxu0 %v175
    %1417 = vmatmul.mubr.bf16.gmra.mxu0 %v167
    %v1418 = vpop.f32.mrf.mxu0
    %v1419 = vadd.f32 0.0, %v1418
    %v1420 = vpop.f32.mrf.mxu0
    %v1421 = vpop.f32.mrf.mxu0
    %v1422 = vpop.f32.mrf.mxu0
    %1423 = vdwg.mxu0
    %1424 = vmatprep.subr.bf16.mxu0 0
    %1425 = vmatpush1.bf16.msra.mxu0 %v1343
    %1426 = vmatprep.subr.bf16.mxu0 0
    %1427 = vmatpush1.bf16.msra.mxu0 %v1342
    %1428 = vmatprep.subr.bf16.mxu0 0
    %1429 = vmatpush1.bf16.msra.mxu0 %v1341
    %1430 = vmatprep.subr.bf16.mxu0 0
    %1431 = vmatpush1.bf16.msra.mxu0 %v1340
    %1432 = vmatprep.subr.bf16.mxu0 0
    %1433 = vmatpush1.bf16.msra.mxu0 %v1339
    %1434 = vmatprep.subr.bf16.mxu0 0
    %1435 = vmatpush1.bf16.msra.mxu0 %v1338
    %1436 = vmatprep.subr.bf16.mxu0 0
    %1437 = vmatpush1.bf16.msra.mxu0 %v1337
    %1438 = vmatprep.subr.bf16.mxu0 0
    %1439 = vmatpush1.bf16.msra.mxu0 %v1336
    %1440 = vmatprep.subr.bf16.mxu0 0
    %1441 = vmatpush2.bf16.msra.mxu0 %v1351
    %1442 = vmatprep.subr.bf16.mxu0 0
    %1443 = vmatpush2.bf16.msra.mxu0 %v1350
    %1444 = vmatprep.subr.bf16.mxu0 0
    %1445 = vmatpush2.bf16.msra.mxu0 %v1349
    %1446 = vmatprep.subr.bf16.mxu0 0
    %1447 = vmatpush2.bf16.msra.mxu0 %v1348
    %1448 = vmatprep.subr.bf16.mxu0 0
    %1449 = vmatpush2.bf16.msra.mxu0 %v1347
    %1450 = vmatprep.subr.bf16.mxu0 0
    %1451 = vmatpush2.bf16.msra.mxu0 %v1346
    %1452 = vmatprep.subr.bf16.mxu0 0
    %1453 = vmatpush2.bf16.msra.mxu0 %v1345
    %1454 = vmatprep.subr.bf16.mxu0 0
    %1455 = vmatpush2.bf16.msra.mxu0 %v1344
    %1456 = vmatprep.mubr.bf16.mxu0 %v176
    %1457 = vmatmul.mubr.bf16.gmra.mxu0 %v174
    %v1458 = vpop.f32.mrf.mxu0
    %v1459 = vadd.f32 %v1419, %v1458
    %v1460 = vpop.f32.mrf.mxu0
    %v1461 = vpop.f32.mrf.mxu0
    %v1462 = vpop.f32.mrf.mxu0
    %1463 = vdwg.mxu0
    %s1464 = scalar_lea.vmem [#allocation5], 1024
    %v1465 = vld [vmem:[%s1464] sm:$0xf]
    %v1466 = vld [vmem:[%s1464 + $0x4] sm:$0xf]
    %v1467 = vld [vmem:[%s1464 + $0x8] sm:$0xf]
    %v1468 = vld [vmem:[%s1464 + $0xc] sm:$0xf]
    %v1469 = vld [vmem:[%s1464 + $0x10] sm:$0xf]
    %v1470 = vld [vmem:[%s1464 + $0x14] sm:$0xf]
    %v1471 = vld [vmem:[%s1464 + $0x18] sm:$0xf]
    %v1472 = vld [vmem:[%s1464 + $0x1c] sm:$0xf]
    %v1473 = vld [vmem:[%s1464 + $0x20] sm:$0xf]
    %v1474 = vld [vmem:[%s1464 + $0x24] sm:$0xf]
    %v1475 = vld [vmem:[%s1464 + $0x28] sm:$0xf]
    %v1476 = vld [vmem:[%s1464 + $0x2c] sm:$0xf]
    %v1477 = vld [vmem:[%s1464 + $0x30] sm:$0xf]
    %v1478 = vld [vmem:[%s1464 + $0x34] sm:$0xf]
    %v1479 = vld [vmem:[%s1464 + $0x38] sm:$0xf]
    %v1480 = vld [vmem:[%s1464 + $0x3c] sm:$0xf]
    %v1481 = vld [vmem:[%s1464 + $0x40] sm:$0xf]
    %v1482 = vld [vmem:[%s1464 + $0x44] sm:$0xf]
    %v1483 = vld [vmem:[%s1464 + $0x48] sm:$0xf]
    %v1484 = vld [vmem:[%s1464 + $0x4c] sm:$0xf]
    %v1485 = vld [vmem:[%s1464 + $0x50] sm:$0xf]
    %v1486 = vld [vmem:[%s1464 + $0x54] sm:$0xf]
    %v1487 = vld [vmem:[%s1464 + $0x58] sm:$0xf]
    %v1488 = vld [vmem:[%s1464 + $0x5c] sm:$0xf]
    %v1489 = vld [vmem:[%s1464 + $0x60] sm:$0xf]
    %v1490 = vld [vmem:[%s1464 + $0x64] sm:$0xf]
    %v1491 = vld [vmem:[%s1464 + $0x68] sm:$0xf]
    %v1492 = vld [vmem:[%s1464 + $0x6c] sm:$0xf]
    %v1493 = vld [vmem:[%s1464 + $0x70] sm:$0xf]
    %v1494 = vld [vmem:[%s1464 + $0x74] sm:$0xf]
    %v1495 = vld [vmem:[%s1464 + $0x78] sm:$0xf]
    %v1496 = vld [vmem:[%s1464 + $0x7c] sm:$0xf]
    %v1497 = vld [vmem:[%s1464 + $0x80] sm:$0xf]
    %v1498 = vld [vmem:[%s1464 + $0x84] sm:$0xf]
    %v1499 = vld [vmem:[%s1464 + $0x88] sm:$0xf]
    %v1500 = vld [vmem:[%s1464 + $0x8c] sm:$0xf]
    %v1501 = vld [vmem:[%s1464 + $0x90] sm:$0xf]
    %v1502 = vld [vmem:[%s1464 + $0x94] sm:$0xf]
    %v1503 = vld [vmem:[%s1464 + $0x98] sm:$0xf]
    %v1504 = vld [vmem:[%s1464 + $0x9c] sm:$0xf]
    %v1505 = vld [vmem:[%s1464 + $0xa0] sm:$0xf]
    %v1506 = vld [vmem:[%s1464 + $0xa4] sm:$0xf]
    %v1507 = vld [vmem:[%s1464 + $0xa8] sm:$0xf]
    %v1508 = vld [vmem:[%s1464 + $0xac] sm:$0xf]
    %v1509 = vld [vmem:[%s1464 + $0xb0] sm:$0xf]
    %v1510 = vld [vmem:[%s1464 + $0xb4] sm:$0xf]
    %v1511 = vld [vmem:[%s1464 + $0xb8] sm:$0xf]
    %v1512 = vld [vmem:[%s1464 + $0xbc] sm:$0xf]
    %v1513 = vld [vmem:[%s1464 + $0xc0] sm:$0xf]
    %v1514 = vld [vmem:[%s1464 + $0xc4] sm:$0xf]
    %v1515 = vld [vmem:[%s1464 + $0xc8] sm:$0xf]
    %v1516 = vld [vmem:[%s1464 + $0xcc] sm:$0xf]
    %v1517 = vld [vmem:[%s1464 + $0xd0] sm:$0xf]
    %v1518 = vld [vmem:[%s1464 + $0xd4] sm:$0xf]
    %v1519 = vld [vmem:[%s1464 + $0xd8] sm:$0xf]
    %v1520 = vld [vmem:[%s1464 + $0xdc] sm:$0xf]
    %v1521 = vld [vmem:[%s1464 + $0xe0] sm:$0xf]
    %v1522 = vld [vmem:[%s1464 + $0xe4] sm:$0xf]
    %v1523 = vld [vmem:[%s1464 + $0xe8] sm:$0xf]
    %v1524 = vld [vmem:[%s1464 + $0xec] sm:$0xf]
    %v1525 = vld [vmem:[%s1464 + $0xf0] sm:$0xf]
    %v1526 = vld [vmem:[%s1464 + $0xf4] sm:$0xf]
    %v1527 = vld [vmem:[%s1464 + $0xf8] sm:$0xf]
    %v1528 = vld [vmem:[%s1464 + $0xfc] sm:$0xf]
    %v1593 = vunpack.c.l.b16 %v1465
    %v1594 = vunpack.c.l.b16 %v1466
    %v1595 = vunpack.c.l.b16 %v1467
    %v1596 = vunpack.c.l.b16 %v1468
    %v1597 = vunpack.c.l.b16 %v1469
    %v1598 = vunpack.c.l.b16 %v1470
    %v1599 = vunpack.c.l.b16 %v1471
    %v1600 = vunpack.c.l.b16 %v1472
    %v1601 = vunpack.c.l.b16 %v1473
    %v1602 = vunpack.c.l.b16 %v1474
    %v1603 = vunpack.c.l.b16 %v1475
    %v1604 = vunpack.c.l.b16 %v1476
    %v1605 = vunpack.c.l.b16 %v1477
    %v1606 = vunpack.c.l.b16 %v1478
    %v1607 = vunpack.c.l.b16 %v1479
    %v1608 = vunpack.c.l.b16 %v1480
    %v1609 = vunpack.c.l.b16 %v1481
    %v1610 = vunpack.c.l.b16 %v1482
    %v1611 = vunpack.c.l.b16 %v1483
    %v1612 = vunpack.c.l.b16 %v1484
    %v1613 = vunpack.c.l.b16 %v1485
    %v1614 = vunpack.c.l.b16 %v1486
    %v1615 = vunpack.c.l.b16 %v1487
    %v1616 = vunpack.c.l.b16 %v1488
    %v1617 = vunpack.c.l.b16 %v1489
    %v1618 = vunpack.c.l.b16 %v1490
    %v1619 = vunpack.c.l.b16 %v1491
    %v1620 = vunpack.c.l.b16 %v1492
    %v1621 = vunpack.c.l.b16 %v1493
    %v1622 = vunpack.c.l.b16 %v1494
    %v1623 = vunpack.c.l.b16 %v1495
    %v1624 = vunpack.c.l.b16 %v1496
    %v1625 = vunpack.c.l.b16 %v1497
    %v1626 = vunpack.c.l.b16 %v1498
    %v1627 = vunpack.c.l.b16 %v1499
    %v1628 = vunpack.c.l.b16 %v1500
    %v1629 = vunpack.c.l.b16 %v1501
    %v1630 = vunpack.c.l.b16 %v1502
    %v1631 = vunpack.c.l.b16 %v1503
    %v1632 = vunpack.c.l.b16 %v1504
    %v1633 = vunpack.c.l.b16 %v1505
    %v1634 = vunpack.c.l.b16 %v1506
    %v1635 = vunpack.c.l.b16 %v1507
    %v1636 = vunpack.c.l.b16 %v1508
    %v1637 = vunpack.c.l.b16 %v1509
    %v1638 = vunpack.c.l.b16 %v1510
    %v1639 = vunpack.c.l.b16 %v1511
    %v1640 = vunpack.c.l.b16 %v1512
    %v1641 = vunpack.c.l.b16 %v1513
    %v1642 = vunpack.c.l.b16 %v1514
    %v1643 = vunpack.c.l.b16 %v1515
    %v1644 = vunpack.c.l.b16 %v1516
    %v1645 = vunpack.c.l.b16 %v1517
    %v1646 = vunpack.c.l.b16 %v1518
    %v1647 = vunpack.c.l.b16 %v1519
    %v1648 = vunpack.c.l.b16 %v1520
    %v1649 = vunpack.c.l.b16 %v1521
    %v1650 = vunpack.c.l.b16 %v1522
    %v1651 = vunpack.c.l.b16 %v1523
    %v1652 = vunpack.c.l.b16 %v1524
    %v1653 = vunpack.c.l.b16 %v1525
    %v1654 = vunpack.c.l.b16 %v1526
    %v1655 = vunpack.c.l.b16 %v1527
    %v1656 = vunpack.c.l.b16 %v1528
    %v1657 = vpack.c.b16 %v1594, %v1593
    %v1658 = vpack.c.b16 %v1596, %v1595
    %v1659 = vpack.c.b16 %v1598, %v1597
    %v1660 = vpack.c.b16 %v1600, %v1599
    %v1661 = vpack.c.b16 %v1602, %v1601
    %v1662 = vpack.c.b16 %v1604, %v1603
    %v1663 = vpack.c.b16 %v1606, %v1605
    %v1664 = vpack.c.b16 %v1608, %v1607
    %v1665 = vpack.c.b16 %v1610, %v1609
    %v1666 = vpack.c.b16 %v1612, %v1611
    %v1667 = vpack.c.b16 %v1614, %v1613
    %v1668 = vpack.c.b16 %v1616, %v1615
    %v1669 = vpack.c.b16 %v1618, %v1617
    %v1670 = vpack.c.b16 %v1620, %v1619
    %v1671 = vpack.c.b16 %v1622, %v1621
    %v1672 = vpack.c.b16 %v1624, %v1623
    %v1673 = vpack.c.b16 %v1626, %v1625
    %v1674 = vpack.c.b16 %v1628, %v1627
    %v1675 = vpack.c.b16 %v1630, %v1629
    %v1676 = vpack.c.b16 %v1632, %v1631
    %v1677 = vpack.c.b16 %v1634, %v1633
    %v1678 = vpack.c.b16 %v1636, %v1635
    %v1679 = vpack.c.b16 %v1638, %v1637
    %v1680 = vpack.c.b16 %v1640, %v1639
    %v1681 = vpack.c.b16 %v1642, %v1641
    %v1682 = vpack.c.b16 %v1644, %v1643
    %v1683 = vpack.c.b16 %v1646, %v1645
    %v1684 = vpack.c.b16 %v1648, %v1647
    %v1685 = vpack.c.b16 %v1650, %v1649
    %v1686 = vpack.c.b16 %v1652, %v1651
    %v1687 = vpack.c.b16 %v1654, %v1653
    %v1688 = vpack.c.b16 %v1656, %v1655
    %1721 = vmatprep.subr.bf16.mxu0 0
    %1722 = vmatpush1.bf16.msra.mxu0 %v1664
    %1723 = vmatprep.subr.bf16.mxu0 0
    %1724 = vmatpush1.bf16.msra.mxu0 %v1663
    %1725 = vmatprep.subr.bf16.mxu0 0
    %1726 = vmatpush1.bf16.msra.mxu0 %v1662
    %1727 = vmatprep.subr.bf16.mxu0 0
    %1728 = vmatpush1.bf16.msra.mxu0 %v1661
    %1729 = vmatprep.subr.bf16.mxu0 0
    %1730 = vmatpush1.bf16.msra.mxu0 %v1660
    %1731 = vmatprep.subr.bf16.mxu0 0
    %1732 = vmatpush1.bf16.msra.mxu0 %v1659
    %1733 = vmatprep.subr.bf16.mxu0 0
    %1734 = vmatpush1.bf16.msra.mxu0 %v1658
    %1735 = vmatprep.subr.bf16.mxu0 0
    %1736 = vmatpush1.bf16.msra.mxu0 %v1657
    %1737 = vmatprep.subr.bf16.mxu0 0
    %1738 = vmatpush2.bf16.msra.mxu0 %v1672
    %1739 = vmatprep.subr.bf16.mxu0 0
    %1740 = vmatpush2.bf16.msra.mxu0 %v1671
    %1741 = vmatprep.subr.bf16.mxu0 0
    %1742 = vmatpush2.bf16.msra.mxu0 %v1670
    %1743 = vmatprep.subr.bf16.mxu0 0
    %1744 = vmatpush2.bf16.msra.mxu0 %v1669
    %1745 = vmatprep.subr.bf16.mxu0 0
    %1746 = vmatpush2.bf16.msra.mxu0 %v1668
    %1747 = vmatprep.subr.bf16.mxu0 0
    %1748 = vmatpush2.bf16.msra.mxu0 %v1667
    %1749 = vmatprep.subr.bf16.mxu0 0
    %1750 = vmatpush2.bf16.msra.mxu0 %v1666
    %1751 = vmatprep.subr.bf16.mxu0 0
    %1752 = vmatpush2.bf16.msra.mxu0 %v1665
    %1753 = vmatprep.mubr.bf16.mxu0 %v175
    %1754 = vmatmul.mubr.bf16.gmra.mxu0 %v167
    %v1755 = vpop.f32.mrf.mxu0
    %v1756 = vadd.f32 0.0, %v1755
    %v1757 = vpop.f32.mrf.mxu0
    %v1758 = vpop.f32.mrf.mxu0
    %v1759 = vpop.f32.mrf.mxu0
    %1760 = vdwg.mxu0
    %1761 = vmatprep.subr.bf16.mxu0 0
    %1762 = vmatpush1.bf16.msra.mxu0 %v1680
    %1763 = vmatprep.subr.bf16.mxu0 0
    %1764 = vmatpush1.bf16.msra.mxu0 %v1679
    %1765 = vmatprep.subr.bf16.mxu0 0
    %1766 = vmatpush1.bf16.msra.mxu0 %v1678
    %1767 = vmatprep.subr.bf16.mxu0 0
    %1768 = vmatpush1.bf16.msra.mxu0 %v1677
    %1769 = vmatprep.subr.bf16.mxu0 0
    %1770 = vmatpush1.bf16.msra.mxu0 %v1676
    %1771 = vmatprep.subr.bf16.mxu0 0
    %1772 = vmatpush1.bf16.msra.mxu0 %v1675
    %1773 = vmatprep.subr.bf16.mxu0 0
    %1774 = vmatpush1.bf16.msra.mxu0 %v1674
    %1775 = vmatprep.subr.bf16.mxu0 0
    %1776 = vmatpush1.bf16.msra.mxu0 %v1673
    %1777 = vmatprep.subr.bf16.mxu0 0
    %1778 = vmatpush2.bf16.msra.mxu0 %v1688
    %1779 = vmatprep.subr.bf16.mxu0 0
    %1780 = vmatpush2.bf16.msra.mxu0 %v1687
    %1781 = vmatprep.subr.bf16.mxu0 0
    %1782 = vmatpush2.bf16.msra.mxu0 %v1686
    %1783 = vmatprep.subr.bf16.mxu0 0
    %1784 = vmatpush2.bf16.msra.mxu0 %v1685
    %1785 = vmatprep.subr.bf16.mxu0 0
    %1786 = vmatpush2.bf16.msra.mxu0 %v1684
    %1787 = vmatprep.subr.bf16.mxu0 0
    %1788 = vmatpush2.bf16.msra.mxu0 %v1683
    %1789 = vmatprep.subr.bf16.mxu0 0
    %1790 = vmatpush2.bf16.msra.mxu0 %v1682
    %1791 = vmatprep.subr.bf16.mxu0 0
    %1792 = vmatpush2.bf16.msra.mxu0 %v1681
    %1793 = vmatprep.mubr.bf16.mxu0 %v176
    %1794 = vmatmul.mubr.bf16.gmra.mxu0 %v174
    %v1795 = vpop.f32.mrf.mxu0
    %v1796 = vadd.f32 %v1756, %v1795
    %v1797 = vpop.f32.mrf.mxu0
    %v1798 = vpop.f32.mrf.mxu0
    %v1799 = vpop.f32.mrf.mxu0
    %1800 = vdwg.mxu0
    %s1801 = scalar_lea.vmem [#allocation5], 1280
    %v1802 = vld [vmem:[%s1801] sm:$0xf]
    %v1803 = vld [vmem:[%s1801 + $0x4] sm:$0xf]
    %v1804 = vld [vmem:[%s1801 + $0x8] sm:$0xf]
    %v1805 = vld [vmem:[%s1801 + $0xc] sm:$0xf]
    %v1806 = vld [vmem:[%s1801 + $0x10] sm:$0xf]
    %v1807 = vld [vmem:[%s1801 + $0x14] sm:$0xf]
    %v1808 = vld [vmem:[%s1801 + $0x18] sm:$0xf]
    %v1809 = vld [vmem:[%s1801 + $0x1c] sm:$0xf]
    %v1810 = vld [vmem:[%s1801 + $0x20] sm:$0xf]
    %v1811 = vld [vmem:[%s1801 + $0x24] sm:$0xf]
    %v1812 = vld [vmem:[%s1801 + $0x28] sm:$0xf]
    %v1813 = vld [vmem:[%s1801 + $0x2c] sm:$0xf]
    %v1814 = vld [vmem:[%s1801 + $0x30] sm:$0xf]
    %v1815 = vld [vmem:[%s1801 + $0x34] sm:$0xf]
    %v1816 = vld [vmem:[%s1801 + $0x38] sm:$0xf]
    %v1817 = vld [vmem:[%s1801 + $0x3c] sm:$0xf]
    %v1818 = vld [vmem:[%s1801 + $0x40] sm:$0xf]
    %v1819 = vld [vmem:[%s1801 + $0x44] sm:$0xf]
    %v1820 = vld [vmem:[%s1801 + $0x48] sm:$0xf]
    %v1821 = vld [vmem:[%s1801 + $0x4c] sm:$0xf]
    %v1822 = vld [vmem:[%s1801 + $0x50] sm:$0xf]
    %v1823 = vld [vmem:[%s1801 + $0x54] sm:$0xf]
    %v1824 = vld [vmem:[%s1801 + $0x58] sm:$0xf]
    %v1825 = vld [vmem:[%s1801 + $0x5c] sm:$0xf]
    %v1826 = vld [vmem:[%s1801 + $0x60] sm:$0xf]
    %v1827 = vld [vmem:[%s1801 + $0x64] sm:$0xf]
    %v1828 = vld [vmem:[%s1801 + $0x68] sm:$0xf]
    %v1829 = vld [vmem:[%s1801 + $0x6c] sm:$0xf]
    %v1830 = vld [vmem:[%s1801 + $0x70] sm:$0xf]
    %v1831 = vld [vmem:[%s1801 + $0x74] sm:$0xf]
    %v1832 = vld [vmem:[%s1801 + $0x78] sm:$0xf]
    %v1833 = vld [vmem:[%s1801 + $0x7c] sm:$0xf]
    %v1834 = vld [vmem:[%s1801 + $0x80] sm:$0xf]
    %v1835 = vld [vmem:[%s1801 + $0x84] sm:$0xf]
    %v1836 = vld [vmem:[%s1801 + $0x88] sm:$0xf]
    %v1837 = vld [vmem:[%s1801 + $0x8c] sm:$0xf]
    %v1838 = vld [vmem:[%s1801 + $0x90] sm:$0xf]
    %v1839 = vld [vmem:[%s1801 + $0x94] sm:$0xf]
    %v1840 = vld [vmem:[%s1801 + $0x98] sm:$0xf]
    %v1841 = vld [vmem:[%s1801 + $0x9c] sm:$0xf]
    %v1842 = vld [vmem:[%s1801 + $0xa0] sm:$0xf]
    %v1843 = vld [vmem:[%s1801 + $0xa4] sm:$0xf]
    %v1844 = vld [vmem:[%s1801 + $0xa8] sm:$0xf]
    %v1845 = vld [vmem:[%s1801 + $0xac] sm:$0xf]
    %v1846 = vld [vmem:[%s1801 + $0xb0] sm:$0xf]
    %v1847 = vld [vmem:[%s1801 + $0xb4] sm:$0xf]
    %v1848 = vld [vmem:[%s1801 + $0xb8] sm:$0xf]
    %v1849 = vld [vmem:[%s1801 + $0xbc] sm:$0xf]
    %v1850 = vld [vmem:[%s1801 + $0xc0] sm:$0xf]
    %v1851 = vld [vmem:[%s1801 + $0xc4] sm:$0xf]
    %v1852 = vld [vmem:[%s1801 + $0xc8] sm:$0xf]
    %v1853 = vld [vmem:[%s1801 + $0xcc] sm:$0xf]
    %v1854 = vld [vmem:[%s1801 + $0xd0] sm:$0xf]
    %v1855 = vld [vmem:[%s1801 + $0xd4] sm:$0xf]
    %v1856 = vld [vmem:[%s1801 + $0xd8] sm:$0xf]
    %v1857 = vld [vmem:[%s1801 + $0xdc] sm:$0xf]
    %v1858 = vld [vmem:[%s1801 + $0xe0] sm:$0xf]
    %v1859 = vld [vmem:[%s1801 + $0xe4] sm:$0xf]
    %v1860 = vld [vmem:[%s1801 + $0xe8] sm:$0xf]
    %v1861 = vld [vmem:[%s1801 + $0xec] sm:$0xf]
    %v1862 = vld [vmem:[%s1801 + $0xf0] sm:$0xf]
    %v1863 = vld [vmem:[%s1801 + $0xf4] sm:$0xf]
    %v1864 = vld [vmem:[%s1801 + $0xf8] sm:$0xf]
    %v1865 = vld [vmem:[%s1801 + $0xfc] sm:$0xf]
    %v1930 = vunpack.c.l.b16 %v1802
    %v1931 = vunpack.c.l.b16 %v1803
    %v1932 = vunpack.c.l.b16 %v1804
    %v1933 = vunpack.c.l.b16 %v1805
    %v1934 = vunpack.c.l.b16 %v1806
    %v1935 = vunpack.c.l.b16 %v1807
    %v1936 = vunpack.c.l.b16 %v1808
    %v1937 = vunpack.c.l.b16 %v1809
    %v1938 = vunpack.c.l.b16 %v1810
    %v1939 = vunpack.c.l.b16 %v1811
    %v1940 = vunpack.c.l.b16 %v1812
    %v1941 = vunpack.c.l.b16 %v1813
    %v1942 = vunpack.c.l.b16 %v1814
    %v1943 = vunpack.c.l.b16 %v1815
    %v1944 = vunpack.c.l.b16 %v1816
    %v1945 = vunpack.c.l.b16 %v1817
    %v1946 = vunpack.c.l.b16 %v1818
    %v1947 = vunpack.c.l.b16 %v1819
    %v1948 = vunpack.c.l.b16 %v1820
    %v1949 = vunpack.c.l.b16 %v1821
    %v1950 = vunpack.c.l.b16 %v1822
    %v1951 = vunpack.c.l.b16 %v1823
    %v1952 = vunpack.c.l.b16 %v1824
    %v1953 = vunpack.c.l.b16 %v1825
    %v1954 = vunpack.c.l.b16 %v1826
    %v1955 = vunpack.c.l.b16 %v1827
    %v1956 = vunpack.c.l.b16 %v1828
    %v1957 = vunpack.c.l.b16 %v1829
    %v1958 = vunpack.c.l.b16 %v1830
    %v1959 = vunpack.c.l.b16 %v1831
    %v1960 = vunpack.c.l.b16 %v1832
    %v1961 = vunpack.c.l.b16 %v1833
    %v1962 = vunpack.c.l.b16 %v1834
    %v1963 = vunpack.c.l.b16 %v1835
    %v1964 = vunpack.c.l.b16 %v1836
    %v1965 = vunpack.c.l.b16 %v1837
    %v1966 = vunpack.c.l.b16 %v1838
    %v1967 = vunpack.c.l.b16 %v1839
    %v1968 = vunpack.c.l.b16 %v1840
    %v1969 = vunpack.c.l.b16 %v1841
    %v1970 = vunpack.c.l.b16 %v1842
    %v1971 = vunpack.c.l.b16 %v1843
    %v1972 = vunpack.c.l.b16 %v1844
    %v1973 = vunpack.c.l.b16 %v1845
    %v1974 = vunpack.c.l.b16 %v1846
    %v1975 = vunpack.c.l.b16 %v1847
    %v1976 = vunpack.c.l.b16 %v1848
    %v1977 = vunpack.c.l.b16 %v1849
    %v1978 = vunpack.c.l.b16 %v1850
    %v1979 = vunpack.c.l.b16 %v1851
    %v1980 = vunpack.c.l.b16 %v1852
    %v1981 = vunpack.c.l.b16 %v1853
    %v1982 = vunpack.c.l.b16 %v1854
    %v1983 = vunpack.c.l.b16 %v1855
    %v1984 = vunpack.c.l.b16 %v1856
    %v1985 = vunpack.c.l.b16 %v1857
    %v1986 = vunpack.c.l.b16 %v1858
    %v1987 = vunpack.c.l.b16 %v1859
    %v1988 = vunpack.c.l.b16 %v1860
    %v1989 = vunpack.c.l.b16 %v1861
    %v1990 = vunpack.c.l.b16 %v1862
    %v1991 = vunpack.c.l.b16 %v1863
    %v1992 = vunpack.c.l.b16 %v1864
    %v1993 = vunpack.c.l.b16 %v1865
    %v1994 = vpack.c.b16 %v1931, %v1930
    %v1995 = vpack.c.b16 %v1933, %v1932
    %v1996 = vpack.c.b16 %v1935, %v1934
    %v1997 = vpack.c.b16 %v1937, %v1936
    %v1998 = vpack.c.b16 %v1939, %v1938
    %v1999 = vpack.c.b16 %v1941, %v1940
    %v2000 = vpack.c.b16 %v1943, %v1942
    %v2001 = vpack.c.b16 %v1945, %v1944
    %v2002 = vpack.c.b16 %v1947, %v1946
    %v2003 = vpack.c.b16 %v1949, %v1948
    %v2004 = vpack.c.b16 %v1951, %v1950
    %v2005 = vpack.c.b16 %v1953, %v1952
    %v2006 = vpack.c.b16 %v1955, %v1954
    %v2007 = vpack.c.b16 %v1957, %v1956
    %v2008 = vpack.c.b16 %v1959, %v1958
    %v2009 = vpack.c.b16 %v1961, %v1960
    %v2010 = vpack.c.b16 %v1963, %v1962
    %v2011 = vpack.c.b16 %v1965, %v1964
    %v2012 = vpack.c.b16 %v1967, %v1966
    %v2013 = vpack.c.b16 %v1969, %v1968
    %v2014 = vpack.c.b16 %v1971, %v1970
    %v2015 = vpack.c.b16 %v1973, %v1972
    %v2016 = vpack.c.b16 %v1975, %v1974
    %v2017 = vpack.c.b16 %v1977, %v1976
    %v2018 = vpack.c.b16 %v1979, %v1978
    %v2019 = vpack.c.b16 %v1981, %v1980
    %v2020 = vpack.c.b16 %v1983, %v1982
    %v2021 = vpack.c.b16 %v1985, %v1984
    %v2022 = vpack.c.b16 %v1987, %v1986
    %v2023 = vpack.c.b16 %v1989, %v1988
    %v2024 = vpack.c.b16 %v1991, %v1990
    %v2025 = vpack.c.b16 %v1993, %v1992
    %2058 = vmatprep.subr.bf16.mxu0 0
    %2059 = vmatpush1.bf16.msra.mxu0 %v2001
    %2060 = vmatprep.subr.bf16.mxu0 0
    %2061 = vmatpush1.bf16.msra.mxu0 %v2000
    %2062 = vmatprep.subr.bf16.mxu0 0
    %2063 = vmatpush1.bf16.msra.mxu0 %v1999
    %2064 = vmatprep.subr.bf16.mxu0 0
    %2065 = vmatpush1.bf16.msra.mxu0 %v1998
    %2066 = vmatprep.subr.bf16.mxu0 0
    %2067 = vmatpush1.bf16.msra.mxu0 %v1997
    %2068 = vmatprep.subr.bf16.mxu0 0
    %2069 = vmatpush1.bf16.msra.mxu0 %v1996
    %2070 = vmatprep.subr.bf16.mxu0 0
    %2071 = vmatpush1.bf16.msra.mxu0 %v1995
    %2072 = vmatprep.subr.bf16.mxu0 0
    %2073 = vmatpush1.bf16.msra.mxu0 %v1994
    %2074 = vmatprep.subr.bf16.mxu0 0
    %2075 = vmatpush2.bf16.msra.mxu0 %v2009
    %2076 = vmatprep.subr.bf16.mxu0 0
    %2077 = vmatpush2.bf16.msra.mxu0 %v2008
    %2078 = vmatprep.subr.bf16.mxu0 0
    %2079 = vmatpush2.bf16.msra.mxu0 %v2007
    %2080 = vmatprep.subr.bf16.mxu0 0
    %2081 = vmatpush2.bf16.msra.mxu0 %v2006
    %2082 = vmatprep.subr.bf16.mxu0 0
    %2083 = vmatpush2.bf16.msra.mxu0 %v2005
    %2084 = vmatprep.subr.bf16.mxu0 0
    %2085 = vmatpush2.bf16.msra.mxu0 %v2004
    %2086 = vmatprep.subr.bf16.mxu0 0
    %2087 = vmatpush2.bf16.msra.mxu0 %v2003
    %2088 = vmatprep.subr.bf16.mxu0 0
    %2089 = vmatpush2.bf16.msra.mxu0 %v2002
    %2090 = vmatprep.mubr.bf16.mxu0 %v175
    %2091 = vmatmul.mubr.bf16.gmra.mxu0 %v167
    %v2092 = vpop.f32.mrf.mxu0
    %v2093 = vadd.f32 0.0, %v2092
    %v2094 = vpop.f32.mrf.mxu0
    %v2095 = vpop.f32.mrf.mxu0
    %v2096 = vpop.f32.mrf.mxu0
    %2097 = vdwg.mxu0
    %2098 = vmatprep.subr.bf16.mxu0 0
    %2099 = vmatpush1.bf16.msra.mxu0 %v2017
    %2100 = vmatprep.subr.bf16.mxu0 0
    %2101 = vmatpush1.bf16.msra.mxu0 %v2016
    %2102 = vmatprep.subr.bf16.mxu0 0
    %2103 = vmatpush1.bf16.msra.mxu0 %v2015
    %2104 = vmatprep.subr.bf16.mxu0 0
    %2105 = vmatpush1.bf16.msra.mxu0 %v2014
    %2106 = vmatprep.subr.bf16.mxu0 0
    %2107 = vmatpush1.bf16.msra.mxu0 %v2013
    %2108 = vmatprep.subr.bf16.mxu0 0
    %2109 = vmatpush1.bf16.msra.mxu0 %v2012
    %2110 = vmatprep.subr.bf16.mxu0 0
    %2111 = vmatpush1.bf16.msra.mxu0 %v2011
    %2112 = vmatprep.subr.bf16.mxu0 0
    %2113 = vmatpush1.bf16.msra.mxu0 %v2010
    %2114 = vmatprep.subr.bf16.mxu0 0
    %2115 = vmatpush2.bf16.msra.mxu0 %v2025
    %2116 = vmatprep.subr.bf16.mxu0 0
    %2117 = vmatpush2.bf16.msra.mxu0 %v2024
    %2118 = vmatprep.subr.bf16.mxu0 0
    %2119 = vmatpush2.bf16.msra.mxu0 %v2023
    %2120 = vmatprep.subr.bf16.mxu0 0
    %2121 = vmatpush2.bf16.msra.mxu0 %v2022
    %2122 = vmatprep.subr.bf16.mxu0 0
    %2123 = vmatpush2.bf16.msra.mxu0 %v2021
    %2124 = vmatprep.subr.bf16.mxu0 0
    %2125 = vmatpush2.bf16.msra.mxu0 %v2020
    %2126 = vmatprep.subr.bf16.mxu0 0
    %2127 = vmatpush2.bf16.msra.mxu0 %v2019
    %2128 = vmatprep.subr.bf16.mxu0 0
    %2129 = vmatpush2.bf16.msra.mxu0 %v2018
    %2130 = vmatprep.mubr.bf16.mxu0 %v176
    %2131 = vmatmul.mubr.bf16.gmra.mxu0 %v174
    %v2132 = vpop.f32.mrf.mxu0
    %v2133 = vadd.f32 %v2093, %v2132
    %v2134 = vpop.f32.mrf.mxu0
    %v2135 = vpop.f32.mrf.mxu0
    %v2136 = vpop.f32.mrf.mxu0
    %2137 = vdwg.mxu0
    %s2138 = scalar_lea.vmem [#allocation5], 1536
    %v2139 = vld [vmem:[%s2138] sm:$0xf]
    %v2140 = vld [vmem:[%s2138 + $0x4] sm:$0xf]
    %v2141 = vld [vmem:[%s2138 + $0x8] sm:$0xf]
    %v2142 = vld [vmem:[%s2138 + $0xc] sm:$0xf]
    %v2143 = vld [vmem:[%s2138 + $0x10] sm:$0xf]
    %v2144 = vld [vmem:[%s2138 + $0x14] sm:$0xf]
    %v2145 = vld [vmem:[%s2138 + $0x18] sm:$0xf]
    %v2146 = vld [vmem:[%s2138 + $0x1c] sm:$0xf]
    %v2147 = vld [vmem:[%s2138 + $0x20] sm:$0xf]
    %v2148 = vld [vmem:[%s2138 + $0x24] sm:$0xf]
    %v2149 = vld [vmem:[%s2138 + $0x28] sm:$0xf]
    %v2150 = vld [vmem:[%s2138 + $0x2c] sm:$0xf]
    %v2151 = vld [vmem:[%s2138 + $0x30] sm:$0xf]
    %v2152 = vld [vmem:[%s2138 + $0x34] sm:$0xf]
    %v2153 = vld [vmem:[%s2138 + $0x38] sm:$0xf]
    %v2154 = vld [vmem:[%s2138 + $0x3c] sm:$0xf]
    %v2155 = vld [vmem:[%s2138 + $0x40] sm:$0xf]
    %v2156 = vld [vmem:[%s2138 + $0x44] sm:$0xf]
    %v2157 = vld [vmem:[%s2138 + $0x48] sm:$0xf]
    %v2158 = vld [vmem:[%s2138 + $0x4c] sm:$0xf]
    %v2159 = vld [vmem:[%s2138 + $0x50] sm:$0xf]
    %v2160 = vld [vmem:[%s2138 + $0x54] sm:$0xf]
    %v2161 = vld [vmem:[%s2138 + $0x58] sm:$0xf]
    %v2162 = vld [vmem:[%s2138 + $0x5c] sm:$0xf]
    %v2163 = vld [vmem:[%s2138 + $0x60] sm:$0xf]
    %v2164 = vld [vmem:[%s2138 + $0x64] sm:$0xf]
    %v2165 = vld [vmem:[%s2138 + $0x68] sm:$0xf]
    %v2166 = vld [vmem:[%s2138 + $0x6c] sm:$0xf]
    %v2167 = vld [vmem:[%s2138 + $0x70] sm:$0xf]
    %v2168 = vld [vmem:[%s2138 + $0x74] sm:$0xf]
    %v2169 = vld [vmem:[%s2138 + $0x78] sm:$0xf]
    %v2170 = vld [vmem:[%s2138 + $0x7c] sm:$0xf]
    %v2171 = vld [vmem:[%s2138 + $0x80] sm:$0xf]
    %v2172 = vld [vmem:[%s2138 + $0x84] sm:$0xf]
    %v2173 = vld [vmem:[%s2138 + $0x88] sm:$0xf]
    %v2174 = vld [vmem:[%s2138 + $0x8c] sm:$0xf]
    %v2175 = vld [vmem:[%s2138 + $0x90] sm:$0xf]
    %v2176 = vld [vmem:[%s2138 + $0x94] sm:$0xf]
    %v2177 = vld [vmem:[%s2138 + $0x98] sm:$0xf]
    %v2178 = vld [vmem:[%s2138 + $0x9c] sm:$0xf]
    %v2179 = vld [vmem:[%s2138 + $0xa0] sm:$0xf]
    %v2180 = vld [vmem:[%s2138 + $0xa4] sm:$0xf]
    %v2181 = vld [vmem:[%s2138 + $0xa8] sm:$0xf]
    %v2182 = vld [vmem:[%s2138 + $0xac] sm:$0xf]
    %v2183 = vld [vmem:[%s2138 + $0xb0] sm:$0xf]
    %v2184 = vld [vmem:[%s2138 + $0xb4] sm:$0xf]
    %v2185 = vld [vmem:[%s2138 + $0xb8] sm:$0xf]
    %v2186 = vld [vmem:[%s2138 + $0xbc] sm:$0xf]
    %v2187 = vld [vmem:[%s2138 + $0xc0] sm:$0xf]
    %v2188 = vld [vmem:[%s2138 + $0xc4] sm:$0xf]
    %v2189 = vld [vmem:[%s2138 + $0xc8] sm:$0xf]
    %v2190 = vld [vmem:[%s2138 + $0xcc] sm:$0xf]
    %v2191 = vld [vmem:[%s2138 + $0xd0] sm:$0xf]
    %v2192 = vld [vmem:[%s2138 + $0xd4] sm:$0xf]
    %v2193 = vld [vmem:[%s2138 + $0xd8] sm:$0xf]
    %v2194 = vld [vmem:[%s2138 + $0xdc] sm:$0xf]
    %v2195 = vld [vmem:[%s2138 + $0xe0] sm:$0xf]
    %v2196 = vld [vmem:[%s2138 + $0xe4] sm:$0xf]
    %v2197 = vld [vmem:[%s2138 + $0xe8] sm:$0xf]
    %v2198 = vld [vmem:[%s2138 + $0xec] sm:$0xf]
    %v2199 = vld [vmem:[%s2138 + $0xf0] sm:$0xf]
    %v2200 = vld [vmem:[%s2138 + $0xf4] sm:$0xf]
    %v2201 = vld [vmem:[%s2138 + $0xf8] sm:$0xf]
    %v2202 = vld [vmem:[%s2138 + $0xfc] sm:$0xf]
    %v2267 = vunpack.c.l.b16 %v2139
    %v2268 = vunpack.c.l.b16 %v2140
    %v2269 = vunpack.c.l.b16 %v2141
    %v2270 = vunpack.c.l.b16 %v2142
    %v2271 = vunpack.c.l.b16 %v2143
    %v2272 = vunpack.c.l.b16 %v2144
    %v2273 = vunpack.c.l.b16 %v2145
    %v2274 = vunpack.c.l.b16 %v2146
    %v2275 = vunpack.c.l.b16 %v2147
    %v2276 = vunpack.c.l.b16 %v2148
    %v2277 = vunpack.c.l.b16 %v2149
    %v2278 = vunpack.c.l.b16 %v2150
    %v2279 = vunpack.c.l.b16 %v2151
    %v2280 = vunpack.c.l.b16 %v2152
    %v2281 = vunpack.c.l.b16 %v2153
    %v2282 = vunpack.c.l.b16 %v2154
    %v2283 = vunpack.c.l.b16 %v2155
    %v2284 = vunpack.c.l.b16 %v2156
    %v2285 = vunpack.c.l.b16 %v2157
    %v2286 = vunpack.c.l.b16 %v2158
    %v2287 = vunpack.c.l.b16 %v2159
    %v2288 = vunpack.c.l.b16 %v2160
    %v2289 = vunpack.c.l.b16 %v2161
    %v2290 = vunpack.c.l.b16 %v2162
    %v2291 = vunpack.c.l.b16 %v2163
    %v2292 = vunpack.c.l.b16 %v2164
    %v2293 = vunpack.c.l.b16 %v2165
    %v2294 = vunpack.c.l.b16 %v2166
    %v2295 = vunpack.c.l.b16 %v2167
    %v2296 = vunpack.c.l.b16 %v2168
    %v2297 = vunpack.c.l.b16 %v2169
    %v2298 = vunpack.c.l.b16 %v2170
    %v2299 = vunpack.c.l.b16 %v2171
    %v2300 = vunpack.c.l.b16 %v2172
    %v2301 = vunpack.c.l.b16 %v2173
    %v2302 = vunpack.c.l.b16 %v2174
    %v2303 = vunpack.c.l.b16 %v2175
    %v2304 = vunpack.c.l.b16 %v2176
    %v2305 = vunpack.c.l.b16 %v2177
    %v2306 = vunpack.c.l.b16 %v2178
    %v2307 = vunpack.c.l.b16 %v2179
    %v2308 = vunpack.c.l.b16 %v2180
    %v2309 = vunpack.c.l.b16 %v2181
    %v2310 = vunpack.c.l.b16 %v2182
    %v2311 = vunpack.c.l.b16 %v2183
    %v2312 = vunpack.c.l.b16 %v2184
    %v2313 = vunpack.c.l.b16 %v2185
    %v2314 = vunpack.c.l.b16 %v2186
    %v2315 = vunpack.c.l.b16 %v2187
    %v2316 = vunpack.c.l.b16 %v2188
    %v2317 = vunpack.c.l.b16 %v2189
    %v2318 = vunpack.c.l.b16 %v2190
    %v2319 = vunpack.c.l.b16 %v2191
    %v2320 = vunpack.c.l.b16 %v2192
    %v2321 = vunpack.c.l.b16 %v2193
    %v2322 = vunpack.c.l.b16 %v2194
    %v2323 = vunpack.c.l.b16 %v2195
    %v2324 = vunpack.c.l.b16 %v2196
    %v2325 = vunpack.c.l.b16 %v2197
    %v2326 = vunpack.c.l.b16 %v2198
    %v2327 = vunpack.c.l.b16 %v2199
    %v2328 = vunpack.c.l.b16 %v2200
    %v2329 = vunpack.c.l.b16 %v2201
    %v2330 = vunpack.c.l.b16 %v2202
    %v2331 = vpack.c.b16 %v2268, %v2267
    %v2332 = vpack.c.b16 %v2270, %v2269
    %v2333 = vpack.c.b16 %v2272, %v2271
    %v2334 = vpack.c.b16 %v2274, %v2273
    %v2335 = vpack.c.b16 %v2276, %v2275
    %v2336 = vpack.c.b16 %v2278, %v2277
    %v2337 = vpack.c.b16 %v2280, %v2279
    %v2338 = vpack.c.b16 %v2282, %v2281
    %v2339 = vpack.c.b16 %v2284, %v2283
    %v2340 = vpack.c.b16 %v2286, %v2285
    %v2341 = vpack.c.b16 %v2288, %v2287
    %v2342 = vpack.c.b16 %v2290, %v2289
    %v2343 = vpack.c.b16 %v2292, %v2291
    %v2344 = vpack.c.b16 %v2294, %v2293
    %v2345 = vpack.c.b16 %v2296, %v2295
    %v2346 = vpack.c.b16 %v2298, %v2297
    %v2347 = vpack.c.b16 %v2300, %v2299
    %v2348 = vpack.c.b16 %v2302, %v2301
    %v2349 = vpack.c.b16 %v2304, %v2303
    %v2350 = vpack.c.b16 %v2306, %v2305
    %v2351 = vpack.c.b16 %v2308, %v2307
    %v2352 = vpack.c.b16 %v2310, %v2309
    %v2353 = vpack.c.b16 %v2312, %v2311
    %v2354 = vpack.c.b16 %v2314, %v2313
    %v2355 = vpack.c.b16 %v2316, %v2315
    %v2356 = vpack.c.b16 %v2318, %v2317
    %v2357 = vpack.c.b16 %v2320, %v2319
    %v2358 = vpack.c.b16 %v2322, %v2321
    %v2359 = vpack.c.b16 %v2324, %v2323
    %v2360 = vpack.c.b16 %v2326, %v2325
    %v2361 = vpack.c.b16 %v2328, %v2327
    %v2362 = vpack.c.b16 %v2330, %v2329
    %2395 = vmatprep.subr.bf16.mxu0 0
    %2396 = vmatpush1.bf16.msra.mxu0 %v2338
    %2397 = vmatprep.subr.bf16.mxu0 0
    %2398 = vmatpush1.bf16.msra.mxu0 %v2337
    %2399 = vmatprep.subr.bf16.mxu0 0
    %2400 = vmatpush1.bf16.msra.mxu0 %v2336
    %2401 = vmatprep.subr.bf16.mxu0 0
    %2402 = vmatpush1.bf16.msra.mxu0 %v2335
    %2403 = vmatprep.subr.bf16.mxu0 0
    %2404 = vmatpush1.bf16.msra.mxu0 %v2334
    %2405 = vmatprep.subr.bf16.mxu0 0
    %2406 = vmatpush1.bf16.msra.mxu0 %v2333
    %2407 = vmatprep.subr.bf16.mxu0 0
    %2408 = vmatpush1.bf16.msra.mxu0 %v2332
    %2409 = vmatprep.subr.bf16.mxu0 0
    %2410 = vmatpush1.bf16.msra.mxu0 %v2331
    %2411 = vmatprep.subr.bf16.mxu0 0
    %2412 = vmatpush2.bf16.msra.mxu0 %v2346
    %2413 = vmatprep.subr.bf16.mxu0 0
    %2414 = vmatpush2.bf16.msra.mxu0 %v2345
    %2415 = vmatprep.subr.bf16.mxu0 0
    %2416 = vmatpush2.bf16.msra.mxu0 %v2344
    %2417 = vmatprep.subr.bf16.mxu0 0
    %2418 = vmatpush2.bf16.msra.mxu0 %v2343
    %2419 = vmatprep.subr.bf16.mxu0 0
    %2420 = vmatpush2.bf16.msra.mxu0 %v2342
    %2421 = vmatprep.subr.bf16.mxu0 0
    %2422 = vmatpush2.bf16.msra.mxu0 %v2341
    %2423 = vmatprep.subr.bf16.mxu0 0
    %2424 = vmatpush2.bf16.msra.mxu0 %v2340
    %2425 = vmatprep.subr.bf16.mxu0 0
    %2426 = vmatpush2.bf16.msra.mxu0 %v2339
    %2427 = vmatprep.mubr.bf16.mxu0 %v175
    %2428 = vmatmul.mubr.bf16.gmra.mxu0 %v167
    %v2429 = vpop.f32.mrf.mxu0
    %v2430 = vadd.f32 0.0, %v2429
    %v2431 = vpop.f32.mrf.mxu0
    %v2432 = vpop.f32.mrf.mxu0
    %v2433 = vpop.f32.mrf.mxu0
    %2434 = vdwg.mxu0
    %2435 = vmatprep.subr.bf16.mxu0 0
    %2436 = vmatpush1.bf16.msra.mxu0 %v2354
    %2437 = vmatprep.subr.bf16.mxu0 0
    %2438 = vmatpush1.bf16.msra.mxu0 %v2353
    %2439 = vmatprep.subr.bf16.mxu0 0
    %2440 = vmatpush1.bf16.msra.mxu0 %v2352
    %2441 = vmatprep.subr.bf16.mxu0 0
    %2442 = vmatpush1.bf16.msra.mxu0 %v2351
    %2443 = vmatprep.subr.bf16.mxu0 0
    %2444 = vmatpush1.bf16.msra.mxu0 %v2350
    %2445 = vmatprep.subr.bf16.mxu0 0
    %2446 = vmatpush1.bf16.msra.mxu0 %v2349
    %2447 = vmatprep.subr.bf16.mxu0 0
    %2448 = vmatpush1.bf16.msra.mxu0 %v2348
    %2449 = vmatprep.subr.bf16.mxu0 0
    %2450 = vmatpush1.bf16.msra.mxu0 %v2347
    %2451 = vmatprep.subr.bf16.mxu0 0
    %2452 = vmatpush2.bf16.msra.mxu0 %v2362
    %2453 = vmatprep.subr.bf16.mxu0 0
    %2454 = vmatpush2.bf16.msra.mxu0 %v2361
    %2455 = vmatprep.subr.bf16.mxu0 0
    %2456 = vmatpush2.bf16.msra.mxu0 %v2360
    %2457 = vmatprep.subr.bf16.mxu0 0
    %2458 = vmatpush2.bf16.msra.mxu0 %v2359
    %2459 = vmatprep.subr.bf16.mxu0 0
    %2460 = vmatpush2.bf16.msra.mxu0 %v2358
    %2461 = vmatprep.subr.bf16.mxu0 0
    %2462 = vmatpush2.bf16.msra.mxu0 %v2357
    %2463 = vmatprep.subr.bf16.mxu0 0
    %2464 = vmatpush2.bf16.msra.mxu0 %v2356
    %2465 = vmatprep.subr.bf16.mxu0 0
    %2466 = vmatpush2.bf16.msra.mxu0 %v2355
    %2467 = vmatprep.mubr.bf16.mxu0 %v176
    %2468 = vmatmul.mubr.bf16.gmra.mxu0 %v174
    %v2469 = vpop.f32.mrf.mxu0
    %v2470 = vadd.f32 %v2430, %v2469
    %v2471 = vpop.f32.mrf.mxu0
    %v2472 = vpop.f32.mrf.mxu0
    %v2473 = vpop.f32.mrf.mxu0
    %2474 = vdwg.mxu0
    %s2475 = scalar_lea.vmem [#allocation5], 1792
    %v2476 = vld [vmem:[%s2475] sm:$0xf]
    %v2477 = vld [vmem:[%s2475 + $0x4] sm:$0xf]
    %v2478 = vld [vmem:[%s2475 + $0x8] sm:$0xf]
    %v2479 = vld [vmem:[%s2475 + $0xc] sm:$0xf]
    %v2480 = vld [vmem:[%s2475 + $0x10] sm:$0xf]
    %v2481 = vld [vmem:[%s2475 + $0x14] sm:$0xf]
    %v2482 = vld [vmem:[%s2475 + $0x18] sm:$0xf]
    %v2483 = vld [vmem:[%s2475 + $0x1c] sm:$0xf]
    %v2484 = vld [vmem:[%s2475 + $0x20] sm:$0xf]
    %v2485 = vld [vmem:[%s2475 + $0x24] sm:$0xf]
    %v2486 = vld [vmem:[%s2475 + $0x28] sm:$0xf]
    %v2487 = vld [vmem:[%s2475 + $0x2c] sm:$0xf]
    %v2488 = vld [vmem:[%s2475 + $0x30] sm:$0xf]
    %v2489 = vld [vmem:[%s2475 + $0x34] sm:$0xf]
    %v2490 = vld [vmem:[%s2475 + $0x38] sm:$0xf]
    %v2491 = vld [vmem:[%s2475 + $0x3c] sm:$0xf]
    %v2492 = vld [vmem:[%s2475 + $0x40] sm:$0xf]
    %v2493 = vld [vmem:[%s2475 + $0x44] sm:$0xf]
    %v2494 = vld [vmem:[%s2475 + $0x48] sm:$0xf]
    %v2495 = vld [vmem:[%s2475 + $0x4c] sm:$0xf]
    %v2496 = vld [vmem:[%s2475 + $0x50] sm:$0xf]
    %v2497 = vld [vmem:[%s2475 + $0x54] sm:$0xf]
    %v2498 = vld [vmem:[%s2475 + $0x58] sm:$0xf]
    %v2499 = vld [vmem:[%s2475 + $0x5c] sm:$0xf]
    %v2500 = vld [vmem:[%s2475 + $0x60] sm:$0xf]
    %v2501 = vld [vmem:[%s2475 + $0x64] sm:$0xf]
    %v2502 = vld [vmem:[%s2475 + $0x68] sm:$0xf]
    %v2503 = vld [vmem:[%s2475 + $0x6c] sm:$0xf]
    %v2504 = vld [vmem:[%s2475 + $0x70] sm:$0xf]
    %v2505 = vld [vmem:[%s2475 + $0x74] sm:$0xf]
    %v2506 = vld [vmem:[%s2475 + $0x78] sm:$0xf]
    %v2507 = vld [vmem:[%s2475 + $0x7c] sm:$0xf]
    %v2508 = vld [vmem:[%s2475 + $0x80] sm:$0xf]
    %v2509 = vld [vmem:[%s2475 + $0x84] sm:$0xf]
    %v2510 = vld [vmem:[%s2475 + $0x88] sm:$0xf]
    %v2511 = vld [vmem:[%s2475 + $0x8c] sm:$0xf]
    %v2512 = vld [vmem:[%s2475 + $0x90] sm:$0xf]
    %v2513 = vld [vmem:[%s2475 + $0x94] sm:$0xf]
    %v2514 = vld [vmem:[%s2475 + $0x98] sm:$0xf]
    %v2515 = vld [vmem:[%s2475 + $0x9c] sm:$0xf]
    %v2516 = vld [vmem:[%s2475 + $0xa0] sm:$0xf]
    %v2517 = vld [vmem:[%s2475 + $0xa4] sm:$0xf]
    %v2518 = vld [vmem:[%s2475 + $0xa8] sm:$0xf]
    %v2519 = vld [vmem:[%s2475 + $0xac] sm:$0xf]
    %v2520 = vld [vmem:[%s2475 + $0xb0] sm:$0xf]
    %v2521 = vld [vmem:[%s2475 + $0xb4] sm:$0xf]
    %v2522 = vld [vmem:[%s2475 + $0xb8] sm:$0xf]
    %v2523 = vld [vmem:[%s2475 + $0xbc] sm:$0xf]
    %v2524 = vld [vmem:[%s2475 + $0xc0] sm:$0xf]
    %v2525 = vld [vmem:[%s2475 + $0xc4] sm:$0xf]
    %v2526 = vld [vmem:[%s2475 + $0xc8] sm:$0xf]
    %v2527 = vld [vmem:[%s2475 + $0xcc] sm:$0xf]
    %v2528 = vld [vmem:[%s2475 + $0xd0] sm:$0xf]
    %v2529 = vld [vmem:[%s2475 + $0xd4] sm:$0xf]
    %v2530 = vld [vmem:[%s2475 + $0xd8] sm:$0xf]
    %v2531 = vld [vmem:[%s2475 + $0xdc] sm:$0xf]
    %v2532 = vld [vmem:[%s2475 + $0xe0] sm:$0xf]
    %v2533 = vld [vmem:[%s2475 + $0xe4] sm:$0xf]
    %v2534 = vld [vmem:[%s2475 + $0xe8] sm:$0xf]
    %v2535 = vld [vmem:[%s2475 + $0xec] sm:$0xf]
    %v2536 = vld [vmem:[%s2475 + $0xf0] sm:$0xf]
    %v2537 = vld [vmem:[%s2475 + $0xf4] sm:$0xf]
    %v2538 = vld [vmem:[%s2475 + $0xf8] sm:$0xf]
    %v2539 = vld [vmem:[%s2475 + $0xfc] sm:$0xf]
    %v2604 = vunpack.c.l.b16 %v2476
    %v2605 = vunpack.c.l.b16 %v2477
    %v2606 = vunpack.c.l.b16 %v2478
    %v2607 = vunpack.c.l.b16 %v2479
    %v2608 = vunpack.c.l.b16 %v2480
    %v2609 = vunpack.c.l.b16 %v2481
    %v2610 = vunpack.c.l.b16 %v2482
    %v2611 = vunpack.c.l.b16 %v2483
    %v2612 = vunpack.c.l.b16 %v2484
    %v2613 = vunpack.c.l.b16 %v2485
    %v2614 = vunpack.c.l.b16 %v2486
    %v2615 = vunpack.c.l.b16 %v2487
    %v2616 = vunpack.c.l.b16 %v2488
    %v2617 = vunpack.c.l.b16 %v2489
    %v2618 = vunpack.c.l.b16 %v2490
    %v2619 = vunpack.c.l.b16 %v2491
    %v2620 = vunpack.c.l.b16 %v2492
    %v2621 = vunpack.c.l.b16 %v2493
    %v2622 = vunpack.c.l.b16 %v2494
    %v2623 = vunpack.c.l.b16 %v2495
    %v2624 = vunpack.c.l.b16 %v2496
    %v2625 = vunpack.c.l.b16 %v2497
    %v2626 = vunpack.c.l.b16 %v2498
    %v2627 = vunpack.c.l.b16 %v2499
    %v2628 = vunpack.c.l.b16 %v2500
    %v2629 = vunpack.c.l.b16 %v2501
    %v2630 = vunpack.c.l.b16 %v2502
    %v2631 = vunpack.c.l.b16 %v2503
    %v2632 = vunpack.c.l.b16 %v2504
    %v2633 = vunpack.c.l.b16 %v2505
    %v2634 = vunpack.c.l.b16 %v2506
    %v2635 = vunpack.c.l.b16 %v2507
    %v2636 = vunpack.c.l.b16 %v2508
    %v2637 = vunpack.c.l.b16 %v2509
    %v2638 = vunpack.c.l.b16 %v2510
    %v2639 = vunpack.c.l.b16 %v2511
    %v2640 = vunpack.c.l.b16 %v2512
    %v2641 = vunpack.c.l.b16 %v2513
    %v2642 = vunpack.c.l.b16 %v2514
    %v2643 = vunpack.c.l.b16 %v2515
    %v2644 = vunpack.c.l.b16 %v2516
    %v2645 = vunpack.c.l.b16 %v2517
    %v2646 = vunpack.c.l.b16 %v2518
    %v2647 = vunpack.c.l.b16 %v2519
    %v2648 = vunpack.c.l.b16 %v2520
    %v2649 = vunpack.c.l.b16 %v2521
    %v2650 = vunpack.c.l.b16 %v2522
    %v2651 = vunpack.c.l.b16 %v2523
    %v2652 = vunpack.c.l.b16 %v2524
    %v2653 = vunpack.c.l.b16 %v2525
    %v2654 = vunpack.c.l.b16 %v2526
    %v2655 = vunpack.c.l.b16 %v2527
    %v2656 = vunpack.c.l.b16 %v2528
    %v2657 = vunpack.c.l.b16 %v2529
    %v2658 = vunpack.c.l.b16 %v2530
    %v2659 = vunpack.c.l.b16 %v2531
    %v2660 = vunpack.c.l.b16 %v2532
    %v2661 = vunpack.c.l.b16 %v2533
    %v2662 = vunpack.c.l.b16 %v2534
    %v2663 = vunpack.c.l.b16 %v2535
    %v2664 = vunpack.c.l.b16 %v2536
    %v2665 = vunpack.c.l.b16 %v2537
    %v2666 = vunpack.c.l.b16 %v2538
    %v2667 = vunpack.c.l.b16 %v2539
    %v2668 = vpack.c.b16 %v2605, %v2604
    %v2669 = vpack.c.b16 %v2607, %v2606
    %v2670 = vpack.c.b16 %v2609, %v2608
    %v2671 = vpack.c.b16 %v2611, %v2610
    %v2672 = vpack.c.b16 %v2613, %v2612
    %v2673 = vpack.c.b16 %v2615, %v2614
    %v2674 = vpack.c.b16 %v2617, %v2616
    %v2675 = vpack.c.b16 %v2619, %v2618
    %v2676 = vpack.c.b16 %v2621, %v2620
    %v2677 = vpack.c.b16 %v2623, %v2622
    %v2678 = vpack.c.b16 %v2625, %v2624
    %v2679 = vpack.c.b16 %v2627, %v2626
    %v2680 = vpack.c.b16 %v2629, %v2628
    %v2681 = vpack.c.b16 %v2631, %v2630
    %v2682 = vpack.c.b16 %v2633, %v2632
    %v2683 = vpack.c.b16 %v2635, %v2634
    %v2684 = vpack.c.b16 %v2637, %v2636
    %v2685 = vpack.c.b16 %v2639, %v2638
    %v2686 = vpack.c.b16 %v2641, %v2640
    %v2687 = vpack.c.b16 %v2643, %v2642
    %v2688 = vpack.c.b16 %v2645, %v2644
    %v2689 = vpack.c.b16 %v2647, %v2646
    %v2690 = vpack.c.b16 %v2649, %v2648
    %v2691 = vpack.c.b16 %v2651, %v2650
    %v2692 = vpack.c.b16 %v2653, %v2652
    %v2693 = vpack.c.b16 %v2655, %v2654
    %v2694 = vpack.c.b16 %v2657, %v2656
    %v2695 = vpack.c.b16 %v2659, %v2658
    %v2696 = vpack.c.b16 %v2661, %v2660
    %v2697 = vpack.c.b16 %v2663, %v2662
    %v2698 = vpack.c.b16 %v2665, %v2664
    %v2699 = vpack.c.b16 %v2667, %v2666
    %2732 = vmatprep.subr.bf16.mxu0 0
    %2733 = vmatpush1.bf16.msra.mxu0 %v2675
    %2734 = vmatprep.subr.bf16.mxu0 0
    %2735 = vmatpush1.bf16.msra.mxu0 %v2674
    %2736 = vmatprep.subr.bf16.mxu0 0
    %2737 = vmatpush1.bf16.msra.mxu0 %v2673
    %2738 = vmatprep.subr.bf16.mxu0 0
    %2739 = vmatpush1.bf16.msra.mxu0 %v2672
    %2740 = vmatprep.subr.bf16.mxu0 0
    %2741 = vmatpush1.bf16.msra.mxu0 %v2671
    %2742 = vmatprep.subr.bf16.mxu0 0
    %2743 = vmatpush1.bf16.msra.mxu0 %v2670
    %2744 = vmatprep.subr.bf16.mxu0 0
    %2745 = vmatpush1.bf16.msra.mxu0 %v2669
    %2746 = vmatprep.subr.bf16.mxu0 0
    %2747 = vmatpush1.bf16.msra.mxu0 %v2668
    %2748 = vmatprep.subr.bf16.mxu0 0
    %2749 = vmatpush2.bf16.msra.mxu0 %v2683
    %2750 = vmatprep.subr.bf16.mxu0 0
    %2751 = vmatpush2.bf16.msra.mxu0 %v2682
    %2752 = vmatprep.subr.bf16.mxu0 0
    %2753 = vmatpush2.bf16.msra.mxu0 %v2681
    %2754 = vmatprep.subr.bf16.mxu0 0
    %2755 = vmatpush2.bf16.msra.mxu0 %v2680
    %2756 = vmatprep.subr.bf16.mxu0 0
    %2757 = vmatpush2.bf16.msra.mxu0 %v2679
    %2758 = vmatprep.subr.bf16.mxu0 0
    %2759 = vmatpush2.bf16.msra.mxu0 %v2678
    %2760 = vmatprep.subr.bf16.mxu0 0
    %2761 = vmatpush2.bf16.msra.mxu0 %v2677
    %2762 = vmatprep.subr.bf16.mxu0 0
    %2763 = vmatpush2.bf16.msra.mxu0 %v2676
    %2764 = vmatprep.mubr.bf16.mxu0 %v175
    %2765 = vmatmul.mubr.bf16.gmra.mxu0 %v167
    %v2766 = vpop.f32.mrf.mxu0
    %v2767 = vadd.f32 0.0, %v2766
    %v2768 = vpop.f32.mrf.mxu0
    %v2769 = vpop.f32.mrf.mxu0
    %v2770 = vpop.f32.mrf.mxu0
    %2771 = vdwg.mxu0
    %2772 = vmatprep.subr.bf16.mxu0 0
    %2773 = vmatpush1.bf16.msra.mxu0 %v2691
    %2774 = vmatprep.subr.bf16.mxu0 0
    %2775 = vmatpush1.bf16.msra.mxu0 %v2690
    %2776 = vmatprep.subr.bf16.mxu0 0
    %2777 = vmatpush1.bf16.msra.mxu0 %v2689
    %2778 = vmatprep.subr.bf16.mxu0 0
    %2779 = vmatpush1.bf16.msra.mxu0 %v2688
    %2780 = vmatprep.subr.bf16.mxu0 0
    %2781 = vmatpush1.bf16.msra.mxu0 %v2687
    %2782 = vmatprep.subr.bf16.mxu0 0
    %2783 = vmatpush1.bf16.msra.mxu0 %v2686
    %2784 = vmatprep.subr.bf16.mxu0 0
    %2785 = vmatpush1.bf16.msra.mxu0 %v2685
    %2786 = vmatprep.subr.bf16.mxu0 0
    %2787 = vmatpush1.bf16.msra.mxu0 %v2684
    %2788 = vmatprep.subr.bf16.mxu0 0
    %2789 = vmatpush2.bf16.msra.mxu0 %v2699
    %2790 = vmatprep.subr.bf16.mxu0 0
    %2791 = vmatpush2.bf16.msra.mxu0 %v2698
    %2792 = vmatprep.subr.bf16.mxu0 0
    %2793 = vmatpush2.bf16.msra.mxu0 %v2697
    %2794 = vmatprep.subr.bf16.mxu0 0
    %2795 = vmatpush2.bf16.msra.mxu0 %v2696
    %2796 = vmatprep.subr.bf16.mxu0 0
    %2797 = vmatpush2.bf16.msra.mxu0 %v2695
    %2798 = vmatprep.subr.bf16.mxu0 0
    %2799 = vmatpush2.bf16.msra.mxu0 %v2694
    %2800 = vmatprep.subr.bf16.mxu0 0
    %2801 = vmatpush2.bf16.msra.mxu0 %v2693
    %2802 = vmatprep.subr.bf16.mxu0 0
    %2803 = vmatpush2.bf16.msra.mxu0 %v2692
    %2804 = vmatprep.mubr.bf16.mxu0 %v176
    %2805 = vmatmul.mubr.bf16.gmra.mxu0 %v174
    %v2806 = vpop.f32.mrf.mxu0
    %v2807 = vadd.f32 %v2767, %v2806
    %v2808 = vpop.f32.mrf.mxu0
    %v2809 = vpop.f32.mrf.mxu0
    %v2810 = vpop.f32.mrf.mxu0
    %2811 = vdwg.mxu0
    %s2812 = scalar_lea.vmem [#allocation5], 2048
    %v2813 = vld [vmem:[%s2812] sm:$0xf]
    %v2814 = vld [vmem:[%s2812 + $0x4] sm:$0xf]
    %v2815 = vld [vmem:[%s2812 + $0x8] sm:$0xf]
    %v2816 = vld [vmem:[%s2812 + $0xc] sm:$0xf]
    %v2817 = vld [vmem:[%s2812 + $0x10] sm:$0xf]
    %v2818 = vld [vmem:[%s2812 + $0x14] sm:$0xf]
    %v2819 = vld [vmem:[%s2812 + $0x18] sm:$0xf]
    %v2820 = vld [vmem:[%s2812 + $0x1c] sm:$0xf]
    %v2821 = vld [vmem:[%s2812 + $0x20] sm:$0xf]
    %v2822 = vld [vmem:[%s2812 + $0x24] sm:$0xf]
    %v2823 = vld [vmem:[%s2812 + $0x28] sm:$0xf]
    %v2824 = vld [vmem:[%s2812 + $0x2c] sm:$0xf]
    %v2825 = vld [vmem:[%s2812 + $0x30] sm:$0xf]
    %v2826 = vld [vmem:[%s2812 + $0x34] sm:$0xf]
    %v2827 = vld [vmem:[%s2812 + $0x38] sm:$0xf]
    %v2828 = vld [vmem:[%s2812 + $0x3c] sm:$0xf]
    %v2829 = vld [vmem:[%s2812 + $0x40] sm:$0xf]
    %v2830 = vld [vmem:[%s2812 + $0x44] sm:$0xf]
    %v2831 = vld [vmem:[%s2812 + $0x48] sm:$0xf]
    %v2832 = vld [vmem:[%s2812 + $0x4c] sm:$0xf]
    %v2833 = vld [vmem:[%s2812 + $0x50] sm:$0xf]
    %v2834 = vld [vmem:[%s2812 + $0x54] sm:$0xf]
    %v2835 = vld [vmem:[%s2812 + $0x58] sm:$0xf]
    %v2836 = vld [vmem:[%s2812 + $0x5c] sm:$0xf]
    %v2837 = vld [vmem:[%s2812 + $0x60] sm:$0xf]
    %v2838 = vld [vmem:[%s2812 + $0x64] sm:$0xf]
    %v2839 = vld [vmem:[%s2812 + $0x68] sm:$0xf]
    %v2840 = vld [vmem:[%s2812 + $0x6c] sm:$0xf]
    %v2841 = vld [vmem:[%s2812 + $0x70] sm:$0xf]
    %v2842 = vld [vmem:[%s2812 + $0x74] sm:$0xf]
    %v2843 = vld [vmem:[%s2812 + $0x78] sm:$0xf]
    %v2844 = vld [vmem:[%s2812 + $0x7c] sm:$0xf]
    %v2845 = vld [vmem:[%s2812 + $0x80] sm:$0xf]
    %v2846 = vld [vmem:[%s2812 + $0x84] sm:$0xf]
    %v2847 = vld [vmem:[%s2812 + $0x88] sm:$0xf]
    %v2848 = vld [vmem:[%s2812 + $0x8c] sm:$0xf]
    %v2849 = vld [vmem:[%s2812 + $0x90] sm:$0xf]
    %v2850 = vld [vmem:[%s2812 + $0x94] sm:$0xf]
    %v2851 = vld [vmem:[%s2812 + $0x98] sm:$0xf]
    %v2852 = vld [vmem:[%s2812 + $0x9c] sm:$0xf]
    %v2853 = vld [vmem:[%s2812 + $0xa0] sm:$0xf]
    %v2854 = vld [vmem:[%s2812 + $0xa4] sm:$0xf]
    %v2855 = vld [vmem:[%s2812 + $0xa8] sm:$0xf]
    %v2856 = vld [vmem:[%s2812 + $0xac] sm:$0xf]
    %v2857 = vld [vmem:[%s2812 + $0xb0] sm:$0xf]
    %v2858 = vld [vmem:[%s2812 + $0xb4] sm:$0xf]
    %v2859 = vld [vmem:[%s2812 + $0xb8] sm:$0xf]
    %v2860 = vld [vmem:[%s2812 + $0xbc] sm:$0xf]
    %v2861 = vld [vmem:[%s2812 + $0xc0] sm:$0xf]
    %v2862 = vld [vmem:[%s2812 + $0xc4] sm:$0xf]
    %v2863 = vld [vmem:[%s2812 + $0xc8] sm:$0xf]
    %v2864 = vld [vmem:[%s2812 + $0xcc] sm:$0xf]
    %v2865 = vld [vmem:[%s2812 + $0xd0] sm:$0xf]
    %v2866 = vld [vmem:[%s2812 + $0xd4] sm:$0xf]
    %v2867 = vld [vmem:[%s2812 + $0xd8] sm:$0xf]
    %v2868 = vld [vmem:[%s2812 + $0xdc] sm:$0xf]
    %v2869 = vld [vmem:[%s2812 + $0xe0] sm:$0xf]
    %v2870 = vld [vmem:[%s2812 + $0xe4] sm:$0xf]
    %v2871 = vld [vmem:[%s2812 + $0xe8] sm:$0xf]
    %v2872 = vld [vmem:[%s2812 + $0xec] sm:$0xf]
    %v2873 = vld [vmem:[%s2812 + $0xf0] sm:$0xf]
    %v2874 = vld [vmem:[%s2812 + $0xf4] sm:$0xf]
    %v2875 = vld [vmem:[%s2812 + $0xf8] sm:$0xf]
    %v2876 = vld [vmem:[%s2812 + $0xfc] sm:$0xf]
    %v2941 = vunpack.c.l.b16 %v2813
    %v2942 = vunpack.c.l.b16 %v2814
    %v2943 = vunpack.c.l.b16 %v2815
    %v2944 = vunpack.c.l.b16 %v2816
    %v2945 = vunpack.c.l.b16 %v2817
    %v2946 = vunpack.c.l.b16 %v2818
    %v2947 = vunpack.c.l.b16 %v2819
    %v2948 = vunpack.c.l.b16 %v2820
    %v2949 = vunpack.c.l.b16 %v2821
    %v2950 = vunpack.c.l.b16 %v2822
    %v2951 = vunpack.c.l.b16 %v2823
    %v2952 = vunpack.c.l.b16 %v2824
    %v2953 = vunpack.c.l.b16 %v2825
    %v2954 = vunpack.c.l.b16 %v2826
    %v2955 = vunpack.c.l.b16 %v2827
    %v2956 = vunpack.c.l.b16 %v2828
    %v2957 = vunpack.c.l.b16 %v2829
    %v2958 = vunpack.c.l.b16 %v2830
    %v2959 = vunpack.c.l.b16 %v2831
    %v2960 = vunpack.c.l.b16 %v2832
    %v2961 = vunpack.c.l.b16 %v2833
    %v2962 = vunpack.c.l.b16 %v2834
    %v2963 = vunpack.c.l.b16 %v2835
    %v2964 = vunpack.c.l.b16 %v2836
    %v2965 = vunpack.c.l.b16 %v2837
    %v2966 = vunpack.c.l.b16 %v2838
    %v2967 = vunpack.c.l.b16 %v2839
    %v2968 = vunpack.c.l.b16 %v2840
    %v2969 = vunpack.c.l.b16 %v2841
    %v2970 = vunpack.c.l.b16 %v2842
    %v2971 = vunpack.c.l.b16 %v2843
    %v2972 = vunpack.c.l.b16 %v2844
    %v2973 = vunpack.c.l.b16 %v2845
    %v2974 = vunpack.c.l.b16 %v2846
    %v2975 = vunpack.c.l.b16 %v2847
    %v2976 = vunpack.c.l.b16 %v2848
    %v2977 = vunpack.c.l.b16 %v2849
    %v2978 = vunpack.c.l.b16 %v2850
    %v2979 = vunpack.c.l.b16 %v2851
    %v2980 = vunpack.c.l.b16 %v2852
    %v2981 = vunpack.c.l.b16 %v2853
    %v2982 = vunpack.c.l.b16 %v2854
    %v2983 = vunpack.c.l.b16 %v2855
    %v2984 = vunpack.c.l.b16 %v2856
    %v2985 = vunpack.c.l.b16 %v2857
    %v2986 = vunpack.c.l.b16 %v2858
    %v2987 = vunpack.c.l.b16 %v2859
    %v2988 = vunpack.c.l.b16 %v2860
    %v2989 = vunpack.c.l.b16 %v2861
    %v2990 = vunpack.c.l.b16 %v2862
    %v2991 = vunpack.c.l.b16 %v2863
    %v2992 = vunpack.c.l.b16 %v2864
    %v2993 = vunpack.c.l.b16 %v2865
    %v2994 = vunpack.c.l.b16 %v2866
    %v2995 = vunpack.c.l.b16 %v2867
    %v2996 = vunpack.c.l.b16 %v2868
    %v2997 = vunpack.c.l.b16 %v2869
    %v2998 = vunpack.c.l.b16 %v2870
    %v2999 = vunpack.c.l.b16 %v2871
    %v3000 = vunpack.c.l.b16 %v2872
    %v3001 = vunpack.c.l.b16 %v2873
    %v3002 = vunpack.c.l.b16 %v2874
    %v3003 = vunpack.c.l.b16 %v2875
    %v3004 = vunpack.c.l.b16 %v2876
    %v3005 = vpack.c.b16 %v2942, %v2941
    %v3006 = vpack.c.b16 %v2944, %v2943
    %v3007 = vpack.c.b16 %v2946, %v2945
    %v3008 = vpack.c.b16 %v2948, %v2947
    %v3009 = vpack.c.b16 %v2950, %v2949
    %v3010 = vpack.c.b16 %v2952, %v2951
    %v3011 = vpack.c.b16 %v2954, %v2953
    %v3012 = vpack.c.b16 %v2956, %v2955
    %v3013 = vpack.c.b16 %v2958, %v2957
    %v3014 = vpack.c.b16 %v2960, %v2959
    %v3015 = vpack.c.b16 %v2962, %v2961
    %v3016 = vpack.c.b16 %v2964, %v2963
    %v3017 = vpack.c.b16 %v2966, %v2965
    %v3018 = vpack.c.b16 %v2968, %v2967
    %v3019 = vpack.c.b16 %v2970, %v2969
    %v3020 = vpack.c.b16 %v2972, %v2971
    %v3021 = vpack.c.b16 %v2974, %v2973
    %v3022 = vpack.c.b16 %v2976, %v2975
    %v3023 = vpack.c.b16 %v2978, %v2977
    %v3024 = vpack.c.b16 %v2980, %v2979
    %v3025 = vpack.c.b16 %v2982, %v2981
    %v3026 = vpack.c.b16 %v2984, %v2983
    %v3027 = vpack.c.b16 %v2986, %v2985
    %v3028 = vpack.c.b16 %v2988, %v2987
    %v3029 = vpack.c.b16 %v2990, %v2989
    %v3030 = vpack.c.b16 %v2992, %v2991
    %v3031 = vpack.c.b16 %v2994, %v2993
    %v3032 = vpack.c.b16 %v2996, %v2995
    %v3033 = vpack.c.b16 %v2998, %v2997
    %v3034 = vpack.c.b16 %v3000, %v2999
    %v3035 = vpack.c.b16 %v3002, %v3001
    %v3036 = vpack.c.b16 %v3004, %v3003
    %3069 = vmatprep.subr.bf16.mxu0 0
    %3070 = vmatpush1.bf16.msra.mxu0 %v3012
    %3071 = vmatprep.subr.bf16.mxu0 0
    %3072 = vmatpush1.bf16.msra.mxu0 %v3011
    %3073 = vmatprep.subr.bf16.mxu0 0
    %3074 = vmatpush1.bf16.msra.mxu0 %v3010
    %3075 = vmatprep.subr.bf16.mxu0 0
    %3076 = vmatpush1.bf16.msra.mxu0 %v3009
    %3077 = vmatprep.subr.bf16.mxu0 0
    %3078 = vmatpush1.bf16.msra.mxu0 %v3008
    %3079 = vmatprep.subr.bf16.mxu0 0
    %3080 = vmatpush1.bf16.msra.mxu0 %v3007
    %3081 = vmatprep.subr.bf16.mxu0 0
    %3082 = vmatpush1.bf16.msra.mxu0 %v3006
    %3083 = vmatprep.subr.bf16.mxu0 0
    %3084 = vmatpush1.bf16.msra.mxu0 %v3005
    %3085 = vmatprep.subr.bf16.mxu0 0
    %3086 = vmatpush2.bf16.msra.mxu0 %v3020
    %3087 = vmatprep.subr.bf16.mxu0 0
    %3088 = vmatpush2.bf16.msra.mxu0 %v3019
    %3089 = vmatprep.subr.bf16.mxu0 0
    %3090 = vmatpush2.bf16.msra.mxu0 %v3018
    %3091 = vmatprep.subr.bf16.mxu0 0
    %3092 = vmatpush2.bf16.msra.mxu0 %v3017
    %3093 = vmatprep.subr.bf16.mxu0 0
    %3094 = vmatpush2.bf16.msra.mxu0 %v3016
    %3095 = vmatprep.subr.bf16.mxu0 0
    %3096 = vmatpush2.bf16.msra.mxu0 %v3015
    %3097 = vmatprep.subr.bf16.mxu0 0
    %3098 = vmatpush2.bf16.msra.mxu0 %v3014
    %3099 = vmatprep.subr.bf16.mxu0 0
    %3100 = vmatpush2.bf16.msra.mxu0 %v3013
    %3101 = vmatprep.mubr.bf16.mxu0 %v175
    %3102 = vmatmul.mubr.bf16.gmra.mxu0 %v167
    %v3103 = vpop.f32.mrf.mxu0
    %v3104 = vadd.f32 0.0, %v3103
    %v3105 = vpop.f32.mrf.mxu0
    %v3106 = vpop.f32.mrf.mxu0
    %v3107 = vpop.f32.mrf.mxu0
    %3108 = vdwg.mxu0
    %3109 = vmatprep.subr.bf16.mxu0 0
    %3110 = vmatpush1.bf16.msra.mxu0 %v3028
    %3111 = vmatprep.subr.bf16.mxu0 0
    %3112 = vmatpush1.bf16.msra.mxu0 %v3027
    %3113 = vmatprep.subr.bf16.mxu0 0
    %3114 = vmatpush1.bf16.msra.mxu0 %v3026
    %3115 = vmatprep.subr.bf16.mxu0 0
    %3116 = vmatpush1.bf16.msra.mxu0 %v3025
    %3117 = vmatprep.subr.bf16.mxu0 0
    %3118 = vmatpush1.bf16.msra.mxu0 %v3024
    %3119 = vmatprep.subr.bf16.mxu0 0
    %3120 = vmatpush1.bf16.msra.mxu0 %v3023
    %3121 = vmatprep.subr.bf16.mxu0 0
    %3122 = vmatpush1.bf16.msra.mxu0 %v3022
    %3123 = vmatprep.subr.bf16.mxu0 0
    %3124 = vmatpush1.bf16.msra.mxu0 %v3021
    %3125 = vmatprep.subr.bf16.mxu0 0
    %3126 = vmatpush2.bf16.msra.mxu0 %v3036
    %3127 = vmatprep.subr.bf16.mxu0 0
    %3128 = vmatpush2.bf16.msra.mxu0 %v3035
    %3129 = vmatprep.subr.bf16.mxu0 0
    %3130 = vmatpush2.bf16.msra.mxu0 %v3034
    %3131 = vmatprep.subr.bf16.mxu0 0
    %3132 = vmatpush2.bf16.msra.mxu0 %v3033
    %3133 = vmatprep.subr.bf16.mxu0 0
    %3134 = vmatpush2.bf16.msra.mxu0 %v3032
    %3135 = vmatprep.subr.bf16.mxu0 0
    %3136 = vmatpush2.bf16.msra.mxu0 %v3031
    %3137 = vmatprep.subr.bf16.mxu0 0
    %3138 = vmatpush2.bf16.msra.mxu0 %v3030
    %3139 = vmatprep.subr.bf16.mxu0 0
    %3140 = vmatpush2.bf16.msra.mxu0 %v3029
    %3141 = vmatprep.mubr.bf16.mxu0 %v176
    %3142 = vmatmul.mubr.bf16.gmra.mxu0 %v174
    %v3143 = vpop.f32.mrf.mxu0
    %v3144 = vadd.f32 %v3104, %v3143
    %v3145 = vpop.f32.mrf.mxu0
    %v3146 = vpop.f32.mrf.mxu0
    %v3147 = vpop.f32.mrf.mxu0
    %3148 = vdwg.mxu0
    %v3150 = vrot.slane %v785, 4
    %v3153 = vrot.slane %v1459, 4
    %v3156 = vrot.slane %v2133, 4
    %v3159 = vrot.slane %v2807, 4
    %vm3161 = vcmask 1043456
    %v3162 = vsel %vm3161, %v448, %v3150
    %v3163 = vsel %vm3161, %v1122, %v3153
    %v3164 = vsel %vm3161, %v1796, %v3156
    %v3165 = vsel %vm3161, %v2470, %v3159
    %v3166 = vpack.c.bf16 %v3163, %v3162
    %v3167 = vpack.c.bf16 %v3165, %v3164
    %v3168 = vpack.c.bf16 %v3144, %v3144
    %v3169 = vld [vmem:[#allocation10] sm:$0xf]
    %v3170 = vld [vmem:[#allocation10 + $0x18] sm:$0xf]
    %v3173 = vunpack.c.l.b16 %v3169
    %v3174 = vunpack.c.l.b16 %v3170
    %v3175 = vpack.c.b16 %v3174, %v3173
    %vm3176 = vcmask 293888
    %v3178 = vsel %vm3176, %v3175, 0
    %vm3180 = vcmask 1041408
    %v3182 = vsel %vm3180, %v3168, 0
    %3184 = vmatprep.subr.bf16.mxu0 0
    %3185 = vmatpush1.bf16.msra.mxu0 0
    %3186 = vmatprep.subr.bf16.mxu0 0
    %3187 = vmatpush1.bf16.msra.mxu0 0
    %3188 = vmatprep.subr.bf16.mxu0 0
    %3189 = vmatpush1.bf16.msra.mxu0 0
    %3190 = vmatprep.subr.bf16.mxu0 0
    %3191 = vmatpush1.bf16.msra.mxu0 0
    %3192 = vmatprep.subr.bf16.mxu0 0
    %3193 = vmatpush1.bf16.msra.mxu0 0
    %3194 = vmatprep.subr.bf16.mxu0 0
    %3195 = vmatpush1.bf16.msra.mxu0 %v3182
    %3196 = vmatprep.subr.bf16.mxu0 0
    %3197 = vmatpush1.bf16.msra.mxu0 %v3167
    %3198 = vmatprep.subr.bf16.mxu0 0
    %3199 = vmatpush1.bf16.msra.mxu0 %v3166
    %3200 = vmatprep.subr.bf16.mxu0 0
    %3201 = vmatpush2.bf16.msra.mxu0 0
    %3202 = vmatprep.subr.bf16.mxu0 0
    %3203 = vmatpush2.bf16.msra.mxu0 0
    %3204 = vmatprep.subr.bf16.mxu0 0
    %3205 = vmatpush2.bf16.msra.mxu0 0
    %3206 = vmatprep.subr.bf16.mxu0 0
    %3207 = vmatpush2.bf16.msra.mxu0 0
    %3208 = vmatprep.subr.bf16.mxu0 0
    %3209 = vmatpush2.bf16.msra.mxu0 0
    %3210 = vmatprep.subr.bf16.mxu0 0
    %3211 = vmatpush2.bf16.msra.mxu0 0
    %3212 = vmatprep.subr.bf16.mxu0 0
    %3213 = vmatpush2.bf16.msra.mxu0 0
    %3214 = vmatprep.subr.bf16.mxu0 0
    %3215 = vmatpush2.bf16.msra.mxu0 0
    %3216 = vmatprep.mubr.bf16.mxu0 0
    %3217 = vmatmul.mubr.bf16.gmra.mxu0 %v3178
    %v3218 = vpop.f32.mrf.mxu0
    %v3219 = vadd.f32 0.0, %v3218
    %v3220 = vpop.f32.mrf.mxu0
    %v3221 = vpop.f32.mrf.mxu0
    %v3222 = vpop.f32.mrf.mxu0
    %3223 = vdwg.mxu0
    %v3224 = vld [vmem:[%s6] sm:$0xff]
    %3226 = vset.pattern.permute.xlu0 0
    %3227 = vperm.xlu0 %3226, %v3224
    %v3228 = vpop.permute.xlu0 %3227
    %v3230 = vadd.f32 %v3219, %v3228
    %v3231 = vxor.u32 %v3230, 2147483648
    %v3232 = vmul.f32 %v3231, 1.442695
    %v3233 = vpow.pop %v3232
    %v3234 = vadd.f32 %v3233, 1.0
    %v3235 = vrcp.pop %v3234
    %v3236 = vmul.f32 1.0, %v3235
    %v3237 = vmul.f32 %v3230, %v3236
    %v3238 = vpack.c.bf16 %v3237, %v3237
    %v3239 = vld [vmem:[%s2] sm:$0xf]
    %v3240 = vld [vmem:[%s2 + $0x4] sm:$0xf]
    %v3241 = vld [vmem:[%s2 + $0x8] sm:$0xf]
    %v3242 = vld [vmem:[%s2 + $0xc] sm:$0xf]
    %v3243 = vld [vmem:[%s2 + $0x10] sm:$0xf]
    %v3244 = vld [vmem:[%s2 + $0x14] sm:$0xf]
    %v3245 = vld [vmem:[%s2 + $0x18] sm:$0xf]
    %v3246 = vld [vmem:[%s2 + $0x1c] sm:$0xf]
    %v3247 = vld [vmem:[%s2 + $0x20] sm:$0xf]
    %v3248 = vld [vmem:[%s2 + $0x24] sm:$0xf]
    %v3249 = vld [vmem:[%s2 + $0x28] sm:$0xf]
    %v3250 = vld [vmem:[%s2 + $0x2c] sm:$0xf]
    %v3251 = vld [vmem:[%s2 + $0x30] sm:$0xf]
    %v3252 = vld [vmem:[%s2 + $0x34] sm:$0xf]
    %v3253 = vld [vmem:[%s2 + $0x38] sm:$0xf]
    %v3254 = vld [vmem:[%s2 + $0x3c] sm:$0xf]
    %v3271 = vunpack.c.l.b16 %v3239
    %v3272 = vunpack.c.l.b16 %v3240
    %v3273 = vunpack.c.l.b16 %v3241
    %v3274 = vunpack.c.l.b16 %v3242
    %v3275 = vunpack.c.l.b16 %v3243
    %v3276 = vunpack.c.l.b16 %v3244
    %v3277 = vunpack.c.l.b16 %v3245
    %v3278 = vunpack.c.l.b16 %v3246
    %v3279 = vunpack.c.l.b16 %v3247
    %v3280 = vunpack.c.l.b16 %v3248
    %v3281 = vunpack.c.l.b16 %v3249
    %v3282 = vunpack.c.l.b16 %v3250
    %v3283 = vunpack.c.l.b16 %v3251
    %v3284 = vunpack.c.l.b16 %v3252
    %v3285 = vunpack.c.l.b16 %v3253
    %v3286 = vunpack.c.l.b16 %v3254
    %v3287 = vpack.c.b16 %v3272, %v3271
    %v3288 = vpack.c.b16 %v3274, %v3273
    %v3289 = vpack.c.b16 %v3276, %v3275
    %v3290 = vpack.c.b16 %v3278, %v3277
    %v3291 = vpack.c.b16 %v3280, %v3279
    %v3292 = vpack.c.b16 %v3282, %v3281
    %v3293 = vpack.c.b16 %v3284, %v3283
    %v3294 = vpack.c.b16 %v3286, %v3285
    %3303 = vmatprep.subr.bf16.mxu0 0
    %3304 = vmatpush1.bf16.msra.mxu0 %v3294
    %3305 = vmatprep.subr.bf16.mxu0 0
    %3306 = vmatpush1.bf16.msra.mxu0 %v3293
    %3307 = vmatprep.subr.bf16.mxu0 0
    %3308 = vmatpush1.bf16.msra.mxu0 %v3292
    %3309 = vmatprep.subr.bf16.mxu0 0
    %3310 = vmatpush1.bf16.msra.mxu0 %v3291
    %3311 = vmatprep.subr.bf16.mxu0 0
    %3312 = vmatpush1.bf16.msra.mxu0 %v3290
    %3313 = vmatprep.subr.bf16.mxu0 0
    %3314 = vmatpush1.bf16.msra.mxu0 %v3289
    %3315 = vmatprep.subr.bf16.mxu0 0
    %3316 = vmatpush1.bf16.msra.mxu0 %v3288
    %3317 = vmatprep.subr.bf16.mxu0 0
    %3318 = vmatpush1.bf16.msra.mxu0 %v3287
    %3319 = vmatprep.subr.bf16.mxu0 0
    %3320 = vmatpush2.bf16.msra.mxu0 0
    %3321 = vmatprep.subr.bf16.mxu0 0
    %3322 = vmatpush2.bf16.msra.mxu0 0
    %3323 = vmatprep.subr.bf16.mxu0 0
    %3324 = vmatpush2.bf16.msra.mxu0 0
    %3325 = vmatprep.subr.bf16.mxu0 0
    %3326 = vmatpush2.bf16.msra.mxu0 0
    %3327 = vmatprep.subr.bf16.mxu0 0
    %3328 = vmatpush2.bf16.msra.mxu0 0
    %3329 = vmatprep.subr.bf16.mxu0 0
    %3330 = vmatpush2.bf16.msra.mxu0 0
    %3331 = vmatprep.subr.bf16.mxu0 0
    %3332 = vmatpush2.bf16.msra.mxu0 0
    %3333 = vmatprep.subr.bf16.mxu0 0
    %3334 = vmatpush2.bf16.msra.mxu0 0
    %3335 = vmatprep.mubr.bf16.mxu0 0
    %3336 = vmatmul.mubr.bf16.gmra.mxu0 %v3238
    %v3337 = vpop.f32.mrf.mxu0
    %v3338 = vadd.f32 0.0, %v3337
    %v3339 = vpop.f32.mrf.mxu0
    %v3340 = vpop.f32.mrf.mxu0
    %v3341 = vpop.f32.mrf.mxu0
    %3342 = vdwg.mxu0
    %s3343 = scalar_lea.vmem %s2, 64
    %v3344 = vld [vmem:[%s3343] sm:$0xf]
    %v3345 = vld [vmem:[%s3343 + $0x4] sm:$0xf]
    %v3346 = vld [vmem:[%s3343 + $0x8] sm:$0xf]
    %v3347 = vld [vmem:[%s3343 + $0xc] sm:$0xf]
    %v3348 = vld [vmem:[%s3343 + $0x10] sm:$0xf]
    %v3349 = vld [vmem:[%s3343 + $0x14] sm:$0xf]
    %v3350 = vld [vmem:[%s3343 + $0x18] sm:$0xf]
    %v3351 = vld [vmem:[%s3343 + $0x1c] sm:$0xf]
    %v3352 = vld [vmem:[%s3343 + $0x20] sm:$0xf]
    %v3353 = vld [vmem:[%s3343 + $0x24] sm:$0xf]
    %v3354 = vld [vmem:[%s3343 + $0x28] sm:$0xf]
    %v3355 = vld [vmem:[%s3343 + $0x2c] sm:$0xf]
    %v3356 = vld [vmem:[%s3343 + $0x30] sm:$0xf]
    %v3357 = vld [vmem:[%s3343 + $0x34] sm:$0xf]
    %v3358 = vld [vmem:[%s3343 + $0x38] sm:$0xf]
    %v3359 = vld [vmem:[%s3343 + $0x3c] sm:$0xf]
    %v3376 = vunpack.c.l.b16 %v3344
    %v3377 = vunpack.c.l.b16 %v3345
    %v3378 = vunpack.c.l.b16 %v3346
    %v3379 = vunpack.c.l.b16 %v3347
    %v3380 = vunpack.c.l.b16 %v3348
    %v3381 = vunpack.c.l.b16 %v3349
    %v3382 = vunpack.c.l.b16 %v3350
    %v3383 = vunpack.c.l.b16 %v3351
    %v3384 = vunpack.c.l.b16 %v3352
    %v3385 = vunpack.c.l.b16 %v3353
    %v3386 = vunpack.c.l.b16 %v3354
    %v3387 = vunpack.c.l.b16 %v3355
    %v3388 = vunpack.c.l.b16 %v3356
    %v3389 = vunpack.c.l.b16 %v3357
    %v3390 = vunpack.c.l.b16 %v3358
    %v3391 = vunpack.c.l.b16 %v3359
    %v3392 = vpack.c.b16 %v3377, %v3376
    %v3393 = vpack.c.b16 %v3379, %v3378
    %v3394 = vpack.c.b16 %v3381, %v3380
    %v3395 = vpack.c.b16 %v3383, %v3382
    %v3396 = vpack.c.b16 %v3385, %v3384
    %v3397 = vpack.c.b16 %v3387, %v3386
    %v3398 = vpack.c.b16 %v3389, %v3388
    %v3399 = vpack.c.b16 %v3391, %v3390
    %3408 = vmatprep.subr.bf16.mxu0 0
    %3409 = vmatpush1.bf16.msra.mxu0 %v3399
    %3410 = vmatprep.subr.bf16.mxu0 0
    %3411 = vmatpush1.bf16.msra.mxu0 %v3398
    %3412 = vmatprep.subr.bf16.mxu0 0
    %3413 = vmatpush1.bf16.msra.mxu0 %v3397
    %3414 = vmatprep.subr.bf16.mxu0 0
    %3415 = vmatpush1.bf16.msra.mxu0 %v3396
    %3416 = vmatprep.subr.bf16.mxu0 0
    %3417 = vmatpush1.bf16.msra.mxu0 %v3395
    %3418 = vmatprep.subr.bf16.mxu0 0
    %3419 = vmatpush1.bf16.msra.mxu0 %v3394
    %3420 = vmatprep.subr.bf16.mxu0 0
    %3421 = vmatpush1.bf16.msra.mxu0 %v3393
    %3422 = vmatprep.subr.bf16.mxu0 0
    %3423 = vmatpush1.bf16.msra.mxu0 %v3392
    %3424 = vmatprep.subr.bf16.mxu0 0
    %3425 = vmatpush2.bf16.msra.mxu0 0
    %3426 = vmatprep.subr.bf16.mxu0 0
    %3427 = vmatpush2.bf16.msra.mxu0 0
    %3428 = vmatprep.subr.bf16.mxu0 0
    %3429 = vmatpush2.bf16.msra.mxu0 0
    %3430 = vmatprep.subr.bf16.mxu0 0
    %3431 = vmatpush2.bf16.msra.mxu0 0
    %3432 = vmatprep.subr.bf16.mxu0 0
    %3433 = vmatpush2.bf16.msra.mxu0 0
    %3434 = vmatprep.subr.bf16.mxu0 0
    %3435 = vmatpush2.bf16.msra.mxu0 0
    %3436 = vmatprep.subr.bf16.mxu0 0
    %3437 = vmatpush2.bf16.msra.mxu0 0
    %3438 = vmatprep.subr.bf16.mxu0 0
    %3439 = vmatpush2.bf16.msra.mxu0 0
    %3440 = vmatprep.mubr.bf16.mxu0 0
    %3441 = vmatmul.mubr.bf16.gmra.mxu0 %v3238
    %v3442 = vpop.f32.mrf.mxu0
    %v3443 = vadd.f32 0.0, %v3442
    %v3444 = vpop.f32.mrf.mxu0
    %v3445 = vpop.f32.mrf.mxu0
    %v3446 = vpop.f32.mrf.mxu0
    %3447 = vdwg.mxu0
    %s3448 = scalar_lea.vmem %s2, 128
    %v3449 = vld [vmem:[%s3448] sm:$0xf]
    %v3450 = vld [vmem:[%s3448 + $0x4] sm:$0xf]
    %v3451 = vld [vmem:[%s3448 + $0x8] sm:$0xf]
    %v3452 = vld [vmem:[%s3448 + $0xc] sm:$0xf]
    %v3453 = vld [vmem:[%s3448 + $0x10] sm:$0xf]
    %v3454 = vld [vmem:[%s3448 + $0x14] sm:$0xf]
    %v3455 = vld [vmem:[%s3448 + $0x18] sm:$0xf]
    %v3456 = vld [vmem:[%s3448 + $0x1c] sm:$0xf]
    %v3457 = vld [vmem:[%s3448 + $0x20] sm:$0xf]
    %v3458 = vld [vmem:[%s3448 + $0x24] sm:$0xf]
    %v3459 = vld [vmem:[%s3448 + $0x28] sm:$0xf]
    %v3460 = vld [vmem:[%s3448 + $0x2c] sm:$0xf]
    %v3461 = vld [vmem:[%s3448 + $0x30] sm:$0xf]
    %v3462 = vld [vmem:[%s3448 + $0x34] sm:$0xf]
    %v3463 = vld [vmem:[%s3448 + $0x38] sm:$0xf]
    %v3464 = vld [vmem:[%s3448 + $0x3c] sm:$0xf]
    %v3481 = vunpack.c.l.b16 %v3449
    %v3482 = vunpack.c.l.b16 %v3450
    %v3483 = vunpack.c.l.b16 %v3451
    %v3484 = vunpack.c.l.b16 %v3452
    %v3485 = vunpack.c.l.b16 %v3453
    %v3486 = vunpack.c.l.b16 %v3454
    %v3487 = vunpack.c.l.b16 %v3455
    %v3488 = vunpack.c.l.b16 %v3456
    %v3489 = vunpack.c.l.b16 %v3457
    %v3490 = vunpack.c.l.b16 %v3458
    %v3491 = vunpack.c.l.b16 %v3459
    %v3492 = vunpack.c.l.b16 %v3460
    %v3493 = vunpack.c.l.b16 %v3461
    %v3494 = vunpack.c.l.b16 %v3462
    %v3495 = vunpack.c.l.b16 %v3463
    %v3496 = vunpack.c.l.b16 %v3464
    %v3497 = vpack.c.b16 %v3482, %v3481
    %v3498 = vpack.c.b16 %v3484, %v3483
    %v3499 = vpack.c.b16 %v3486, %v3485
    %v3500 = vpack.c.b16 %v3488, %v3487
    %v3501 = vpack.c.b16 %v3490, %v3489
    %v3502 = vpack.c.b16 %v3492, %v3491
    %v3503 = vpack.c.b16 %v3494, %v3493
    %v3504 = vpack.c.b16 %v3496, %v3495
    %3513 = vmatprep.subr.bf16.mxu0 0
    %3514 = vmatpush1.bf16.msra.mxu0 %v3504
    %3515 = vmatprep.subr.bf16.mxu0 0
    %3516 = vmatpush1.bf16.msra.mxu0 %v3503
    %3517 = vmatprep.subr.bf16.mxu0 0
    %3518 = vmatpush1.bf16.msra.mxu0 %v3502
    %3519 = vmatprep.subr.bf16.mxu0 0
    %3520 = vmatpush1.bf16.msra.mxu0 %v3501
    %3521 = vmatprep.subr.bf16.mxu0 0
    %3522 = vmatpush1.bf16.msra.mxu0 %v3500
    %3523 = vmatprep.subr.bf16.mxu0 0
    %3524 = vmatpush1.bf16.msra.mxu0 %v3499
    %3525 = vmatprep.subr.bf16.mxu0 0
    %3526 = vmatpush1.bf16.msra.mxu0 %v3498
    %3527 = vmatprep.subr.bf16.mxu0 0
    %3528 = vmatpush1.bf16.msra.mxu0 %v3497
    %3529 = vmatprep.subr.bf16.mxu0 0
    %3530 = vmatpush2.bf16.msra.mxu0 0
    %3531 = vmatprep.subr.bf16.mxu0 0
    %3532 = vmatpush2.bf16.msra.mxu0 0
    %3533 = vmatprep.subr.bf16.mxu0 0
    %3534 = vmatpush2.bf16.msra.mxu0 0
    %3535 = vmatprep.subr.bf16.mxu0 0
    %3536 = vmatpush2.bf16.msra.mxu0 0
    %3537 = vmatprep.subr.bf16.mxu0 0
    %3538 = vmatpush2.bf16.msra.mxu0 0
    %3539 = vmatprep.subr.bf16.mxu0 0
    %3540 = vmatpush2.bf16.msra.mxu0 0
    %3541 = vmatprep.subr.bf16.mxu0 0
    %3542 = vmatpush2.bf16.msra.mxu0 0
    %3543 = vmatprep.subr.bf16.mxu0 0
    %3544 = vmatpush2.bf16.msra.mxu0 0
    %3545 = vmatprep.mubr.bf16.mxu0 0
    %3546 = vmatmul.mubr.bf16.gmra.mxu0 %v3238
    %v3547 = vpop.f32.mrf.mxu0
    %v3548 = vadd.f32 0.0, %v3547
    %v3549 = vpop.f32.mrf.mxu0
    %v3550 = vpop.f32.mrf.mxu0
    %v3551 = vpop.f32.mrf.mxu0
    %3552 = vdwg.mxu0
    %s3553 = scalar_lea.vmem %s2, 192
    %v3554 = vld [vmem:[%s3553] sm:$0xf]
    %v3555 = vld [vmem:[%s3553 + $0x4] sm:$0xf]
    %v3556 = vld [vmem:[%s3553 + $0x8] sm:$0xf]
    %v3557 = vld [vmem:[%s3553 + $0xc] sm:$0xf]
    %v3558 = vld [vmem:[%s3553 + $0x10] sm:$0xf]
    %v3559 = vld [vmem:[%s3553 + $0x14] sm:$0xf]
    %v3560 = vld [vmem:[%s3553 + $0x18] sm:$0xf]
    %v3561 = vld [vmem:[%s3553 + $0x1c] sm:$0xf]
    %v3562 = vld [vmem:[%s3553 + $0x20] sm:$0xf]
    %v3563 = vld [vmem:[%s3553 + $0x24] sm:$0xf]
    %v3564 = vld [vmem:[%s3553 + $0x28] sm:$0xf]
    %v3565 = vld [vmem:[%s3553 + $0x2c] sm:$0xf]
    %v3566 = vld [vmem:[%s3553 + $0x30] sm:$0xf]
    %v3567 = vld [vmem:[%s3553 + $0x34] sm:$0xf]
    %v3568 = vld [vmem:[%s3553 + $0x38] sm:$0xf]
    %v3569 = vld [vmem:[%s3553 + $0x3c] sm:$0xf]
    %v3586 = vunpack.c.l.b16 %v3554
    %v3587 = vunpack.c.l.b16 %v3555
    %v3588 = vunpack.c.l.b16 %v3556
    %v3589 = vunpack.c.l.b16 %v3557
    %v3590 = vunpack.c.l.b16 %v3558
    %v3591 = vunpack.c.l.b16 %v3559
    %v3592 = vunpack.c.l.b16 %v3560
    %v3593 = vunpack.c.l.b16 %v3561
    %v3594 = vunpack.c.l.b16 %v3562
    %v3595 = vunpack.c.l.b16 %v3563
    %v3596 = vunpack.c.l.b16 %v3564
    %v3597 = vunpack.c.l.b16 %v3565
    %v3598 = vunpack.c.l.b16 %v3566
    %v3599 = vunpack.c.l.b16 %v3567
    %v3600 = vunpack.c.l.b16 %v3568
    %v3601 = vunpack.c.l.b16 %v3569
    %v3602 = vpack.c.b16 %v3587, %v3586
    %v3603 = vpack.c.b16 %v3589, %v3588
    %v3604 = vpack.c.b16 %v3591, %v3590
    %v3605 = vpack.c.b16 %v3593, %v3592
    %v3606 = vpack.c.b16 %v3595, %v3594
    %v3607 = vpack.c.b16 %v3597, %v3596
    %v3608 = vpack.c.b16 %v3599, %v3598
    %v3609 = vpack.c.b16 %v3601, %v3600
    %3618 = vmatprep.subr.bf16.mxu0 0
    %3619 = vmatpush1.bf16.msra.mxu0 %v3609
    %3620 = vmatprep.subr.bf16.mxu0 0
    %3621 = vmatpush1.bf16.msra.mxu0 %v3608
    %3622 = vmatprep.subr.bf16.mxu0 0
    %3623 = vmatpush1.bf16.msra.mxu0 %v3607
    %3624 = vmatprep.subr.bf16.mxu0 0
    %3625 = vmatpush1.bf16.msra.mxu0 %v3606
    %3626 = vmatprep.subr.bf16.mxu0 0
    %3627 = vmatpush1.bf16.msra.mxu0 %v3605
    %3628 = vmatprep.subr.bf16.mxu0 0
    %3629 = vmatpush1.bf16.msra.mxu0 %v3604
    %3630 = vmatprep.subr.bf16.mxu0 0
    %3631 = vmatpush1.bf16.msra.mxu0 %v3603
    %3632 = vmatprep.subr.bf16.mxu0 0
    %3633 = vmatpush1.bf16.msra.mxu0 %v3602
    %3634 = vmatprep.subr.bf16.mxu0 0
    %3635 = vmatpush2.bf16.msra.mxu0 0
    %3636 = vmatprep.subr.bf16.mxu0 0
    %3637 = vmatpush2.bf16.msra.mxu0 0
    %3638 = vmatprep.subr.bf16.mxu0 0
    %3639 = vmatpush2.bf16.msra.mxu0 0
    %3640 = vmatprep.subr.bf16.mxu0 0
    %3641 = vmatpush2.bf16.msra.mxu0 0
    %3642 = vmatprep.subr.bf16.mxu0 0
    %3643 = vmatpush2.bf16.msra.mxu0 0
    %3644 = vmatprep.subr.bf16.mxu0 0
    %3645 = vmatpush2.bf16.msra.mxu0 0
    %3646 = vmatprep.subr.bf16.mxu0 0
    %3647 = vmatpush2.bf16.msra.mxu0 0
    %3648 = vmatprep.subr.bf16.mxu0 0
    %3649 = vmatpush2.bf16.msra.mxu0 0
    %3650 = vmatprep.mubr.bf16.mxu0 0
    %3651 = vmatmul.mubr.bf16.gmra.mxu0 %v3238
    %v3652 = vpop.f32.mrf.mxu0
    %v3653 = vadd.f32 0.0, %v3652
    %v3654 = vpop.f32.mrf.mxu0
    %v3655 = vpop.f32.mrf.mxu0
    %v3656 = vpop.f32.mrf.mxu0
    %3657 = vdwg.mxu0
    %s3658 = scalar_lea.vmem %s2, 256
    %v3659 = vld [vmem:[%s3658] sm:$0xf]
    %v3660 = vld [vmem:[%s3658 + $0x4] sm:$0xf]
    %v3661 = vld [vmem:[%s3658 + $0x8] sm:$0xf]
    %v3662 = vld [vmem:[%s3658 + $0xc] sm:$0xf]
    %v3663 = vld [vmem:[%s3658 + $0x10] sm:$0xf]
    %v3664 = vld [vmem:[%s3658 + $0x14] sm:$0xf]
    %v3665 = vld [vmem:[%s3658 + $0x18] sm:$0xf]
    %v3666 = vld [vmem:[%s3658 + $0x1c] sm:$0xf]
    %v3667 = vld [vmem:[%s3658 + $0x20] sm:$0xf]
    %v3668 = vld [vmem:[%s3658 + $0x24] sm:$0xf]
    %v3669 = vld [vmem:[%s3658 + $0x28] sm:$0xf]
    %v3670 = vld [vmem:[%s3658 + $0x2c] sm:$0xf]
    %v3671 = vld [vmem:[%s3658 + $0x30] sm:$0xf]
    %v3672 = vld [vmem:[%s3658 + $0x34] sm:$0xf]
    %v3673 = vld [vmem:[%s3658 + $0x38] sm:$0xf]
    %v3674 = vld [vmem:[%s3658 + $0x3c] sm:$0xf]
    %v3691 = vunpack.c.l.b16 %v3659
    %v3692 = vunpack.c.l.b16 %v3660
    %v3693 = vunpack.c.l.b16 %v3661
    %v3694 = vunpack.c.l.b16 %v3662
    %v3695 = vunpack.c.l.b16 %v3663
    %v3696 = vunpack.c.l.b16 %v3664
    %v3697 = vunpack.c.l.b16 %v3665
    %v3698 = vunpack.c.l.b16 %v3666
    %v3699 = vunpack.c.l.b16 %v3667
    %v3700 = vunpack.c.l.b16 %v3668
    %v3701 = vunpack.c.l.b16 %v3669
    %v3702 = vunpack.c.l.b16 %v3670
    %v3703 = vunpack.c.l.b16 %v3671
    %v3704 = vunpack.c.l.b16 %v3672
    %v3705 = vunpack.c.l.b16 %v3673
    %v3706 = vunpack.c.l.b16 %v3674
    %v3707 = vpack.c.b16 %v3692, %v3691
    %v3708 = vpack.c.b16 %v3694, %v3693
    %v3709 = vpack.c.b16 %v3696, %v3695
    %v3710 = vpack.c.b16 %v3698, %v3697
    %v3711 = vpack.c.b16 %v3700, %v3699
    %v3712 = vpack.c.b16 %v3702, %v3701
    %v3713 = vpack.c.b16 %v3704, %v3703
    %v3714 = vpack.c.b16 %v3706, %v3705
    %3723 = vmatprep.subr.bf16.mxu0 0
    %3724 = vmatpush1.bf16.msra.mxu0 %v3714
    %3725 = vmatprep.subr.bf16.mxu0 0
    %3726 = vmatpush1.bf16.msra.mxu0 %v3713
    %3727 = vmatprep.subr.bf16.mxu0 0
    %3728 = vmatpush1.bf16.msra.mxu0 %v3712
    %3729 = vmatprep.subr.bf16.mxu0 0
    %3730 = vmatpush1.bf16.msra.mxu0 %v3711
    %3731 = vmatprep.subr.bf16.mxu0 0
    %3732 = vmatpush1.bf16.msra.mxu0 %v3710
    %3733 = vmatprep.subr.bf16.mxu0 0
    %3734 = vmatpush1.bf16.msra.mxu0 %v3709
    %3735 = vmatprep.subr.bf16.mxu0 0
    %3736 = vmatpush1.bf16.msra.mxu0 %v3708
    %3737 = vmatprep.subr.bf16.mxu0 0
    %3738 = vmatpush1.bf16.msra.mxu0 %v3707
    %3739 = vmatprep.subr.bf16.mxu0 0
    %3740 = vmatpush2.bf16.msra.mxu0 0
    %3741 = vmatprep.subr.bf16.mxu0 0
    %3742 = vmatpush2.bf16.msra.mxu0 0
    %3743 = vmatprep.subr.bf16.mxu0 0
    %3744 = vmatpush2.bf16.msra.mxu0 0
    %3745 = vmatprep.subr.bf16.mxu0 0
    %3746 = vmatpush2.bf16.msra.mxu0 0
    %3747 = vmatprep.subr.bf16.mxu0 0
    %3748 = vmatpush2.bf16.msra.mxu0 0
    %3749 = vmatprep.subr.bf16.mxu0 0
    %3750 = vmatpush2.bf16.msra.mxu0 0
    %3751 = vmatprep.subr.bf16.mxu0 0
    %3752 = vmatpush2.bf16.msra.mxu0 0
    %3753 = vmatprep.subr.bf16.mxu0 0
    %3754 = vmatpush2.bf16.msra.mxu0 0
    %3755 = vmatprep.mubr.bf16.mxu0 0
    %3756 = vmatmul.mubr.bf16.gmra.mxu0 %v3238
    %v3757 = vpop.f32.mrf.mxu0
    %v3758 = vadd.f32 0.0, %v3757
    %v3759 = vpop.f32.mrf.mxu0
    %v3760 = vpop.f32.mrf.mxu0
    %v3761 = vpop.f32.mrf.mxu0
    %3762 = vdwg.mxu0
    %s3763 = scalar_lea.vmem %s2, 320
    %v3764 = vld [vmem:[%s3763] sm:$0xf]
    %v3765 = vld [vmem:[%s3763 + $0x4] sm:$0xf]
    %v3766 = vld [vmem:[%s3763 + $0x8] sm:$0xf]
    %v3767 = vld [vmem:[%s3763 + $0xc] sm:$0xf]
    %v3768 = vld [vmem:[%s3763 + $0x10] sm:$0xf]
    %v3769 = vld [vmem:[%s3763 + $0x14] sm:$0xf]
    %v3770 = vld [vmem:[%s3763 + $0x18] sm:$0xf]
    %v3771 = vld [vmem:[%s3763 + $0x1c] sm:$0xf]
    %v3772 = vld [vmem:[%s3763 + $0x20] sm:$0xf]
    %v3773 = vld [vmem:[%s3763 + $0x24] sm:$0xf]
    %v3774 = vld [vmem:[%s3763 + $0x28] sm:$0xf]
    %v3775 = vld [vmem:[%s3763 + $0x2c] sm:$0xf]
    %v3776 = vld [vmem:[%s3763 + $0x30] sm:$0xf]
    %v3777 = vld [vmem:[%s3763 + $0x34] sm:$0xf]
    %v3778 = vld [vmem:[%s3763 + $0x38] sm:$0xf]
    %v3779 = vld [vmem:[%s3763 + $0x3c] sm:$0xf]
    %v3796 = vunpack.c.l.b16 %v3764
    %v3797 = vunpack.c.l.b16 %v3765
    %v3798 = vunpack.c.l.b16 %v3766
    %v3799 = vunpack.c.l.b16 %v3767
    %v3800 = vunpack.c.l.b16 %v3768
    %v3801 = vunpack.c.l.b16 %v3769
    %v3802 = vunpack.c.l.b16 %v3770
    %v3803 = vunpack.c.l.b16 %v3771
    %v3804 = vunpack.c.l.b16 %v3772
    %v3805 = vunpack.c.l.b16 %v3773
    %v3806 = vunpack.c.l.b16 %v3774
    %v3807 = vunpack.c.l.b16 %v3775
    %v3808 = vunpack.c.l.b16 %v3776
    %v3809 = vunpack.c.l.b16 %v3777
    %v3810 = vunpack.c.l.b16 %v3778
    %v3811 = vunpack.c.l.b16 %v3779
    %v3812 = vpack.c.b16 %v3797, %v3796
    %v3813 = vpack.c.b16 %v3799, %v3798
    %v3814 = vpack.c.b16 %v3801, %v3800
    %v3815 = vpack.c.b16 %v3803, %v3802
    %v3816 = vpack.c.b16 %v3805, %v3804
    %v3817 = vpack.c.b16 %v3807, %v3806
    %v3818 = vpack.c.b16 %v3809, %v3808
    %v3819 = vpack.c.b16 %v3811, %v3810
    %3828 = vmatprep.subr.bf16.mxu0 0
    %3829 = vmatpush1.bf16.msra.mxu0 %v3819
    %3830 = vmatprep.subr.bf16.mxu0 0
    %3831 = vmatpush1.bf16.msra.mxu0 %v3818
    %3832 = vmatprep.subr.bf16.mxu0 0
    %3833 = vmatpush1.bf16.msra.mxu0 %v3817
    %3834 = vmatprep.subr.bf16.mxu0 0
    %3835 = vmatpush1.bf16.msra.mxu0 %v3816
    %3836 = vmatprep.subr.bf16.mxu0 0
    %3837 = vmatpush1.bf16.msra.mxu0 %v3815
    %3838 = vmatprep.subr.bf16.mxu0 0
    %3839 = vmatpush1.bf16.msra.mxu0 %v3814
    %3840 = vmatprep.subr.bf16.mxu0 0
    %3841 = vmatpush1.bf16.msra.mxu0 %v3813
    %3842 = vmatprep.subr.bf16.mxu0 0
    %3843 = vmatpush1.bf16.msra.mxu0 %v3812
    %3844 = vmatprep.subr.bf16.mxu0 0
    %3845 = vmatpush2.bf16.msra.mxu0 0
    %3846 = vmatprep.subr.bf16.mxu0 0
    %3847 = vmatpush2.bf16.msra.mxu0 0
    %3848 = vmatprep.subr.bf16.mxu0 0
    %3849 = vmatpush2.bf16.msra.mxu0 0
    %3850 = vmatprep.subr.bf16.mxu0 0
    %3851 = vmatpush2.bf16.msra.mxu0 0
    %3852 = vmatprep.subr.bf16.mxu0 0
    %3853 = vmatpush2.bf16.msra.mxu0 0
    %3854 = vmatprep.subr.bf16.mxu0 0
    %3855 = vmatpush2.bf16.msra.mxu0 0
    %3856 = vmatprep.subr.bf16.mxu0 0
    %3857 = vmatpush2.bf16.msra.mxu0 0
    %3858 = vmatprep.subr.bf16.mxu0 0
    %3859 = vmatpush2.bf16.msra.mxu0 0
    %3860 = vmatprep.mubr.bf16.mxu0 0
    %3861 = vmatmul.mubr.bf16.gmra.mxu0 %v3238
    %v3862 = vpop.f32.mrf.mxu0
    %v3863 = vadd.f32 0.0, %v3862
    %v3864 = vpop.f32.mrf.mxu0
    %v3865 = vpop.f32.mrf.mxu0
    %v3866 = vpop.f32.mrf.mxu0
    %3867 = vdwg.mxu0
    %s3868 = scalar_lea.vmem %s2, 384
    %v3869 = vld [vmem:[%s3868] sm:$0xf]
    %v3870 = vld [vmem:[%s3868 + $0x4] sm:$0xf]
    %v3871 = vld [vmem:[%s3868 + $0x8] sm:$0xf]
    %v3872 = vld [vmem:[%s3868 + $0xc] sm:$0xf]
    %v3873 = vld [vmem:[%s3868 + $0x10] sm:$0xf]
    %v3874 = vld [vmem:[%s3868 + $0x14] sm:$0xf]
    %v3875 = vld [vmem:[%s3868 + $0x18] sm:$0xf]
    %v3876 = vld [vmem:[%s3868 + $0x1c] sm:$0xf]
    %v3877 = vld [vmem:[%s3868 + $0x20] sm:$0xf]
    %v3878 = vld [vmem:[%s3868 + $0x24] sm:$0xf]
    %v3879 = vld [vmem:[%s3868 + $0x28] sm:$0xf]
    %v3880 = vld [vmem:[%s3868 + $0x2c] sm:$0xf]
    %v3881 = vld [vmem:[%s3868 + $0x30] sm:$0xf]
    %v3882 = vld [vmem:[%s3868 + $0x34] sm:$0xf]
    %v3883 = vld [vmem:[%s3868 + $0x38] sm:$0xf]
    %v3884 = vld [vmem:[%s3868 + $0x3c] sm:$0xf]
    %v3901 = vunpack.c.l.b16 %v3869
    %v3902 = vunpack.c.l.b16 %v3870
    %v3903 = vunpack.c.l.b16 %v3871
    %v3904 = vunpack.c.l.b16 %v3872
    %v3905 = vunpack.c.l.b16 %v3873
    %v3906 = vunpack.c.l.b16 %v3874
    %v3907 = vunpack.c.l.b16 %v3875
    %v3908 = vunpack.c.l.b16 %v3876
    %v3909 = vunpack.c.l.b16 %v3877
    %v3910 = vunpack.c.l.b16 %v3878
    %v3911 = vunpack.c.l.b16 %v3879
    %v3912 = vunpack.c.l.b16 %v3880
    %v3913 = vunpack.c.l.b16 %v3881
    %v3914 = vunpack.c.l.b16 %v3882
    %v3915 = vunpack.c.l.b16 %v3883
    %v3916 = vunpack.c.l.b16 %v3884
    %v3917 = vpack.c.b16 %v3902, %v3901
    %v3918 = vpack.c.b16 %v3904, %v3903
    %v3919 = vpack.c.b16 %v3906, %v3905
    %v3920 = vpack.c.b16 %v3908, %v3907
    %v3921 = vpack.c.b16 %v3910, %v3909
    %v3922 = vpack.c.b16 %v3912, %v3911
    %v3923 = vpack.c.b16 %v3914, %v3913
    %v3924 = vpack.c.b16 %v3916, %v3915
    %3933 = vmatprep.subr.bf16.mxu0 0
    %3934 = vmatpush1.bf16.msra.mxu0 %v3924
    %3935 = vmatprep.subr.bf16.mxu0 0
    %3936 = vmatpush1.bf16.msra.mxu0 %v3923
    %3937 = vmatprep.subr.bf16.mxu0 0
    %3938 = vmatpush1.bf16.msra.mxu0 %v3922
    %3939 = vmatprep.subr.bf16.mxu0 0
    %3940 = vmatpush1.bf16.msra.mxu0 %v3921
    %3941 = vmatprep.subr.bf16.mxu0 0
    %3942 = vmatpush1.bf16.msra.mxu0 %v3920
    %3943 = vmatprep.subr.bf16.mxu0 0
    %3944 = vmatpush1.bf16.msra.mxu0 %v3919
    %3945 = vmatprep.subr.bf16.mxu0 0
    %3946 = vmatpush1.bf16.msra.mxu0 %v3918
    %3947 = vmatprep.subr.bf16.mxu0 0
    %3948 = vmatpush1.bf16.msra.mxu0 %v3917
    %3949 = vmatprep.subr.bf16.mxu0 0
    %3950 = vmatpush2.bf16.msra.mxu0 0
    %3951 = vmatprep.subr.bf16.mxu0 0
    %3952 = vmatpush2.bf16.msra.mxu0 0
    %3953 = vmatprep.subr.bf16.mxu0 0
    %3954 = vmatpush2.bf16.msra.mxu0 0
    %3955 = vmatprep.subr.bf16.mxu0 0
    %3956 = vmatpush2.bf16.msra.mxu0 0
    %3957 = vmatprep.subr.bf16.mxu0 0
    %3958 = vmatpush2.bf16.msra.mxu0 0
    %3959 = vmatprep.subr.bf16.mxu0 0
    %3960 = vmatpush2.bf16.msra.mxu0 0
    %3961 = vmatprep.subr.bf16.mxu0 0
    %3962 = vmatpush2.bf16.msra.mxu0 0
    %3963 = vmatprep.subr.bf16.mxu0 0
    %3964 = vmatpush2.bf16.msra.mxu0 0
    %3965 = vmatprep.mubr.bf16.mxu0 0
    %3966 = vmatmul.mubr.bf16.gmra.mxu0 %v3238
    %v3967 = vpop.f32.mrf.mxu0
    %v3968 = vadd.f32 0.0, %v3967
    %v3969 = vpop.f32.mrf.mxu0
    %v3970 = vpop.f32.mrf.mxu0
    %v3971 = vpop.f32.mrf.mxu0
    %3972 = vdwg.mxu0
    %s3973 = scalar_lea.vmem %s2, 448
    %v3974 = vld [vmem:[%s3973] sm:$0xf]
    %v3975 = vld [vmem:[%s3973 + $0x4] sm:$0xf]
    %v3976 = vld [vmem:[%s3973 + $0x8] sm:$0xf]
    %v3977 = vld [vmem:[%s3973 + $0xc] sm:$0xf]
    %v3978 = vld [vmem:[%s3973 + $0x10] sm:$0xf]
    %v3979 = vld [vmem:[%s3973 + $0x14] sm:$0xf]
    %v3980 = vld [vmem:[%s3973 + $0x18] sm:$0xf]
    %v3981 = vld [vmem:[%s3973 + $0x1c] sm:$0xf]
    %v3982 = vld [vmem:[%s3973 + $0x20] sm:$0xf]
    %v3983 = vld [vmem:[%s3973 + $0x24] sm:$0xf]
    %v3984 = vld [vmem:[%s3973 + $0x28] sm:$0xf]
    %v3985 = vld [vmem:[%s3973 + $0x2c] sm:$0xf]
    %v3986 = vld [vmem:[%s3973 + $0x30] sm:$0xf]
    %v3987 = vld [vmem:[%s3973 + $0x34] sm:$0xf]
    %v3988 = vld [vmem:[%s3973 + $0x38] sm:$0xf]
    %v3989 = vld [vmem:[%s3973 + $0x3c] sm:$0xf]
    %v4006 = vunpack.c.l.b16 %v3974
    %v4007 = vunpack.c.l.b16 %v3975
    %v4008 = vunpack.c.l.b16 %v3976
    %v4009 = vunpack.c.l.b16 %v3977
    %v4010 = vunpack.c.l.b16 %v3978
    %v4011 = vunpack.c.l.b16 %v3979
    %v4012 = vunpack.c.l.b16 %v3980
    %v4013 = vunpack.c.l.b16 %v3981
    %v4014 = vunpack.c.l.b16 %v3982
    %v4015 = vunpack.c.l.b16 %v3983
    %v4016 = vunpack.c.l.b16 %v3984
    %v4017 = vunpack.c.l.b16 %v3985
    %v4018 = vunpack.c.l.b16 %v3986
    %v4019 = vunpack.c.l.b16 %v3987
    %v4020 = vunpack.c.l.b16 %v3988
    %v4021 = vunpack.c.l.b16 %v3989
    %v4022 = vpack.c.b16 %v4007, %v4006
    %v4023 = vpack.c.b16 %v4009, %v4008
    %v4024 = vpack.c.b16 %v4011, %v4010
    %v4025 = vpack.c.b16 %v4013, %v4012
    %v4026 = vpack.c.b16 %v4015, %v4014
    %v4027 = vpack.c.b16 %v4017, %v4016
    %v4028 = vpack.c.b16 %v4019, %v4018
    %v4029 = vpack.c.b16 %v4021, %v4020
    %4038 = vmatprep.subr.bf16.mxu0 0
    %4039 = vmatpush1.bf16.msra.mxu0 %v4029
    %4040 = vmatprep.subr.bf16.mxu0 0
    %4041 = vmatpush1.bf16.msra.mxu0 %v4028
    %4042 = vmatprep.subr.bf16.mxu0 0
    %4043 = vmatpush1.bf16.msra.mxu0 %v4027
    %4044 = vmatprep.subr.bf16.mxu0 0
    %4045 = vmatpush1.bf16.msra.mxu0 %v4026
    %4046 = vmatprep.subr.bf16.mxu0 0
    %4047 = vmatpush1.bf16.msra.mxu0 %v4025
    %4048 = vmatprep.subr.bf16.mxu0 0
    %4049 = vmatpush1.bf16.msra.mxu0 %v4024
    %4050 = vmatprep.subr.bf16.mxu0 0
    %4051 = vmatpush1.bf16.msra.mxu0 %v4023
    %4052 = vmatprep.subr.bf16.mxu0 0
    %4053 = vmatpush1.bf16.msra.mxu0 %v4022
    %4054 = vmatprep.subr.bf16.mxu0 0
    %4055 = vmatpush2.bf16.msra.mxu0 0
    %4056 = vmatprep.subr.bf16.mxu0 0
    %4057 = vmatpush2.bf16.msra.mxu0 0
    %4058 = vmatprep.subr.bf16.mxu0 0
    %4059 = vmatpush2.bf16.msra.mxu0 0
    %4060 = vmatprep.subr.bf16.mxu0 0
    %4061 = vmatpush2.bf16.msra.mxu0 0
    %4062 = vmatprep.subr.bf16.mxu0 0
    %4063 = vmatpush2.bf16.msra.mxu0 0
    %4064 = vmatprep.subr.bf16.mxu0 0
    %4065 = vmatpush2.bf16.msra.mxu0 0
    %4066 = vmatprep.subr.bf16.mxu0 0
    %4067 = vmatpush2.bf16.msra.mxu0 0
    %4068 = vmatprep.subr.bf16.mxu0 0
    %4069 = vmatpush2.bf16.msra.mxu0 0
    %4070 = vmatprep.mubr.bf16.mxu0 0
    %4071 = vmatmul.mubr.bf16.gmra.mxu0 %v3238
    %v4072 = vpop.f32.mrf.mxu0
    %v4073 = vadd.f32 0.0, %v4072
    %v4074 = vpop.f32.mrf.mxu0
    %v4075 = vpop.f32.mrf.mxu0
    %v4076 = vpop.f32.mrf.mxu0
    %4077 = vdwg.mxu0
    %s4078 = scalar_lea.vmem %s2, 512
    %v4079 = vld [vmem:[%s4078] sm:$0xf]
    %v4080 = vld [vmem:[%s4078 + $0x4] sm:$0xf]
    %v4081 = vld [vmem:[%s4078 + $0x8] sm:$0xf]
    %v4082 = vld [vmem:[%s4078 + $0xc] sm:$0xf]
    %v4083 = vld [vmem:[%s4078 + $0x10] sm:$0xf]
    %v4084 = vld [vmem:[%s4078 + $0x14] sm:$0xf]
    %v4085 = vld [vmem:[%s4078 + $0x18] sm:$0xf]
    %v4086 = vld [vmem:[%s4078 + $0x1c] sm:$0xf]
    %v4087 = vld [vmem:[%s4078 + $0x20] sm:$0xf]
    %v4088 = vld [vmem:[%s4078 + $0x24] sm:$0xf]
    %v4089 = vld [vmem:[%s4078 + $0x28] sm:$0xf]
    %v4090 = vld [vmem:[%s4078 + $0x2c] sm:$0xf]
    %v4091 = vld [vmem:[%s4078 + $0x30] sm:$0xf]
    %v4092 = vld [vmem:[%s4078 + $0x34] sm:$0xf]
    %v4093 = vld [vmem:[%s4078 + $0x38] sm:$0xf]
    %v4094 = vld [vmem:[%s4078 + $0x3c] sm:$0xf]
    %v4111 = vunpack.c.l.b16 %v4079
    %v4112 = vunpack.c.l.b16 %v4080
    %v4113 = vunpack.c.l.b16 %v4081
    %v4114 = vunpack.c.l.b16 %v4082
    %v4115 = vunpack.c.l.b16 %v4083
    %v4116 = vunpack.c.l.b16 %v4084
    %v4117 = vunpack.c.l.b16 %v4085
    %v4118 = vunpack.c.l.b16 %v4086
    %v4119 = vunpack.c.l.b16 %v4087
    %v4120 = vunpack.c.l.b16 %v4088
    %v4121 = vunpack.c.l.b16 %v4089
    %v4122 = vunpack.c.l.b16 %v4090
    %v4123 = vunpack.c.l.b16 %v4091
    %v4124 = vunpack.c.l.b16 %v4092
    %v4125 = vunpack.c.l.b16 %v4093
    %v4126 = vunpack.c.l.b16 %v4094
    %v4127 = vpack.c.b16 %v4112, %v4111
    %v4128 = vpack.c.b16 %v4114, %v4113
    %v4129 = vpack.c.b16 %v4116, %v4115
    %v4130 = vpack.c.b16 %v4118, %v4117
    %v4131 = vpack.c.b16 %v4120, %v4119
    %v4132 = vpack.c.b16 %v4122, %v4121
    %v4133 = vpack.c.b16 %v4124, %v4123
    %v4134 = vpack.c.b16 %v4126, %v4125
    %4143 = vmatprep.subr.bf16.mxu0 0
    %4144 = vmatpush1.bf16.msra.mxu0 %v4134
    %4145 = vmatprep.subr.bf16.mxu0 0
    %4146 = vmatpush1.bf16.msra.mxu0 %v4133
    %4147 = vmatprep.subr.bf16.mxu0 0
    %4148 = vmatpush1.bf16.msra.mxu0 %v4132
    %4149 = vmatprep.subr.bf16.mxu0 0
    %4150 = vmatpush1.bf16.msra.mxu0 %v4131
    %4151 = vmatprep.subr.bf16.mxu0 0
    %4152 = vmatpush1.bf16.msra.mxu0 %v4130
    %4153 = vmatprep.subr.bf16.mxu0 0
    %4154 = vmatpush1.bf16.msra.mxu0 %v4129
    %4155 = vmatprep.subr.bf16.mxu0 0
    %4156 = vmatpush1.bf16.msra.mxu0 %v4128
    %4157 = vmatprep.subr.bf16.mxu0 0
    %4158 = vmatpush1.bf16.msra.mxu0 %v4127
    %4159 = vmatprep.subr.bf16.mxu0 0
    %4160 = vmatpush2.bf16.msra.mxu0 0
    %4161 = vmatprep.subr.bf16.mxu0 0
    %4162 = vmatpush2.bf16.msra.mxu0 0
    %4163 = vmatprep.subr.bf16.mxu0 0
    %4164 = vmatpush2.bf16.msra.mxu0 0
    %4165 = vmatprep.subr.bf16.mxu0 0
    %4166 = vmatpush2.bf16.msra.mxu0 0
    %4167 = vmatprep.subr.bf16.mxu0 0
    %4168 = vmatpush2.bf16.msra.mxu0 0
    %4169 = vmatprep.subr.bf16.mxu0 0
    %4170 = vmatpush2.bf16.msra.mxu0 0
    %4171 = vmatprep.subr.bf16.mxu0 0
    %4172 = vmatpush2.bf16.msra.mxu0 0
    %4173 = vmatprep.subr.bf16.mxu0 0
    %4174 = vmatpush2.bf16.msra.mxu0 0
    %4175 = vmatprep.mubr.bf16.mxu0 0
    %4176 = vmatmul.mubr.bf16.gmra.mxu0 %v3238
    %v4177 = vpop.f32.mrf.mxu0
    %v4178 = vadd.f32 0.0, %v4177
    %v4179 = vpop.f32.mrf.mxu0
    %v4180 = vpop.f32.mrf.mxu0
    %v4181 = vpop.f32.mrf.mxu0
    %4182 = vdwg.mxu0
    %v4183 = vpack.c.bf16 %v3443, %v3338
    %v4184 = vpack.c.bf16 %v3653, %v3548
    %v4185 = vpack.c.bf16 %v3863, %v3758
    %v4186 = vpack.c.bf16 %v4073, %v3968
    %v4187 = vpack.c.bf16 %v4178, %v4178
    %v4188 = vld [vmem:[#allocation10 + $0x4] sm:$0xf]
    %v4189 = vld [vmem:[#allocation10 + $0x1c] sm:$0xf]
    %v4190 = vld [vmem:[%s6 + $0x8] sm:$0xff]
    %v4191 = vld [vmem:[%s6 + $0x10] sm:$0xff]
    %4193 = vset.pattern.permute.xlu0 0
    %4194 = vperm.xlu0 %4193, %v4190
    %v4195 = vpop.permute.xlu0 %4194
    %4198 = vset.pattern.permute.xlu0 0
    %4199 = vperm.xlu0 %4198, %v4191
    %v4200 = vpop.permute.xlu0 %4199
    %v4204 = vunpack.c.l.b16 %v4188
    %v4205 = vunpack.c.l.b16 %v4189
    %v4206 = vpack.c.b16 %v4205, %v4204
    %vm4207 = vcmask 588800
    %v4209 = vsel %vm4207, %v4206, 0
    %v4212 = vsel %vm3161, %v4187, 0
    %4214 = vmatprep.subr.bf16.mxu0 0
    %4215 = vmatpush1.bf16.msra.mxu0 0
    %4216 = vmatprep.subr.bf16.mxu0 0
    %4217 = vmatpush1.bf16.msra.mxu0 0
    %4218 = vmatprep.subr.bf16.mxu0 0
    %4219 = vmatpush1.bf16.msra.mxu0 0
    %4220 = vmatprep.subr.bf16.mxu0 0
    %4221 = vmatpush1.bf16.msra.mxu0 %v4212
    %4222 = vmatprep.subr.bf16.mxu0 0
    %4223 = vmatpush1.bf16.msra.mxu0 %v4186
    %4224 = vmatprep.subr.bf16.mxu0 0
    %4225 = vmatpush1.bf16.msra.mxu0 %v4185
    %4226 = vmatprep.subr.bf16.mxu0 0
    %4227 = vmatpush1.bf16.msra.mxu0 %v4184
    %4228 = vmatprep.subr.bf16.mxu0 0
    %4229 = vmatpush1.bf16.msra.mxu0 %v4183
    %4230 = vmatprep.subr.bf16.mxu0 0
    %4231 = vmatpush2.bf16.msra.mxu0 0
    %4232 = vmatprep.subr.bf16.mxu0 0
    %4233 = vmatpush2.bf16.msra.mxu0 0
    %4234 = vmatprep.subr.bf16.mxu0 0
    %4235 = vmatpush2.bf16.msra.mxu0 0
    %4236 = vmatprep.subr.bf16.mxu0 0
    %4237 = vmatpush2.bf16.msra.mxu0 0
    %4238 = vmatprep.subr.bf16.mxu0 0
    %4239 = vmatpush2.bf16.msra.mxu0 0
    %4240 = vmatprep.subr.bf16.mxu0 0
    %4241 = vmatpush2.bf16.msra.mxu0 0
    %4242 = vmatprep.subr.bf16.mxu0 0
    %4243 = vmatpush2.bf16.msra.mxu0 0
    %4244 = vmatprep.subr.bf16.mxu0 0
    %4245 = vmatpush2.bf16.msra.mxu0 0
    %4246 = vmatprep.mubr.bf16.mxu0 0
    %4247 = vmatmul.mubr.bf16.gmra.mxu0 %v4209
    %v4248 = vpop.f32.mrf.mxu0
    %v4249 = vadd.f32 %v4195, %v4248
    %v4250 = vpop.f32.mrf.mxu0
    %v4251 = vpop.f32.mrf.mxu0
    %v4252 = vadd.f32 %v4200, %v4251
    %v4253 = vpop.f32.mrf.mxu0
    %4254 = vdwg.mxu0
    %v4255 = vxor.u32 %v4249, 2147483648
    %v4256 = vxor.u32 %v4252, 2147483648
    %v4257 = vmul.f32 %v4255, 1.442695
    %v4258 = vpow.pop %v4257
    %v4259 = vmul.f32 %v4256, 1.442695
    %v4260 = vpow.pop %v4259
    %v4261 = vadd.f32 %v4258, 1.0
    %v4262 = vadd.f32 %v4260, 1.0
    %v4263 = vrcp.pop %v4261
    %v4264 = vmul.f32 1.0, %v4263
    %v4265 = vrcp.pop %v4262
    %v4266 = vmul.f32 1.0, %v4265
    %v4267 = vmul.f32 %v4249, %v4264
    %v4268 = vmul.f32 %v4252, %v4266
    %v4269 = vpack.c.bf16 %v4268, %v4267
    %v4270 = vld [vmem:[#allocation7] sm:$0xf]
    %v4271 = vld [vmem:[#allocation7 + $0x4] sm:$0xf]
    %v4272 = vld [vmem:[#allocation7 + $0x8] sm:$0xf]
    %v4273 = vld [vmem:[#allocation7 + $0xc] sm:$0xf]
    %v4278 = vunpack.c.l.b16 %v4270
    %v4279 = vunpack.c.l.b16 %v4271
    %v4280 = vunpack.c.l.b16 %v4272
    %v4281 = vunpack.c.l.b16 %v4273
    %v4282 = vpack.c.b16 %v4279, %v4278
    %v4283 = vpack.c.b16 %v4281, %v4280
    %vm4286 = vcmask 261120
    %v4288 = vsel %vm4286, %v4269, 0
    %4290 = vmatprep.subr.bf16.mxu0 0
    %4291 = vmatpush1.bf16.msra.mxu0 0
    %4292 = vmatprep.subr.bf16.mxu0 0
    %4293 = vmatpush1.bf16.msra.mxu0 0
    %4294 = vmatprep.subr.bf16.mxu0 0
    %4295 = vmatpush1.bf16.msra.mxu0 0
    %4296 = vmatprep.subr.bf16.mxu0 0
    %4297 = vmatpush1.bf16.msra.mxu0 0
    %4298 = vmatprep.subr.bf16.mxu0 0
    %4299 = vmatpush1.bf16.msra.mxu0 0
    %4300 = vmatprep.subr.bf16.mxu0 0
    %4301 = vmatpush1.bf16.msra.mxu0 0
    %4302 = vmatprep.subr.bf16.mxu0 0
    %4303 = vmatpush1.bf16.msra.mxu0 %v4283
    %4304 = vmatprep.subr.bf16.mxu0 0
    %4305 = vmatpush1.bf16.msra.mxu0 %v4282
    %4306 = vmatprep.subr.bf16.mxu0 0
    %4307 = vmatpush2.bf16.msra.mxu0 0
    %4308 = vmatprep.subr.bf16.mxu0 0
    %4309 = vmatpush2.bf16.msra.mxu0 0
    %4310 = vmatprep.subr.bf16.mxu0 0
    %4311 = vmatpush2.bf16.msra.mxu0 0
    %4312 = vmatprep.subr.bf16.mxu0 0
    %4313 = vmatpush2.bf16.msra.mxu0 0
    %4314 = vmatprep.subr.bf16.mxu0 0
    %4315 = vmatpush2.bf16.msra.mxu0 0
    %4316 = vmatprep.subr.bf16.mxu0 0
    %4317 = vmatpush2.bf16.msra.mxu0 0
    %4318 = vmatprep.subr.bf16.mxu0 0
    %4319 = vmatpush2.bf16.msra.mxu0 0
    %4320 = vmatprep.subr.bf16.mxu0 0
    %4321 = vmatpush2.bf16.msra.mxu0 0
    %4322 = vmatprep.mubr.bf16.mxu0 0
    %4323 = vmatmul.mubr.bf16.gmra.mxu0 %v4288
    %v4324 = vpop.f32.mrf.mxu0
    %v4325 = vadd.f32 0.0, %v4324
    %v4326 = vpop.f32.mrf.mxu0
    %v4327 = vpop.f32.mrf.mxu0
    %v4328 = vadd.f32 0.0, %v4327
    %v4329 = vpop.f32.mrf.mxu0
    %4330 = vdwg.mxu0
    %s4331 = scalar_lea.vmem [#allocation7], 16
    %v4332 = vld [vmem:[%s4331] sm:$0xf]
    %v4333 = vld [vmem:[%s4331 + $0x4] sm:$0xf]
    %v4334 = vld [vmem:[%s4331 + $0x8] sm:$0xf]
    %v4335 = vld [vmem:[%s4331 + $0xc] sm:$0xf]
    %v4340 = vunpack.c.l.b16 %v4332
    %v4341 = vunpack.c.l.b16 %v4333
    %v4342 = vunpack.c.l.b16 %v4334
    %v4343 = vunpack.c.l.b16 %v4335
    %v4344 = vpack.c.b16 %v4341, %v4340
    %v4345 = vpack.c.b16 %v4343, %v4342
    %4348 = vmatprep.subr.bf16.mxu0 0
    %4349 = vmatpush1.bf16.msra.mxu0 0
    %4350 = vmatprep.subr.bf16.mxu0 0
    %4351 = vmatpush1.bf16.msra.mxu0 0
    %4352 = vmatprep.subr.bf16.mxu0 0
    %4353 = vmatpush1.bf16.msra.mxu0 0
    %4354 = vmatprep.subr.bf16.mxu0 0
    %4355 = vmatpush1.bf16.msra.mxu0 0
    %4356 = vmatprep.subr.bf16.mxu0 0
    %4357 = vmatpush1.bf16.msra.mxu0 0
    %4358 = vmatprep.subr.bf16.mxu0 0
    %4359 = vmatpush1.bf16.msra.mxu0 0
    %4360 = vmatprep.subr.bf16.mxu0 0
    %4361 = vmatpush1.bf16.msra.mxu0 %v4345
    %4362 = vmatprep.subr.bf16.mxu0 0
    %4363 = vmatpush1.bf16.msra.mxu0 %v4344
    %4364 = vmatprep.subr.bf16.mxu0 0
    %4365 = vmatpush2.bf16.msra.mxu0 0
    %4366 = vmatprep.subr.bf16.mxu0 0
    %4367 = vmatpush2.bf16.msra.mxu0 0
    %4368 = vmatprep.subr.bf16.mxu0 0
    %4369 = vmatpush2.bf16.msra.mxu0 0
    %4370 = vmatprep.subr.bf16.mxu0 0
    %4371 = vmatpush2.bf16.msra.mxu0 0
    %4372 = vmatprep.subr.bf16.mxu0 0
    %4373 = vmatpush2.bf16.msra.mxu0 0
    %4374 = vmatprep.subr.bf16.mxu0 0
    %4375 = vmatpush2.bf16.msra.mxu0 0
    %4376 = vmatprep.subr.bf16.mxu0 0
    %4377 = vmatpush2.bf16.msra.mxu0 0
    %4378 = vmatprep.subr.bf16.mxu0 0
    %4379 = vmatpush2.bf16.msra.mxu0 0
    %4380 = vmatprep.mubr.bf16.mxu0 0
    %4381 = vmatmul.mubr.bf16.gmra.mxu0 %v4288
    %v4382 = vpop.f32.mrf.mxu0
    %v4383 = vadd.f32 0.0, %v4382
    %v4384 = vpop.f32.mrf.mxu0
    %v4385 = vpop.f32.mrf.mxu0
    %v4386 = vadd.f32 0.0, %v4385
    %v4387 = vpop.f32.mrf.mxu0
    %4388 = vdwg.mxu0
    %s4389 = scalar_lea.vmem [#allocation7], 32
    %v4390 = vld [vmem:[%s4389] sm:$0xf]
    %v4391 = vld [vmem:[%s4389 + $0x4] sm:$0xf]
    %v4392 = vld [vmem:[%s4389 + $0x8] sm:$0xf]
    %v4393 = vld [vmem:[%s4389 + $0xc] sm:$0xf]
    %v4398 = vunpack.c.l.b16 %v4390
    %v4399 = vunpack.c.l.b16 %v4391
    %v4400 = vunpack.c.l.b16 %v4392
    %v4401 = vunpack.c.l.b16 %v4393
    %v4402 = vpack.c.b16 %v4399, %v4398
    %v4403 = vpack.c.b16 %v4401, %v4400
    %4406 = vmatprep.subr.bf16.mxu0 0
    %4407 = vmatpush1.bf16.msra.mxu0 0
    %4408 = vmatprep.subr.bf16.mxu0 0
    %4409 = vmatpush1.bf16.msra.mxu0 0
    %4410 = vmatprep.subr.bf16.mxu0 0
    %4411 = vmatpush1.bf16.msra.mxu0 0
    %4412 = vmatprep.subr.bf16.mxu0 0
    %4413 = vmatpush1.bf16.msra.mxu0 0
    %4414 = vmatprep.subr.bf16.mxu0 0
    %4415 = vmatpush1.bf16.msra.mxu0 0
    %4416 = vmatprep.subr.bf16.mxu0 0
    %4417 = vmatpush1.bf16.msra.mxu0 0
    %4418 = vmatprep.subr.bf16.mxu0 0
    %4419 = vmatpush1.bf16.msra.mxu0 %v4403
    %4420 = vmatprep.subr.bf16.mxu0 0
    %4421 = vmatpush1.bf16.msra.mxu0 %v4402
    %4422 = vmatprep.subr.bf16.mxu0 0
    %4423 = vmatpush2.bf16.msra.mxu0 0
    %4424 = vmatprep.subr.bf16.mxu0 0
    %4425 = vmatpush2.bf16.msra.mxu0 0
    %4426 = vmatprep.subr.bf16.mxu0 0
    %4427 = vmatpush2.bf16.msra.mxu0 0
    %4428 = vmatprep.subr.bf16.mxu0 0
    %4429 = vmatpush2.bf16.msra.mxu0 0
    %4430 = vmatprep.subr.bf16.mxu0 0
    %4431 = vmatpush2.bf16.msra.mxu0 0
    %4432 = vmatprep.subr.bf16.mxu0 0
    %4433 = vmatpush2.bf16.msra.mxu0 0
    %4434 = vmatprep.subr.bf16.mxu0 0
    %4435 = vmatpush2.bf16.msra.mxu0 0
    %4436 = vmatprep.subr.bf16.mxu0 0
    %4437 = vmatpush2.bf16.msra.mxu0 0
    %4438 = vmatprep.mubr.bf16.mxu0 0
    %4439 = vmatmul.mubr.bf16.gmra.mxu0 %v4288
    %v4440 = vpop.f32.mrf.mxu0
    %v4441 = vadd.f32 0.0, %v4440
    %v4442 = vpop.f32.mrf.mxu0
    %v4443 = vpop.f32.mrf.mxu0
    %v4444 = vadd.f32 0.0, %v4443
    %v4445 = vpop.f32.mrf.mxu0
    %4446 = vdwg.mxu0
    %s4447 = scalar_lea.vmem [#allocation7], 48
    %v4448 = vld [vmem:[%s4447] sm:$0xf]
    %v4449 = vld [vmem:[%s4447 + $0x4] sm:$0xf]
    %v4450 = vld [vmem:[%s4447 + $0x8] sm:$0xf]
    %v4451 = vld [vmem:[%s4447 + $0xc] sm:$0xf]
    %v4456 = vunpack.c.l.b16 %v4448
    %v4457 = vunpack.c.l.b16 %v4449
    %v4458 = vunpack.c.l.b16 %v4450
    %v4459 = vunpack.c.l.b16 %v4451
    %v4460 = vpack.c.b16 %v4457, %v4456
    %v4461 = vpack.c.b16 %v4459, %v4458
    %4464 = vmatprep.subr.bf16.mxu0 0
    %4465 = vmatpush1.bf16.msra.mxu0 0
    %4466 = vmatprep.subr.bf16.mxu0 0
    %4467 = vmatpush1.bf16.msra.mxu0 0
    %4468 = vmatprep.subr.bf16.mxu0 0
    %4469 = vmatpush1.bf16.msra.mxu0 0
    %4470 = vmatprep.subr.bf16.mxu0 0
    %4471 = vmatpush1.bf16.msra.mxu0 0
    %4472 = vmatprep.subr.bf16.mxu0 0
    %4473 = vmatpush1.bf16.msra.mxu0 0
    %4474 = vmatprep.subr.bf16.mxu0 0
    %4475 = vmatpush1.bf16.msra.mxu0 0
    %4476 = vmatprep.subr.bf16.mxu0 0
    %4477 = vmatpush1.bf16.msra.mxu0 %v4461
    %4478 = vmatprep.subr.bf16.mxu0 0
    %4479 = vmatpush1.bf16.msra.mxu0 %v4460
    %4480 = vmatprep.subr.bf16.mxu0 0
    %4481 = vmatpush2.bf16.msra.mxu0 0
    %4482 = vmatprep.subr.bf16.mxu0 0
    %4483 = vmatpush2.bf16.msra.mxu0 0
    %4484 = vmatprep.subr.bf16.mxu0 0
    %4485 = vmatpush2.bf16.msra.mxu0 0
    %4486 = vmatprep.subr.bf16.mxu0 0
    %4487 = vmatpush2.bf16.msra.mxu0 0
    %4488 = vmatprep.subr.bf16.mxu0 0
    %4489 = vmatpush2.bf16.msra.mxu0 0
    %4490 = vmatprep.subr.bf16.mxu0 0
    %4491 = vmatpush2.bf16.msra.mxu0 0
    %4492 = vmatprep.subr.bf16.mxu0 0
    %4493 = vmatpush2.bf16.msra.mxu0 0
    %4494 = vmatprep.subr.bf16.mxu0 0
    %4495 = vmatpush2.bf16.msra.mxu0 0
    %4496 = vmatprep.mubr.bf16.mxu0 0
    %4497 = vmatmul.mubr.bf16.gmra.mxu0 %v4288
    %v4498 = vpop.f32.mrf.mxu0
    %v4499 = vadd.f32 0.0, %v4498
    %v4500 = vpop.f32.mrf.mxu0
    %v4501 = vpop.f32.mrf.mxu0
    %v4502 = vadd.f32 0.0, %v4501
    %v4503 = vpop.f32.mrf.mxu0
    %4504 = vdwg.mxu0
    %s4505 = scalar_lea.vmem [#allocation7], 64
    %v4506 = vld [vmem:[%s4505] sm:$0xf]
    %v4507 = vld [vmem:[%s4505 + $0x4] sm:$0xf]
    %v4508 = vld [vmem:[%s4505 + $0x8] sm:$0xf]
    %v4509 = vld [vmem:[%s4505 + $0xc] sm:$0xf]
    %v4514 = vunpack.c.l.b16 %v4506
    %v4515 = vunpack.c.l.b16 %v4507
    %v4516 = vunpack.c.l.b16 %v4508
    %v4517 = vunpack.c.l.b16 %v4509
    %v4518 = vpack.c.b16 %v4515, %v4514
    %v4519 = vpack.c.b16 %v4517, %v4516
    %4522 = vmatprep.subr.bf16.mxu0 0
    %4523 = vmatpush1.bf16.msra.mxu0 0
    %4524 = vmatprep.subr.bf16.mxu0 0
    %4525 = vmatpush1.bf16.msra.mxu0 0
    %4526 = vmatprep.subr.bf16.mxu0 0
    %4527 = vmatpush1.bf16.msra.mxu0 0
    %4528 = vmatprep.subr.bf16.mxu0 0
    %4529 = vmatpush1.bf16.msra.mxu0 0
    %4530 = vmatprep.subr.bf16.mxu0 0
    %4531 = vmatpush1.bf16.msra.mxu0 0
    %4532 = vmatprep.subr.bf16.mxu0 0
    %4533 = vmatpush1.bf16.msra.mxu0 0
    %4534 = vmatprep.subr.bf16.mxu0 0
    %4535 = vmatpush1.bf16.msra.mxu0 %v4519
    %4536 = vmatprep.subr.bf16.mxu0 0
    %4537 = vmatpush1.bf16.msra.mxu0 %v4518
    %4538 = vmatprep.subr.bf16.mxu0 0
    %4539 = vmatpush2.bf16.msra.mxu0 0
    %4540 = vmatprep.subr.bf16.mxu0 0
    %4541 = vmatpush2.bf16.msra.mxu0 0
    %4542 = vmatprep.subr.bf16.mxu0 0
    %4543 = vmatpush2.bf16.msra.mxu0 0
    %4544 = vmatprep.subr.bf16.mxu0 0
    %4545 = vmatpush2.bf16.msra.mxu0 0
    %4546 = vmatprep.subr.bf16.mxu0 0
    %4547 = vmatpush2.bf16.msra.mxu0 0
    %4548 = vmatprep.subr.bf16.mxu0 0
    %4549 = vmatpush2.bf16.msra.mxu0 0
    %4550 = vmatprep.subr.bf16.mxu0 0
    %4551 = vmatpush2.bf16.msra.mxu0 0
    %4552 = vmatprep.subr.bf16.mxu0 0
    %4553 = vmatpush2.bf16.msra.mxu0 0
    %4554 = vmatprep.mubr.bf16.mxu0 0
    %4555 = vmatmul.mubr.bf16.gmra.mxu0 %v4288
    %v4556 = vpop.f32.mrf.mxu0
    %v4557 = vadd.f32 0.0, %v4556
    %v4558 = vpop.f32.mrf.mxu0
    %v4559 = vpop.f32.mrf.mxu0
    %v4560 = vadd.f32 0.0, %v4559
    %v4561 = vpop.f32.mrf.mxu0
    %4562 = vdwg.mxu0
    %s4563 = scalar_lea.vmem [#allocation7], 80
    %v4564 = vld [vmem:[%s4563] sm:$0xf]
    %v4565 = vld [vmem:[%s4563 + $0x4] sm:$0xf]
    %v4566 = vld [vmem:[%s4563 + $0x8] sm:$0xf]
    %v4567 = vld [vmem:[%s4563 + $0xc] sm:$0xf]
    %v4572 = vunpack.c.l.b16 %v4564
    %v4573 = vunpack.c.l.b16 %v4565
    %v4574 = vunpack.c.l.b16 %v4566
    %v4575 = vunpack.c.l.b16 %v4567
    %v4576 = vpack.c.b16 %v4573, %v4572
    %v4577 = vpack.c.b16 %v4575, %v4574
    %4580 = vmatprep.subr.bf16.mxu0 0
    %4581 = vmatpush1.bf16.msra.mxu0 0
    %4582 = vmatprep.subr.bf16.mxu0 0
    %4583 = vmatpush1.bf16.msra.mxu0 0
    %4584 = vmatprep.subr.bf16.mxu0 0
    %4585 = vmatpush1.bf16.msra.mxu0 0
    %4586 = vmatprep.subr.bf16.mxu0 0
    %4587 = vmatpush1.bf16.msra.mxu0 0
    %4588 = vmatprep.subr.bf16.mxu0 0
    %4589 = vmatpush1.bf16.msra.mxu0 0
    %4590 = vmatprep.subr.bf16.mxu0 0
    %4591 = vmatpush1.bf16.msra.mxu0 0
    %4592 = vmatprep.subr.bf16.mxu0 0
    %4593 = vmatpush1.bf16.msra.mxu0 %v4577
    %4594 = vmatprep.subr.bf16.mxu0 0
    %4595 = vmatpush1.bf16.msra.mxu0 %v4576
    %4596 = vmatprep.subr.bf16.mxu0 0
    %4597 = vmatpush2.bf16.msra.mxu0 0
    %4598 = vmatprep.subr.bf16.mxu0 0
    %4599 = vmatpush2.bf16.msra.mxu0 0
    %4600 = vmatprep.subr.bf16.mxu0 0
    %4601 = vmatpush2.bf16.msra.mxu0 0
    %4602 = vmatprep.subr.bf16.mxu0 0
    %4603 = vmatpush2.bf16.msra.mxu0 0
    %4604 = vmatprep.subr.bf16.mxu0 0
    %4605 = vmatpush2.bf16.msra.mxu0 0
    %4606 = vmatprep.subr.bf16.mxu0 0
    %4607 = vmatpush2.bf16.msra.mxu0 0
    %4608 = vmatprep.subr.bf16.mxu0 0
    %4609 = vmatpush2.bf16.msra.mxu0 0
    %4610 = vmatprep.subr.bf16.mxu0 0
    %4611 = vmatpush2.bf16.msra.mxu0 0
    %4612 = vmatprep.mubr.bf16.mxu0 0
    %4613 = vmatmul.mubr.bf16.gmra.mxu0 %v4288
    %v4614 = vpop.f32.mrf.mxu0
    %v4615 = vadd.f32 0.0, %v4614
    %v4616 = vpop.f32.mrf.mxu0
    %v4617 = vpop.f32.mrf.mxu0
    %v4618 = vadd.f32 0.0, %v4617
    %v4619 = vpop.f32.mrf.mxu0
    %4620 = vdwg.mxu0
    %s4621 = scalar_lea.vmem [#allocation7], 96
    %v4622 = vld [vmem:[%s4621] sm:$0xf]
    %v4623 = vld [vmem:[%s4621 + $0x4] sm:$0xf]
    %v4624 = vld [vmem:[%s4621 + $0x8] sm:$0xf]
    %v4625 = vld [vmem:[%s4621 + $0xc] sm:$0xf]
    %v4630 = vunpack.c.l.b16 %v4622
    %v4631 = vunpack.c.l.b16 %v4623
    %v4632 = vunpack.c.l.b16 %v4624
    %v4633 = vunpack.c.l.b16 %v4625
    %v4634 = vpack.c.b16 %v4631, %v4630
    %v4635 = vpack.c.b16 %v4633, %v4632
    %4638 = vmatprep.subr.bf16.mxu0 0
    %4639 = vmatpush1.bf16.msra.mxu0 0
    %4640 = vmatprep.subr.bf16.mxu0 0
    %4641 = vmatpush1.bf16.msra.mxu0 0
    %4642 = vmatprep.subr.bf16.mxu0 0
    %4643 = vmatpush1.bf16.msra.mxu0 0
    %4644 = vmatprep.subr.bf16.mxu0 0
    %4645 = vmatpush1.bf16.msra.mxu0 0
    %4646 = vmatprep.subr.bf16.mxu0 0
    %4647 = vmatpush1.bf16.msra.mxu0 0
    %4648 = vmatprep.subr.bf16.mxu0 0
    %4649 = vmatpush1.bf16.msra.mxu0 0
    %4650 = vmatprep.subr.bf16.mxu0 0
    %4651 = vmatpush1.bf16.msra.mxu0 %v4635
    %4652 = vmatprep.subr.bf16.mxu0 0
    %4653 = vmatpush1.bf16.msra.mxu0 %v4634
    %4654 = vmatprep.subr.bf16.mxu0 0
    %4655 = vmatpush2.bf16.msra.mxu0 0
    %4656 = vmatprep.subr.bf16.mxu0 0
    %4657 = vmatpush2.bf16.msra.mxu0 0
    %4658 = vmatprep.subr.bf16.mxu0 0
    %4659 = vmatpush2.bf16.msra.mxu0 0
    %4660 = vmatprep.subr.bf16.mxu0 0
    %4661 = vmatpush2.bf16.msra.mxu0 0
    %4662 = vmatprep.subr.bf16.mxu0 0
    %4663 = vmatpush2.bf16.msra.mxu0 0
    %4664 = vmatprep.subr.bf16.mxu0 0
    %4665 = vmatpush2.bf16.msra.mxu0 0
    %4666 = vmatprep.subr.bf16.mxu0 0
    %4667 = vmatpush2.bf16.msra.mxu0 0
    %4668 = vmatprep.subr.bf16.mxu0 0
    %4669 = vmatpush2.bf16.msra.mxu0 0
    %4670 = vmatprep.mubr.bf16.mxu0 0
    %4671 = vmatmul.mubr.bf16.gmra.mxu0 %v4288
    %v4672 = vpop.f32.mrf.mxu0
    %v4673 = vadd.f32 0.0, %v4672
    %v4674 = vpop.f32.mrf.mxu0
    %v4675 = vpop.f32.mrf.mxu0
    %v4676 = vadd.f32 0.0, %v4675
    %v4677 = vpop.f32.mrf.mxu0
    %4678 = vdwg.mxu0
    %s4679 = scalar_lea.vmem [#allocation7], 112
    %v4680 = vld [vmem:[%s4679] sm:$0xf]
    %v4681 = vld [vmem:[%s4679 + $0x4] sm:$0xf]
    %v4682 = vld [vmem:[%s4679 + $0x8] sm:$0xf]
    %v4683 = vld [vmem:[%s4679 + $0xc] sm:$0xf]
    %v4688 = vunpack.c.l.b16 %v4680
    %v4689 = vunpack.c.l.b16 %v4681
    %v4690 = vunpack.c.l.b16 %v4682
    %v4691 = vunpack.c.l.b16 %v4683
    %v4692 = vpack.c.b16 %v4689, %v4688
    %v4693 = vpack.c.b16 %v4691, %v4690
    %4696 = vmatprep.subr.bf16.mxu0 0
    %4697 = vmatpush1.bf16.msra.mxu0 0
    %4698 = vmatprep.subr.bf16.mxu0 0
    %4699 = vmatpush1.bf16.msra.mxu0 0
    %4700 = vmatprep.subr.bf16.mxu0 0
    %4701 = vmatpush1.bf16.msra.mxu0 0
    %4702 = vmatprep.subr.bf16.mxu0 0
    %4703 = vmatpush1.bf16.msra.mxu0 0
    %4704 = vmatprep.subr.bf16.mxu0 0
    %4705 = vmatpush1.bf16.msra.mxu0 0
    %4706 = vmatprep.subr.bf16.mxu0 0
    %4707 = vmatpush1.bf16.msra.mxu0 0
    %4708 = vmatprep.subr.bf16.mxu0 0
    %4709 = vmatpush1.bf16.msra.mxu0 %v4693
    %4710 = vmatprep.subr.bf16.mxu0 0
    %4711 = vmatpush1.bf16.msra.mxu0 %v4692
    %4712 = vmatprep.subr.bf16.mxu0 0
    %4713 = vmatpush2.bf16.msra.mxu0 0
    %4714 = vmatprep.subr.bf16.mxu0 0
    %4715 = vmatpush2.bf16.msra.mxu0 0
    %4716 = vmatprep.subr.bf16.mxu0 0
    %4717 = vmatpush2.bf16.msra.mxu0 0
    %4718 = vmatprep.subr.bf16.mxu0 0
    %4719 = vmatpush2.bf16.msra.mxu0 0
    %4720 = vmatprep.subr.bf16.mxu0 0
    %4721 = vmatpush2.bf16.msra.mxu0 0
    %4722 = vmatprep.subr.bf16.mxu0 0
    %4723 = vmatpush2.bf16.msra.mxu0 0
    %4724 = vmatprep.subr.bf16.mxu0 0
    %4725 = vmatpush2.bf16.msra.mxu0 0
    %4726 = vmatprep.subr.bf16.mxu0 0
    %4727 = vmatpush2.bf16.msra.mxu0 0
    %4728 = vmatprep.mubr.bf16.mxu0 0
    %4729 = vmatmul.mubr.bf16.gmra.mxu0 %v4288
    %v4730 = vpop.f32.mrf.mxu0
    %v4731 = vadd.f32 0.0, %v4730
    %v4732 = vpop.f32.mrf.mxu0
    %v4733 = vpop.f32.mrf.mxu0
    %v4734 = vadd.f32 0.0, %v4733
    %v4735 = vpop.f32.mrf.mxu0
    %4736 = vdwg.mxu0
    %s4737 = scalar_lea.vmem [#allocation7], 128
    %v4738 = vld [vmem:[%s4737] sm:$0xf]
    %v4739 = vld [vmem:[%s4737 + $0x4] sm:$0xf]
    %v4740 = vld [vmem:[%s4737 + $0x8] sm:$0xf]
    %v4741 = vld [vmem:[%s4737 + $0xc] sm:$0xf]
    %v4746 = vunpack.c.l.b16 %v4738
    %v4747 = vunpack.c.l.b16 %v4739
    %v4748 = vunpack.c.l.b16 %v4740
    %v4749 = vunpack.c.l.b16 %v4741
    %v4750 = vpack.c.b16 %v4747, %v4746
    %v4751 = vpack.c.b16 %v4749, %v4748
    %4754 = vmatprep.subr.bf16.mxu0 0
    %4755 = vmatpush1.bf16.msra.mxu0 0
    %4756 = vmatprep.subr.bf16.mxu0 0
    %4757 = vmatpush1.bf16.msra.mxu0 0
    %4758 = vmatprep.subr.bf16.mxu0 0
    %4759 = vmatpush1.bf16.msra.mxu0 0
    %4760 = vmatprep.subr.bf16.mxu0 0
    %4761 = vmatpush1.bf16.msra.mxu0 0
    %4762 = vmatprep.subr.bf16.mxu0 0
    %4763 = vmatpush1.bf16.msra.mxu0 0
    %4764 = vmatprep.subr.bf16.mxu0 0
    %4765 = vmatpush1.bf16.msra.mxu0 0
    %4766 = vmatprep.subr.bf16.mxu0 0
    %4767 = vmatpush1.bf16.msra.mxu0 %v4751
    %4768 = vmatprep.subr.bf16.mxu0 0
    %4769 = vmatpush1.bf16.msra.mxu0 %v4750
    %4770 = vmatprep.subr.bf16.mxu0 0
    %4771 = vmatpush2.bf16.msra.mxu0 0
    %4772 = vmatprep.subr.bf16.mxu0 0
    %4773 = vmatpush2.bf16.msra.mxu0 0
    %4774 = vmatprep.subr.bf16.mxu0 0
    %4775 = vmatpush2.bf16.msra.mxu0 0
    %4776 = vmatprep.subr.bf16.mxu0 0
    %4777 = vmatpush2.bf16.msra.mxu0 0
    %4778 = vmatprep.subr.bf16.mxu0 0
    %4779 = vmatpush2.bf16.msra.mxu0 0
    %4780 = vmatprep.subr.bf16.mxu0 0
    %4781 = vmatpush2.bf16.msra.mxu0 0
    %4782 = vmatprep.subr.bf16.mxu0 0
    %4783 = vmatpush2.bf16.msra.mxu0 0
    %4784 = vmatprep.subr.bf16.mxu0 0
    %4785 = vmatpush2.bf16.msra.mxu0 0
    %4786 = vmatprep.mubr.bf16.mxu0 0
    %4787 = vmatmul.mubr.bf16.gmra.mxu0 %v4288
    %v4788 = vpop.f32.mrf.mxu0
    %v4789 = vadd.f32 0.0, %v4788
    %v4790 = vpop.f32.mrf.mxu0
    %v4791 = vpop.f32.mrf.mxu0
    %v4792 = vadd.f32 0.0, %v4791
    %v4793 = vpop.f32.mrf.mxu0
    %4794 = vdwg.mxu0
    %v4795 = vpack.c.bf16 %v4328, %v4325
    %v4796 = vpack.c.bf16 %v4386, %v4383
    %v4797 = vpack.c.bf16 %v4444, %v4441
    %v4798 = vpack.c.bf16 %v4502, %v4499
    %v4799 = vpack.c.bf16 %v4560, %v4557
    %v4800 = vpack.c.bf16 %v4618, %v4615
    %v4801 = vpack.c.bf16 %v4676, %v4673
    %v4802 = vpack.c.bf16 %v4734, %v4731
    %v4803 = vpack.c.bf16 %v4792, %v4789
    %v4804 = vld [vmem:[#allocation10 + $0x8] sm:$0xff]
    %v4805 = vld [vmem:[#allocation10 + $0x20] sm:$0xff]
    %v4806 = vld [vmem:[%s6 + $0x18] sm:$0xff]
    %v4807 = vld [vmem:[%s6 + $0x20] sm:$0xff]
    %4809 = vset.pattern.permute.xlu0 0
    %4810 = vperm.xlu0 %4809, %v4806
    %v4811 = vpop.permute.xlu0 %4810
    %4814 = vset.pattern.permute.xlu0 0
    %4815 = vperm.xlu0 %4814, %v4807
    %v4816 = vpop.permute.xlu0 %4815
    %v4820 = vunpack.c.l.b16 %v4804
    %v4821 = vunpack.c.h.b16 %v4804
    %v4822 = vunpack.c.l.b16 %v4805
    %v4823 = vunpack.c.h.b16 %v4805
    %v4824 = vpack.c.b16 %v4822, %v4820
    %v4825 = vpack.c.b16 %v4823, %v4821
    %vm4827 = vcmask 130048
    %v4829 = vsel %vm4827, %v4825, 0
    %4831 = vmatprep.subr.bf16.mxu0 0
    %4832 = vmatpush1.bf16.msra.mxu0 %v4802
    %4833 = vmatprep.subr.bf16.mxu0 0
    %4834 = vmatpush1.bf16.msra.mxu0 %v4801
    %4835 = vmatprep.subr.bf16.mxu0 0
    %4836 = vmatpush1.bf16.msra.mxu0 %v4800
    %4837 = vmatprep.subr.bf16.mxu0 0
    %4838 = vmatpush1.bf16.msra.mxu0 %v4799
    %4839 = vmatprep.subr.bf16.mxu0 0
    %4840 = vmatpush1.bf16.msra.mxu0 %v4798
    %4841 = vmatprep.subr.bf16.mxu0 0
    %4842 = vmatpush1.bf16.msra.mxu0 %v4797
    %4843 = vmatprep.subr.bf16.mxu0 0
    %4844 = vmatpush1.bf16.msra.mxu0 %v4796
    %4845 = vmatprep.subr.bf16.mxu0 0
    %4846 = vmatpush1.bf16.msra.mxu0 %v4795
    %4847 = vmatprep.subr.bf16.mxu0 0
    %4848 = vmatpush2.bf16.msra.mxu0 0
    %4849 = vmatprep.subr.bf16.mxu0 0
    %4850 = vmatpush2.bf16.msra.mxu0 0
    %4851 = vmatprep.subr.bf16.mxu0 0
    %4852 = vmatpush2.bf16.msra.mxu0 0
    %4853 = vmatprep.subr.bf16.mxu0 0
    %4854 = vmatpush2.bf16.msra.mxu0 0
    %4855 = vmatprep.subr.bf16.mxu0 0
    %4856 = vmatpush2.bf16.msra.mxu0 0
    %4857 = vmatprep.subr.bf16.mxu0 0
    %4858 = vmatpush2.bf16.msra.mxu0 0
    %4859 = vmatprep.subr.bf16.mxu0 0
    %4860 = vmatpush2.bf16.msra.mxu0 0
    %4861 = vmatprep.subr.bf16.mxu0 0
    %4862 = vmatpush2.bf16.msra.mxu0 %v4803
    %4863 = vmatprep.mubr.bf16.mxu0 %v4829
    %4864 = vmatmul.mubr.bf16.gmra.mxu0 %v4824
    %v4865 = vpop.f32.mrf.mxu0
    %v4866 = vadd.f32 %v4811, %v4865
    %v4867 = vpop.f32.mrf.mxu0
    %v4868 = vpop.f32.mrf.mxu0
    %v4869 = vadd.f32 %v4816, %v4868
    %v4870 = vpop.f32.mrf.mxu0
    %4871 = vdwg.mxu0
    %v4872 = vxor.u32 %v4866, 2147483648
    %v4873 = vxor.u32 %v4869, 2147483648
    %v4874 = vmul.f32 %v4872, 1.442695
    %v4875 = vpow.pop %v4874
    %v4876 = vmul.f32 %v4873, 1.442695
    %v4877 = vpow.pop %v4876
    %v4878 = vadd.f32 %v4875, 1.0
    %v4879 = vadd.f32 %v4877, 1.0
    %v4880 = vrcp.pop %v4878
    %v4881 = vmul.f32 1.0, %v4880
    %v4882 = vrcp.pop %v4879
    %v4883 = vmul.f32 1.0, %v4882
    %v4884 = vmul.f32 %v4866, %v4881
    %v4885 = vmul.f32 %v4869, %v4883
    %v4886 = vpack.c.bf16 %v4885, %v4884
    %v4887 = vld [vmem:[#allocation10 + $0x10] sm:$0xf]
    %v4888 = vld [vmem:[#allocation10 + $0x28] sm:$0xf]
    %v4891 = vunpack.c.l.b16 %v4887
    %v4892 = vunpack.c.l.b16 %v4888
    %v4893 = vpack.c.b16 %v4892, %v4891
    %v4895 = vsel %vm4827, %v4893, 0
    %4897 = vmatprep.subr.bf16.mxu0 0
    %4898 = vmatpush1.bf16.msra.mxu0 0
    %4899 = vmatprep.subr.bf16.mxu0 0
    %4900 = vmatpush1.bf16.msra.mxu0 0
    %4901 = vmatprep.subr.bf16.mxu0 0
    %4902 = vmatpush1.bf16.msra.mxu0 0
    %4903 = vmatprep.subr.bf16.mxu0 0
    %4904 = vmatpush1.bf16.msra.mxu0 0
    %4905 = vmatprep.subr.bf16.mxu0 0
    %4906 = vmatpush1.bf16.msra.mxu0 0
    %4907 = vmatprep.subr.bf16.mxu0 0
    %4908 = vmatpush1.bf16.msra.mxu0 0
    %4909 = vmatprep.subr.bf16.mxu0 0
    %4910 = vmatpush1.bf16.msra.mxu0 0
    %4911 = vmatprep.subr.bf16.mxu0 0
    %4912 = vmatpush1.bf16.msra.mxu0 %v4886
    %4913 = vmatprep.subr.bf16.mxu0 0
    %4914 = vmatpush2.bf16.msra.mxu0 0
    %4915 = vmatprep.subr.bf16.mxu0 0
    %4916 = vmatpush2.bf16.msra.mxu0 0
    %4917 = vmatprep.subr.bf16.mxu0 0
    %4918 = vmatpush2.bf16.msra.mxu0 0
    %4919 = vmatprep.subr.bf16.mxu0 0
    %4920 = vmatpush2.bf16.msra.mxu0 0
    %4921 = vmatprep.subr.bf16.mxu0 0
    %4922 = vmatpush2.bf16.msra.mxu0 0
    %4923 = vmatprep.subr.bf16.mxu0 0
    %4924 = vmatpush2.bf16.msra.mxu0 0
    %4925 = vmatprep.subr.bf16.mxu0 0
    %4926 = vmatpush2.bf16.msra.mxu0 0
    %4927 = vmatprep.subr.bf16.mxu0 0
    %4928 = vmatpush2.bf16.msra.mxu0 0
    %4929 = vmatprep.mubr.bf16.mxu0 0
    %4930 = vmatmul.mubr.bf16.gmra.mxu0 %v4895
    %v4931 = vpop.f32.mrf.mxu0
    %v4932 = vadd.f32 0.0, %v4931
    %v4933 = vpop.f32.mrf.mxu0
    %v4934 = vpop.f32.mrf.mxu0
    %v4935 = vadd.f32 0.0, %v4934
    %v4936 = vpop.f32.mrf.mxu0
    %4937 = vdwg.mxu0
    %v4938 = vpack.c.bf16 %v4935, %v4932
    %v4939 = vld [vmem:[#allocation8] sm:$0xf]
    %v4940 = vld [vmem:[#allocation8 + $0x4] sm:$0xf]
    %v4941 = vld [vmem:[#allocation8 + $0x8] sm:$0xf]
    %v4942 = vld [vmem:[#allocation8 + $0xc] sm:$0xf]
    %v4943 = vld [vmem:[#allocation10 + $0x14] sm:$0xf]
    %v4944 = vld [vmem:[#allocation10 + $0x2c] sm:$0xf]
    %v4947 = vunpack.c.l.b16 %v4943
    %v4948 = vunpack.c.l.b16 %v4944
    %v4949 = vpack.c.b16 %v4948, %v4947
    %vm4950 = vcmask 64512
    %v4952 = vsel %vm4950, %v4949, 0
    %v4955 = vsel %vm3161, %v3238, 0
    %4957 = vmatprep.subr.bf16.mxu0 0
    %4958 = vmatpush1.bf16.msra.mxu0 0
    %4959 = vmatprep.subr.bf16.mxu0 0
    %4960 = vmatpush1.bf16.msra.mxu0 0
    %4961 = vmatprep.subr.bf16.mxu0 0
    %4962 = vmatpush1.bf16.msra.mxu0 0
    %4963 = vmatprep.subr.bf16.mxu0 0
    %4964 = vmatpush1.bf16.msra.mxu0 0
    %4965 = vmatprep.subr.bf16.mxu0 0
    %4966 = vmatpush1.bf16.msra.mxu0 0
    %4967 = vmatprep.subr.bf16.mxu0 0
    %4968 = vmatpush1.bf16.msra.mxu0 0
    %4969 = vmatprep.subr.bf16.mxu0 0
    %4970 = vmatpush1.bf16.msra.mxu0 0
    %4971 = vmatprep.subr.bf16.mxu0 0
    %4972 = vmatpush1.bf16.msra.mxu0 %v4955
    %4973 = vmatprep.subr.bf16.mxu0 0
    %4974 = vmatpush2.bf16.msra.mxu0 0
    %4975 = vmatprep.subr.bf16.mxu0 0
    %4976 = vmatpush2.bf16.msra.mxu0 0
    %4977 = vmatprep.subr.bf16.mxu0 0
    %4978 = vmatpush2.bf16.msra.mxu0 0
    %4979 = vmatprep.subr.bf16.mxu0 0
    %4980 = vmatpush2.bf16.msra.mxu0 0
    %4981 = vmatprep.subr.bf16.mxu0 0
    %4982 = vmatpush2.bf16.msra.mxu0 0
    %4983 = vmatprep.subr.bf16.mxu0 0
    %4984 = vmatpush2.bf16.msra.mxu0 0
    %4985 = vmatprep.subr.bf16.mxu0 0
    %4986 = vmatpush2.bf16.msra.mxu0 0
    %4987 = vmatprep.subr.bf16.mxu0 0
    %4988 = vmatpush2.bf16.msra.mxu0 0
    %4989 = vmatprep.mubr.bf16.mxu0 0
    %4990 = vmatmul.mubr.bf16.gmra.mxu0 %v4952
    %v4991 = vpop.f32.mrf.mxu0
    %v4992 = vadd.f32 0.0, %v4991
    %v4993 = vpop.f32.mrf.mxu0
    %v4994 = vpop.f32.mrf.mxu0
    %v4995 = vpop.f32.mrf.mxu0
    %4996 = vdwg.mxu0
    %v5001 = vunpack.c.l.b16 %v4939
    %v5002 = vunpack.c.l.b16 %v4940
    %v5003 = vunpack.c.l.b16 %v4941
    %v5004 = vunpack.c.l.b16 %v4942
    %v5005 = vpack.c.b16 %v5002, %v5001
    %v5006 = vpack.c.b16 %v5004, %v5003
    %v5010 = vsel %vm4286, %v4938, 0
    %5012 = vmatprep.subr.bf16.mxu0 0
    %5013 = vmatpush1.bf16.msra.mxu0 0
    %5014 = vmatprep.subr.bf16.mxu0 0
    %5015 = vmatpush1.bf16.msra.mxu0 0
    %5016 = vmatprep.subr.bf16.mxu0 0
    %5017 = vmatpush1.bf16.msra.mxu0 0
    %5018 = vmatprep.subr.bf16.mxu0 0
    %5019 = vmatpush1.bf16.msra.mxu0 0
    %5020 = vmatprep.subr.bf16.mxu0 0
    %5021 = vmatpush1.bf16.msra.mxu0 0
    %5022 = vmatprep.subr.bf16.mxu0 0
    %5023 = vmatpush1.bf16.msra.mxu0 0
    %5024 = vmatprep.subr.bf16.mxu0 0
    %5025 = vmatpush1.bf16.msra.mxu0 %v5006
    %5026 = vmatprep.subr.bf16.mxu0 0
    %5027 = vmatpush1.bf16.msra.mxu0 %v5005
    %5028 = vmatprep.subr.bf16.mxu0 0
    %5029 = vmatpush2.bf16.msra.mxu0 0
    %5030 = vmatprep.subr.bf16.mxu0 0
    %5031 = vmatpush2.bf16.msra.mxu0 0
    %5032 = vmatprep.subr.bf16.mxu0 0
    %5033 = vmatpush2.bf16.msra.mxu0 0
    %5034 = vmatprep.subr.bf16.mxu0 0
    %5035 = vmatpush2.bf16.msra.mxu0 0
    %5036 = vmatprep.subr.bf16.mxu0 0
    %5037 = vmatpush2.bf16.msra.mxu0 0
    %5038 = vmatprep.subr.bf16.mxu0 0
    %5039 = vmatpush2.bf16.msra.mxu0 0
    %5040 = vmatprep.subr.bf16.mxu0 0
    %5041 = vmatpush2.bf16.msra.mxu0 0
    %5042 = vmatprep.subr.bf16.mxu0 0
    %5043 = vmatpush2.bf16.msra.mxu0 0
    %5044 = vmatprep.mubr.bf16.mxu0 0
    %5045 = vmatmul.mubr.bf16.gmra.mxu0 %v5010
    %v5046 = vpop.f32.mrf.mxu0
    %v5047 = vadd.f32 %v4992, %v5046
    %v5048 = vpop.f32.mrf.mxu0
    %v5049 = vpop.f32.mrf.mxu0
    %v5050 = vpop.f32.mrf.mxu0
    %5051 = vdwg.mxu0
    %v5052 = vld [vmem:[%s6 + $0x28] sm:$0xff]
    %5054 = vset.pattern.permute.xlu0 0
    %5055 = vperm.xlu0 %5054, %v5052
    %v5056 = vpop.permute.xlu0 %5055
    %v5058 = vadd.f32 %v5047, %v5056
    %v5059 = vxor.u32 %v5058, 2147483648
    %v5060 = vmul.f32 %v5059, 1.442695
    %v5061 = vpow.pop %v5060
    %v5062 = vadd.f32 %v5061, 1.0
    %v5063 = vrcp.pop %v5062
    %v5064 = vmul.f32 1.0, %v5063
    %v5065 = vmul.f32 %v5058, %v5064
    %v5066 = vsel %vm4286, %v4884, 0.0
    %v5067 = vsel %vm4286, %v4885, 0.0
    %5068 = vst [vmem:[#allocation11] sm:$0xff] %v5066
    %5069 = vst [vmem:[#allocation11 + $0x8] sm:$0xff] %v5067
    %5070 = vst [vmem:[#allocation11 + $0x10] sm:$0xff] %v5065
    // Predicated region
    $region50: #{tpu_custom_call.1} parent=1 // pred_check
      _
    $region51: #{tpu_custom_call.1} parent=1 // pred_check_branch
      %5072 = sbr.rel (0) target = $region53
    $region52: #{tpu_custom_call.1} parent=1 // pred_region
      %s5074 = ssub.s32 384, 384
      %5075 = vsyncadd [#allocation4], %s5074
      %s5076 = sshll.u32 [#allocation11], 4
      %s5077 = int_to_ptr.vmem [resolvable:$true] %s5076
      %5082 = dma.vmem_to_hbm [thread:$0]  %s5077, 384, %s7, [#allocation4], 128, 128, 8
    $region53: #{tpu_custom_call.1} parent=1 // pred_fallthru
      _
    // Predicated region
    $region54: #{tpu_custom_call.1} parent=1 // pred_check
      _
    $region55: #{tpu_custom_call.1} parent=1 // pred_check_branch
      %5084 = sbr.rel (0) target = $region57
    $region56: #{tpu_custom_call.1} parent=1 // pred_region
      %5085 = dma.done [#allocation4], 384
    $region57: #{tpu_custom_call.1} parent=1 // pred_fallthru
      _
    %5086 = vsyncpa [#allocation3], 1
    %5087 = vsyncpa [#allocation6], 1
    %5088 = vsyncpa [#allocation9], 1
    %5089 = vsyncpa [#allocation4], 1

</llo_original>
